<compile_context>
chip_gen: v6e
topology: v6e:2x2x1
jax: 0.10.0
libtpu: 0.0.40
codegen_flags: <defaults>
</compile_context>

<pallas_src>
import functools

import jax
import jax.numpy as jnp
from jax.experimental import pallas as pl
from jax.experimental.pallas import tpu as pltpu

INPUT_SIZE = 32          # input_size of the module
H1, H2, H3 = 128, 64, 16
BN_EPS = 1e-5
TILE_B = 1024            # default batch tile (rows per grid step)
MIN_TILE = 256           # minimum tile (keeps lane-dense output, /8 sublanes)


def methane_kernel(x_ref,
                   w1_ref, b1_ref,
                   w2x_ref, w2h_ref, b2_ref,
                   w3x2_ref, w3x_ref, w3h_ref, b3_ref,
                   wo_ref, bo_ref,
                   out_ref):
    """Whole dense-net forward for one batch tile; all operands resident in VMEM.

    Weights are pre-transposed to [in, out], BN folded in, matmul operands bf16.
    """
    xb = x_ref[...]                                                     # [TB, D] bf16

    # fc1 (+ folded BN) -> ReLU            (dropout = identity in eval mode)
    z1 = jnp.dot(xb, w1_ref[...], preferred_element_type=jnp.float32) + b1_ref[...]
    x1 = jnp.maximum(z1, 0.0)                                           # [TB, 128] f32
    x1b = x1.astype(jnp.bfloat16)

    # fc2 on cat(x, x1) -> split accumulating matmuls (no lane-axis concat)
    z2 = (jnp.dot(xb, w2x_ref[...], preferred_element_type=jnp.float32)
          + jnp.dot(x1b, w2h_ref[...], preferred_element_type=jnp.float32)
          + b2_ref[...])
    x2 = jnp.maximum(z2, 0.0)                                           # [TB, 64]
    x2b = x2.astype(jnp.bfloat16)

    # fc3 on cat(x2, x, x1) -> split accumulating matmuls
    z3 = (jnp.dot(x2b, w3x2_ref[...], preferred_element_type=jnp.float32)
          + jnp.dot(xb, w3x_ref[...], preferred_element_type=jnp.float32)
          + jnp.dot(x1b, w3h_ref[...], preferred_element_type=jnp.float32)
          + b3_ref[...])
    x3 = jnp.maximum(z3, 0.0)                                           # [TB, 16]

    # output Linear(16, 1): VPU multiply + 16-lane reduce, then Softplus
    # (PyTorch Softplus defaults: beta=1, threshold=20).  Result is stored
    # lane-dense as a (1, TB) row.
    zo = jnp.sum(x3 * wo_ref[...], axis=-1)[None, :] + bo_ref[...]      # [1, TB] f32
    out_ref[...] = jnp.where(zo > 20.0, zo,
                             jnp.log1p(jnp.exp(jnp.minimum(zo, 20.0))))


# ----------------------------------------------------------------------------
# Parameter construction / preparation
# ----------------------------------------------------------------------------

def init_raw_params(key, input_size=INPUT_SIZE):
    """Deterministic synthetic parameters mirroring the PyTorch module.

    Linear weights are [out, in] (PyTorch layout); BN has non-trivial
    gamma/beta/running_mean/running_var so the folding path is exercised.
    """
    ks = jax.random.split(key, 20)
    ki = iter(ks)

    def linear(fan_in, fan_out):
        bound = 1.0 / jnp.sqrt(fan_in)
        w = jax.random.uniform(next(ki), (fan_out, fan_in), jnp.float32, -bound, bound)
        b = jax.random.uniform(next(ki), (fan_out,), jnp.float32, -bound, bound)
        return w, b

    def bn(n):
        gamma = 1.0 + 0.1 * jax.random.normal(next(ki), (n,), jnp.float32)
        beta = 0.1 * jax.random.normal(next(ki), (n,), jnp.float32)
        mean = 0.1 * jax.random.normal(next(ki), (n,), jnp.float32)
        var = jnp.abs(1.0 + 0.1 * jax.random.normal(next(ki), (n,), jnp.float32))
        return gamma, beta, mean, var

    w1, b1 = linear(input_size, H1);            g1, be1, m1, v1 = bn(H1)
    w2, b2 = linear(input_size + H1, H2);       g2, be2, m2, v2 = bn(H2)
    w3, b3 = linear(input_size + H1 + H2, H3);  g3, be3, m3, v3 = bn(H3)
    wo, bo = linear(H3, 1)
    return (w1, b1, g1, be1, m1, v1,
            w2, b2, g2, be2, m2, v2,
            w3, b3, g3, be3, m3, v3,
            wo, bo)


def prepare_params(raw, input_size=INPUT_SIZE):
    """Fold eval-mode BN into weights/biases, transpose to [in, out], split the
    concat-fed weights, and cast matmul operands to bf16."""
    (w1, b1, g1, be1, m1, v1,
     w2, b2, g2, be2, m2, v2,
     w3, b3, g3, be3, m3, v3,
     wo, bo) = raw

    def fold(w_oi, b, gamma, beta, mean, var):
        # y = BN(x @ W.T + b)  ==  x @ (W.T * s) + (b * s + t)
        s = gamma / jnp.sqrt(var + BN_EPS)
        t = beta - mean * s
        w_folded = (w_oi.T * s[None, :]).astype(jnp.bfloat16)
        b_folded = (b * s + t)[None, :].astype(jnp.float32)
        return w_folded, b_folded

    w1f, b1f = fold(w1, b1, g1, be1, m1, v1)          # [D,128], [1,128]
    w2f, b2f = fold(w2, b2, g2, be2, m2, v2)          # [D+128,64], [1,64]
    w3f, b3f = fold(w3, b3, g3, be3, m3, v3)          # [64+D+128,16], [1,16]

    D = input_size
    # fc2 input = cat(x[D], x1[128])
    w2x, w2h = w2f[:D], w2f[D:]
    # fc3 input = cat(x2[64], x[D], x1[128])
    w3x2, w3x, w3h = w3f[:H2], w3f[H2:H2 + D], w3f[H2 + D:]

    wo_row = wo.astype(jnp.float32).reshape(1, H3)    # [1,16] f32 (VPU reduce)
    bo_r = bo.astype(jnp.float32).reshape(1, 1)       # [1,1]  f32
    return (w1f, b1f, w2x, w2h, b2f, w3x2, w3x, w3h, b3f, wo_row, bo_r)


# ----------------------------------------------------------------------------
# Wrapper
# ----------------------------------------------------------------------------

def _round_up(n, m):
    return ((n + m - 1) // m) * m


@functools.partial(jax.jit, static_argnames=("tile_b",))
def methane_forward(x, *params, tile_b=TILE_B):
    B, D = x.shape
    # Shrink the tile for small batches (avoid padding 1k rows for a demo batch)
    # while keeping sublanes a multiple of 8 and the output lane-dense (>=256).
    tile = min(tile_b, max(MIN_TILE, _round_up(B, MIN_TILE)))
    num_tiles = pl.cdiv(B, tile)
    b_pad = num_tiles * tile

    # Pad the batch to a tile multiple and cast the matmul operand to bf16.
    x_pad = jnp.zeros((b_pad, D), jnp.bfloat16).at[:B].set(x.astype(jnp.bfloat16))

    in_specs = [pl.BlockSpec((tile, D), lambda i: (i, 0))] + \
               [pl.BlockSpec(p.shape, lambda i: (0, 0)) for p in params]
    # Lane-dense output slab: (num_tiles, tile), one (1, tile) row per step.
    out_specs = pl.BlockSpec((1, tile), lambda i: (i, 0))

    out = pl.pallas_call(
        methane_kernel,
        out_shape=jax.ShapeDtypeStruct((num_tiles, tile), jnp.float32),
        grid_spec=pltpu.PrefetchScalarGridSpec(
            num_scalar_prefetch=0,
            grid=(num_tiles,),
            in_specs=in_specs,
            out_specs=out_specs,
        ),
        compiler_params=pltpu.CompilerParams(
            dimension_semantics=("parallel",),
            vmem_limit_bytes=32 * 1024 * 1024,
        ),
    )(x_pad, *params)

    return out.reshape(-1)[:B].reshape(B, 1)


# ----------------------------------------------------------------------------
# References
# ----------------------------------------------------------------------------

def methane_reference_prepared(x, prep):
    """Same math as the kernel (folded BN, split matmuls, bf16 operands)."""
    (w1, b1, w2x, w2h, b2, w3x2, w3x, w3h, b3, wo, bo) = prep
    xb = x.astype(jnp.bfloat16)
    x1 = jnp.maximum(jnp.dot(xb, w1, preferred_element_type=jnp.float32) + b1, 0.0)
    x1b = x1.astype(jnp.bfloat16)
    z2 = (jnp.dot(xb, w2x, preferred_element_type=jnp.float32)
          + jnp.dot(x1b, w2h, preferred_element_type=jnp.float32) + b2)
    x2 = jnp.maximum(z2, 0.0)
    x2b = x2.astype(jnp.bfloat16)
    z3 = (jnp.dot(x2b, w3x2, preferred_element_type=jnp.float32)
          + jnp.dot(xb, w3x, preferred_element_type=jnp.float32)
          + jnp.dot(x1b, w3h, preferred_element_type=jnp.float32) + b3)
    x3 = jnp.maximum(z3, 0.0)
    zo = jnp.sum(x3 * wo, axis=-1, keepdims=True) + bo
    return jnp.where(zo > 20.0, zo, jnp.log1p(jnp.exp(jnp.minimum(zo, 20.0))))


def methane_reference_f32(x, raw):
    """Straightforward float32 eval-mode forward (unfolded BN, concat matmuls)."""
    (w1, b1, g1, be1, m1, v1,
     w2, b2, g2, be2, m2, v2,
     w3, b3, g3, be3, m3, v3,
     wo, bo) = raw

    def lin(h, w, b): return h @ w.T + b
    def bn(h, g, be, m, v): return (h - m) / jnp.sqrt(v + BN_EPS) * g + be

    x1 = jnp.maximum(bn(lin(x, w1, b1), g1, be1, m1, v1), 0.0)
    x2_in = jnp.concatenate([x, x1], axis=1)
    x2 = jnp.maximum(bn(lin(x2_in, w2, b2), g2, be2, m2, v2), 0.0)
    x3_in = jnp.concatenate([x2, x2_in], axis=1)
    x3 = jnp.maximum(bn(lin(x3_in, w3, b3), g3, be3, m3, v3), 0.0)
    zo = lin(x3, wo, bo)
    return jnp.where(zo > 20.0, zo, jnp.log1p(jnp.exp(jnp.minimum(zo, 20.0))))


if __name__ == "__main__":
    key = jax.random.PRNGKey(0)
    kx, kp = jax.random.split(key)

    B = 200                                   # small demo batch (exercises padding)
    x = jax.random.normal(kx, (B, INPUT_SIZE), jnp.float32)
    raw = init_raw_params(kp, INPUT_SIZE)
    prep = prepare_params(raw, INPUT_SIZE)

    out = methane_forward(x, *prep)
    out = jax.block_until_ready(out)
    assert out.shape == (B, 1)

    # Tight check: same math as the kernel, expressed in plain JAX.
    ref_tight = methane_reference_prepared(x, prep)
    assert jnp.allclose(out, ref_tight, atol=2e-3, rtol=2e-3), \
        "mismatch vs prepared-params reference"

    # Loose check: full-precision, unfolded reference (bf16 weights introduce
    # ~0.5-1% relative differences).
    ref_f32 = methane_reference_f32(x, raw)
    assert jnp.allclose(out, ref_f32, atol=5e-2, rtol=5e-2), \
        "mismatch vs float32 reference"

    print("KERNEL_OK")
</pallas_src>

<mosaic_0001>
module attributes {stable_mosaic.version = 11 : i64} {
  func.func @methane_kernel(%arg0: i32, %arg1: memref<256x32xbf16, #tpu.memory_space<vmem>>, %arg2: memref<32x128xbf16, #tpu.memory_space<vmem>>, %arg3: memref<1x128xf32, #tpu.memory_space<vmem>>, %arg4: memref<32x64xbf16, #tpu.memory_space<vmem>>, %arg5: memref<128x64xbf16, #tpu.memory_space<vmem>>, %arg6: memref<1x64xf32, #tpu.memory_space<vmem>>, %arg7: memref<64x16xbf16, #tpu.memory_space<vmem>>, %arg8: memref<32x16xbf16, #tpu.memory_space<vmem>>, %arg9: memref<128x16xbf16, #tpu.memory_space<vmem>>, %arg10: memref<1x16xf32, #tpu.memory_space<vmem>>, %arg11: memref<1x16xf32, #tpu.memory_space<vmem>>, %arg12: memref<1x1xf32, #tpu.memory_space<vmem>>, %arg13: memref<1x256xf32, #tpu.memory_space<vmem>>) attributes {dimension_semantics = [#tpu.dimension_semantics<parallel>], iteration_bounds = array<i64: 1>, scalar_prefetch = 0 : i64, scratch_operands = 0 : i64, tpu.core_type = #tpu.core_type<tc>, window_params = [{transform_indices = @transform_0, window_bounds = array<i64: 256, 32>}, {pipeline_mode = #tpu.pipeline_mode<synchronous>, transform_indices = @transform_1, window_bounds = array<i64: 32, 128>}, {pipeline_mode = #tpu.pipeline_mode<synchronous>, transform_indices = @transform_2, window_bounds = array<i64: 1, 128>}, {pipeline_mode = #tpu.pipeline_mode<synchronous>, transform_indices = @transform_3, window_bounds = array<i64: 32, 64>}, {pipeline_mode = #tpu.pipeline_mode<synchronous>, transform_indices = @transform_4, window_bounds = array<i64: 128, 64>}, {pipeline_mode = #tpu.pipeline_mode<synchronous>, transform_indices = @transform_5, window_bounds = array<i64: 1, 64>}, {pipeline_mode = #tpu.pipeline_mode<synchronous>, transform_indices = @transform_6, window_bounds = array<i64: 64, 16>}, {pipeline_mode = #tpu.pipeline_mode<synchronous>, transform_indices = @transform_7, window_bounds = array<i64: 32, 16>}, {pipeline_mode = #tpu.pipeline_mode<synchronous>, transform_indices = @transform_8, window_bounds = array<i64: 128, 16>}, {pipeline_mode = #tpu.pipeline_mode<synchronous>, transform_indices = @transform_9, window_bounds = array<i64: 1, 16>}, {pipeline_mode = #tpu.pipeline_mode<synchronous>, transform_indices = @transform_10, window_bounds = array<i64: 1, 16>}, {pipeline_mode = #tpu.pipeline_mode<synchronous>, transform_indices = @transform_11, window_bounds = array<i64: 1, 1>}, {transform_indices = @transform_12, window_bounds = array<i64: 1, 256>}]} {
    %c0 = arith.constant 0 : index
    %c0_0 = arith.constant 0 : index
    %0 = vector.load %arg1[%c0, %c0_0] : memref<256x32xbf16, #tpu.memory_space<vmem>>, vector<256x32xbf16>
    %c0_1 = arith.constant 0 : index
    %c0_2 = arith.constant 0 : index
    %1 = vector.load %arg2[%c0_1, %c0_2] : memref<32x128xbf16, #tpu.memory_space<vmem>>, vector<32x128xbf16>
    %cst = arith.constant dense<0.000000e+00> : vector<256x128xf32>
    %2 = tpu.matmul %0, %1, %cst {dimension_numbers = #tpu.dot_dimension_numbers<[1], [0], [0], [1], [0, 0, 1, 1], [], []>} : vector<256x32xbf16>, vector<32x128xbf16>, vector<256x128xf32> -> vector<256x128xf32>
    %c0_3 = arith.constant 0 : index
    %c0_4 = arith.constant 0 : index
    %3 = vector.load %arg3[%c0_3, %c0_4] : memref<1x128xf32, #tpu.memory_space<vmem>>, vector<1x128xf32>
    %4 = vector.broadcast %3 : vector<1x128xf32> to vector<256x128xf32>
    %5 = arith.addf %2, %4 : vector<256x128xf32>
    %cst_5 = arith.constant 0.000000e+00 : f32
    %6 = vector.broadcast %cst_5 : f32 to vector<256x128xf32>
    %7 = arith.maximumf %5, %6 : vector<256x128xf32>
    %8 = arith.truncf %7 : vector<256x128xf32> to vector<256x128xbf16>
    %c0_6 = arith.constant 0 : index
    %c0_7 = arith.constant 0 : index
    %9 = vector.load %arg4[%c0_6, %c0_7] : memref<32x64xbf16, #tpu.memory_space<vmem>>, vector<32x64xbf16>
    %cst_8 = arith.constant dense<0.000000e+00> : vector<256x64xf32>
    %10 = tpu.matmul %0, %9, %cst_8 {dimension_numbers = #tpu.dot_dimension_numbers<[1], [0], [0], [1], [0, 0, 1, 1], [], []>} : vector<256x32xbf16>, vector<32x64xbf16>, vector<256x64xf32> -> vector<256x64xf32>
    %c0_9 = arith.constant 0 : index
    %c0_10 = arith.constant 0 : index
    %11 = vector.load %arg5[%c0_9, %c0_10] : memref<128x64xbf16, #tpu.memory_space<vmem>>, vector<128x64xbf16>
    %cst_11 = arith.constant dense<0.000000e+00> : vector<256x64xf32>
    %12 = tpu.matmul %8, %11, %cst_11 {dimension_numbers = #tpu.dot_dimension_numbers<[1], [0], [0], [1], [0, 0, 1, 1], [], []>} : vector<256x128xbf16>, vector<128x64xbf16>, vector<256x64xf32> -> vector<256x64xf32>
    %13 = arith.addf %10, %12 : vector<256x64xf32>
    %c0_12 = arith.constant 0 : index
    %c0_13 = arith.constant 0 : index
    %14 = vector.load %arg6[%c0_12, %c0_13] : memref<1x64xf32, #tpu.memory_space<vmem>>, vector<1x64xf32>
    %15 = vector.broadcast %14 : vector<1x64xf32> to vector<256x64xf32>
    %16 = arith.addf %13, %15 : vector<256x64xf32>
    %cst_14 = arith.constant 0.000000e+00 : f32
    %17 = vector.broadcast %cst_14 : f32 to vector<256x64xf32>
    %18 = arith.maximumf %16, %17 : vector<256x64xf32>
    %19 = arith.truncf %18 : vector<256x64xf32> to vector<256x64xbf16>
    %c0_15 = arith.constant 0 : index
    %c0_16 = arith.constant 0 : index
    %20 = vector.load %arg7[%c0_15, %c0_16] : memref<64x16xbf16, #tpu.memory_space<vmem>>, vector<64x16xbf16>
    %cst_17 = arith.constant dense<0.000000e+00> : vector<256x16xf32>
    %21 = tpu.matmul %19, %20, %cst_17 {dimension_numbers = #tpu.dot_dimension_numbers<[1], [0], [0], [1], [0, 0, 1, 1], [], []>} : vector<256x64xbf16>, vector<64x16xbf16>, vector<256x16xf32> -> vector<256x16xf32>
    %c0_18 = arith.constant 0 : index
    %c0_19 = arith.constant 0 : index
    %22 = vector.load %arg8[%c0_18, %c0_19] : memref<32x16xbf16, #tpu.memory_space<vmem>>, vector<32x16xbf16>
    %cst_20 = arith.constant dense<0.000000e+00> : vector<256x16xf32>
    %23 = tpu.matmul %0, %22, %cst_20 {dimension_numbers = #tpu.dot_dimension_numbers<[1], [0], [0], [1], [0, 0, 1, 1], [], []>} : vector<256x32xbf16>, vector<32x16xbf16>, vector<256x16xf32> -> vector<256x16xf32>
    %24 = arith.addf %21, %23 : vector<256x16xf32>
    %c0_21 = arith.constant 0 : index
    %c0_22 = arith.constant 0 : index
    %25 = vector.load %arg9[%c0_21, %c0_22] : memref<128x16xbf16, #tpu.memory_space<vmem>>, vector<128x16xbf16>
    %cst_23 = arith.constant dense<0.000000e+00> : vector<256x16xf32>
    %26 = tpu.matmul %8, %25, %cst_23 {dimension_numbers = #tpu.dot_dimension_numbers<[1], [0], [0], [1], [0, 0, 1, 1], [], []>} : vector<256x128xbf16>, vector<128x16xbf16>, vector<256x16xf32> -> vector<256x16xf32>
    %27 = arith.addf %24, %26 : vector<256x16xf32>
    %c0_24 = arith.constant 0 : index
    %c0_25 = arith.constant 0 : index
    %28 = vector.load %arg10[%c0_24, %c0_25] : memref<1x16xf32, #tpu.memory_space<vmem>>, vector<1x16xf32>
    %29 = vector.broadcast %28 : vector<1x16xf32> to vector<256x16xf32>
    %30 = arith.addf %27, %29 : vector<256x16xf32>
    %cst_26 = arith.constant 0.000000e+00 : f32
    %31 = vector.broadcast %cst_26 : f32 to vector<256x16xf32>
    %32 = arith.maximumf %30, %31 : vector<256x16xf32>
    %c0_27 = arith.constant 0 : index
    %c0_28 = arith.constant 0 : index
    %33 = vector.load %arg11[%c0_27, %c0_28] : memref<1x16xf32, #tpu.memory_space<vmem>>, vector<1x16xf32>
    %34 = vector.broadcast %33 : vector<1x16xf32> to vector<256x16xf32>
    %35 = arith.mulf %32, %34 : vector<256x16xf32>
    %cst_29 = arith.constant dense<0.000000e+00> : vector<256xf32>
    %36 = vector.multi_reduction <add>, %35, %cst_29 [1] : vector<256x16xf32> to vector<256xf32>
    %37 = vector.shape_cast %36 : vector<256xf32> to vector<1x256xf32>
    %c0_30 = arith.constant 0 : index
    %c0_31 = arith.constant 0 : index
    %38 = vector.load %arg12[%c0_30, %c0_31] : memref<1x1xf32, #tpu.memory_space<vmem>>, vector<1x1xf32>
    %39 = vector.broadcast %38 : vector<1x1xf32> to vector<1x256xf32>
    %40 = arith.addf %37, %39 : vector<1x256xf32>
    %cst_32 = arith.constant 2.000000e+01 : f32
    %41 = vector.broadcast %cst_32 : f32 to vector<1x256xf32>
    %42 = arith.cmpf ogt, %40, %41 : vector<1x256xf32>
    %cst_33 = arith.constant 2.000000e+01 : f32
    %43 = vector.broadcast %cst_33 : f32 to vector<1x256xf32>
    %44 = arith.minimumf %40, %43 : vector<1x256xf32>
    %45 = math.exp %44 : vector<1x256xf32>
    %46 = math.log1p %45 : vector<1x256xf32>
    %47 = arith.select %42, %40, %46 : vector<1x256xi1>, vector<1x256xf32>
    %c0_34 = arith.constant 0 : index
    %c0_35 = arith.constant 0 : index
    %48 = vector.load %arg13[%c0_34, %c0_35] : memref<1x256xf32, #tpu.memory_space<vmem>>, vector<1x256xf32>
    tpu.vector_store %arg13[%c0_34, %c0_35], %47 {strides = array<i32>} : memref<1x256xf32, #tpu.memory_space<vmem>>, vector<1x256xf32>,
    return
  }
  func.func @transform_0(%arg0: i32) -> (i32, i32) {
    %c0_i32 = arith.constant 0 : i32
    %c0_i32_0 = arith.constant 0 : i32
    return %arg0, %c0_i32 : i32, i32
  }
  func.func @transform_1(%arg0: i32) -> (i32, i32) {
    %c0_i32 = arith.constant 0 : i32
    %c0_i32_0 = arith.constant 0 : i32
    %c0_i32_1 = arith.constant 0 : i32
    return %c0_i32, %c0_i32_0 : i32, i32
  }
  func.func @transform_2(%arg0: i32) -> (i32, i32) {
    %c0_i32 = arith.constant 0 : i32
    %c0_i32_0 = arith.constant 0 : i32
    %c0_i32_1 = arith.constant 0 : i32
    return %c0_i32, %c0_i32_0 : i32, i32
  }
  func.func @transform_3(%arg0: i32) -> (i32, i32) {
    %c0_i32 = arith.constant 0 : i32
    %c0_i32_0 = arith.constant 0 : i32
    %c0_i32_1 = arith.constant 0 : i32
    return %c0_i32, %c0_i32_0 : i32, i32
  }
  func.func @transform_4(%arg0: i32) -> (i32, i32) {
    %c0_i32 = arith.constant 0 : i32
    %c0_i32_0 = arith.constant 0 : i32
    %c0_i32_1 = arith.constant 0 : i32
    return %c0_i32, %c0_i32_0 : i32, i32
  }
  func.func @transform_5(%arg0: i32) -> (i32, i32) {
    %c0_i32 = arith.constant 0 : i32
    %c0_i32_0 = arith.constant 0 : i32
    %c0_i32_1 = arith.constant 0 : i32
    return %c0_i32, %c0_i32_0 : i32, i32
  }
  func.func @transform_6(%arg0: i32) -> (i32, i32) {
    %c0_i32 = arith.constant 0 : i32
    %c0_i32_0 = arith.constant 0 : i32
    %c0_i32_1 = arith.constant 0 : i32
    return %c0_i32, %c0_i32_0 : i32, i32
  }
  func.func @transform_7(%arg0: i32) -> (i32, i32) {
    %c0_i32 = arith.constant 0 : i32
    %c0_i32_0 = arith.constant 0 : i32
    %c0_i32_1 = arith.constant 0 : i32
    return %c0_i32, %c0_i32_0 : i32, i32
  }
  func.func @transform_8(%arg0: i32) -> (i32, i32) {
    %c0_i32 = arith.constant 0 : i32
    %c0_i32_0 = arith.constant 0 : i32
    %c0_i32_1 = arith.constant 0 : i32
    return %c0_i32, %c0_i32_0 : i32, i32
  }
  func.func @transform_9(%arg0: i32) -> (i32, i32) {
    %c0_i32 = arith.constant 0 : i32
    %c0_i32_0 = arith.constant 0 : i32
    %c0_i32_1 = arith.constant 0 : i32
    return %c0_i32, %c0_i32_0 : i32, i32
  }
  func.func @transform_10(%arg0: i32) -> (i32, i32) {
    %c0_i32 = arith.constant 0 : i32
    %c0_i32_0 = arith.constant 0 : i32
    %c0_i32_1 = arith.constant 0 : i32
    return %c0_i32, %c0_i32_0 : i32, i32
  }
  func.func @transform_11(%arg0: i32) -> (i32, i32) {
    %c0_i32 = arith.constant 0 : i32
    %c0_i32_0 = arith.constant 0 : i32
    %c0_i32_1 = arith.constant 0 : i32
    return %c0_i32, %c0_i32_0 : i32, i32
  }
  func.func @transform_12(%arg0: i32) -> (i32, i32) {
    %c0_i32 = arith.constant 0 : i32
    %c0_i32_0 = arith.constant 0 : i32
    return %arg0, %c0_i32 : i32, i32
  }
}

</mosaic_0001>

<llo_original>
// kernel: methane_forward.1
$region0: #{methane_forward.1}
  #allocation0 [shape = 'u32[]', space=smem, size = 0x4, offset = 0x4, fixed_abs, tag = 'smem constant byte address 0x4 - core index']
  #allocation1 [shape = 'u32[144,128]{1,0:T(1,128)}', space=vmem, size = 0x12000, scoped, tag = 'internal scratch']
  #allocation2 [shape = 'f32[1,1]{1,0:T(1,128)S(1)}', space=vmem, size = 0x200, scoped, tag = 'scoped memory for methane_forward.1']
  %s0 = inlined_call_operand.vmem [shape: bf16[256,32], index: 0, kind: input, shape index: {}]
  %s1 = inlined_call_operand.vmem [shape: bf16[32,128], index: 1, kind: input, shape index: {}]
  %s2 = inlined_call_operand.vmem [shape: f32[1,128], index: 2, kind: input, shape index: {}]
  %s3 = inlined_call_operand.vmem [shape: bf16[32,64], index: 3, kind: input, shape index: {}]
  %s4 = inlined_call_operand.vmem [shape: bf16[128,64], index: 4, kind: input, shape index: {}]
  %s5 = inlined_call_operand.vmem [shape: f32[1,64], index: 5, kind: input, shape index: {}]
  %s6 = inlined_call_operand.vmem [shape: bf16[64,16], index: 6, kind: input, shape index: {}]
  %s7 = inlined_call_operand.vmem [shape: bf16[32,16], index: 7, kind: input, shape index: {}]
  %s8 = inlined_call_operand.vmem [shape: bf16[128,16], index: 8, kind: input, shape index: {}]
  %s9 = inlined_call_operand.vmem [shape: f32[1,16], index: 9, kind: input, shape index: {}]
  %s10 = inlined_call_operand.vmem [shape: f32[1,16], index: 10, kind: input, shape index: {}]
  %s11 = inlined_call_operand.<no memory space> [shape: f32[1,1], index: 11, kind: input, shape index: {}]
  %s12 = inlined_call_operand.vmem [shape: f32[1,256], index: 12, kind: output, shape index: {}]
  %s13 = sld [smem:[#allocation0]]
  $region58: #{methane_forward.1} parent=0
    _
  %s15 = ssub.s32 1, %s13
  %s16 = scalar_select 0, %s15, %s13
  %v17 = vstv %s11
  %18 = vst [vmem:[#allocation2] sm:$0x1] %v17
  // Predicated region
  $region2: #{methane_forward.1} parent=0 // pred_check
    _
  $region3: #{methane_forward.1} parent=0 // pred_check_branch
    %20 = sbr.rel (0) target = $region5
  $region4: #{methane_forward.1} parent=0 // pred_region
    _
  $region5: #{methane_forward.1} parent=0 // pred_fallthru
    _
  // Predicated region
  $region6: #{methane_forward.1} parent=0 // pred_check
    _
  $region7: #{methane_forward.1} parent=0 // pred_check_branch
    %22 = sbr.rel (0) target = $region9
  $region8: #{methane_forward.1} parent=0 // pred_region
    _
  $region9: #{methane_forward.1} parent=0 // pred_fallthru
    _
  // Predicated region
  $region10: #{methane_forward.1} parent=0 // pred_check
    _
  $region11: #{methane_forward.1} parent=0 // pred_check_branch
    %24 = sbr.rel (0) target = $region13
  $region12: #{methane_forward.1} parent=0 // pred_region
    _
  $region13: #{methane_forward.1} parent=0 // pred_fallthru
    _
  // Predicated region
  $region14: #{methane_forward.1} parent=0 // pred_check
    _
  $region15: #{methane_forward.1} parent=0 // pred_check_branch
    %26 = sbr.rel (0) target = $region17
  $region16: #{methane_forward.1} parent=0 // pred_region
    _
  $region17: #{methane_forward.1} parent=0 // pred_fallthru
    _
  // Predicated region
  $region18: #{methane_forward.1} parent=0 // pred_check
    _
  $region19: #{methane_forward.1} parent=0 // pred_check_branch
    %28 = sbr.rel (0) target = $region21
  $region20: #{methane_forward.1} parent=0 // pred_region
    _
  $region21: #{methane_forward.1} parent=0 // pred_fallthru
    _
  // Predicated region
  $region22: #{methane_forward.1} parent=0 // pred_check
    _
  $region23: #{methane_forward.1} parent=0 // pred_check_branch
    %30 = sbr.rel (0) target = $region25
  $region24: #{methane_forward.1} parent=0 // pred_region
    _
  $region25: #{methane_forward.1} parent=0 // pred_fallthru
    _
  // Predicated region
  $region26: #{methane_forward.1} parent=0 // pred_check
    _
  $region27: #{methane_forward.1} parent=0 // pred_check_branch
    %32 = sbr.rel (0) target = $region29
  $region28: #{methane_forward.1} parent=0 // pred_region
    _
  $region29: #{methane_forward.1} parent=0 // pred_fallthru
    _
  // Predicated region
  $region30: #{methane_forward.1} parent=0 // pred_check
    _
  $region31: #{methane_forward.1} parent=0 // pred_check_branch
    %34 = sbr.rel (0) target = $region33
  $region32: #{methane_forward.1} parent=0 // pred_region
    _
  $region33: #{methane_forward.1} parent=0 // pred_fallthru
    _
  // Predicated region
  $region34: #{methane_forward.1} parent=0 // pred_check
    _
  $region35: #{methane_forward.1} parent=0 // pred_check_branch
    %36 = sbr.rel (0) target = $region37
  $region36: #{methane_forward.1} parent=0 // pred_region
    _
  $region37: #{methane_forward.1} parent=0 // pred_fallthru
    _
  // Predicated region
  $region38: #{methane_forward.1} parent=0 // pred_check
    _
  $region39: #{methane_forward.1} parent=0 // pred_check_branch
    %38 = sbr.rel (0) target = $region41
  $region40: #{methane_forward.1} parent=0 // pred_region
    _
  $region41: #{methane_forward.1} parent=0 // pred_fallthru
    _
  // Predicated region
  $region42: #{methane_forward.1} parent=0 // pred_check
    _
  $region43: #{methane_forward.1} parent=0 // pred_check_branch
    %40 = sbr.rel (0) target = $region45
  $region44: #{methane_forward.1} parent=0 // pred_region
    _
  $region45: #{methane_forward.1} parent=0 // pred_fallthru
    _
  // Predicated region
  $region46: #{methane_forward.1} parent=0 // pred_check
    _
  $region47: #{methane_forward.1} parent=0 // pred_check_branch
    %42 = sbr.rel (0) target = $region49
  $region48: #{methane_forward.1} parent=0 // pred_region
    _
  $region49: #{methane_forward.1} parent=0 // pred_fallthru
    _
  %v44 = vld [vmem:[%s0] sm:$0xf]
  %v45 = vld [vmem:[%s0 + $0x4] sm:$0xf]
  %v46 = vld [vmem:[%s0 + $0x8] sm:$0xf]
  %v47 = vld [vmem:[%s0 + $0xc] sm:$0xf]
  %v48 = vld [vmem:[%s0 + $0x10] sm:$0xf]
  %v49 = vld [vmem:[%s0 + $0x14] sm:$0xf]
  %v50 = vld [vmem:[%s0 + $0x18] sm:$0xf]
  %v51 = vld [vmem:[%s0 + $0x1c] sm:$0xf]
  %v52 = vld [vmem:[%s0 + $0x20] sm:$0xf]
  %v53 = vld [vmem:[%s0 + $0x24] sm:$0xf]
  %v54 = vld [vmem:[%s0 + $0x28] sm:$0xf]
  %v55 = vld [vmem:[%s0 + $0x2c] sm:$0xf]
  %v56 = vld [vmem:[%s0 + $0x30] sm:$0xf]
  %v57 = vld [vmem:[%s0 + $0x34] sm:$0xf]
  %v58 = vld [vmem:[%s0 + $0x38] sm:$0xf]
  %v59 = vld [vmem:[%s0 + $0x3c] sm:$0xf]
  %v60 = vld [vmem:[%s0 + $0x40] sm:$0xf]
  %v61 = vld [vmem:[%s0 + $0x44] sm:$0xf]
  %v62 = vld [vmem:[%s0 + $0x48] sm:$0xf]
  %v63 = vld [vmem:[%s0 + $0x4c] sm:$0xf]
  %v64 = vld [vmem:[%s0 + $0x50] sm:$0xf]
  %v65 = vld [vmem:[%s0 + $0x54] sm:$0xf]
  %v66 = vld [vmem:[%s0 + $0x58] sm:$0xf]
  %v67 = vld [vmem:[%s0 + $0x5c] sm:$0xf]
  %v68 = vld [vmem:[%s0 + $0x60] sm:$0xf]
  %v69 = vld [vmem:[%s0 + $0x64] sm:$0xf]
  %v70 = vld [vmem:[%s0 + $0x68] sm:$0xf]
  %v71 = vld [vmem:[%s0 + $0x6c] sm:$0xf]
  %v72 = vld [vmem:[%s0 + $0x70] sm:$0xf]
  %v73 = vld [vmem:[%s0 + $0x74] sm:$0xf]
  %v74 = vld [vmem:[%s0 + $0x78] sm:$0xf]
  %v75 = vld [vmem:[%s0 + $0x7c] sm:$0xf]
  %v76 = vld [vmem:[%s1] sm:$0xf]
  %v77 = vld [vmem:[%s1 + $0x4] sm:$0xf]
  %v78 = vld [vmem:[%s1 + $0x8] sm:$0xf]
  %v79 = vld [vmem:[%s1 + $0xc] sm:$0xf]
  %v80 = vld [vmem:[%s2] sm:$0x1]
  %v82 = vlaneseq
  %v83 = vshrl.u32 %v82, 7
  %v84 = vsub.s32 0, %v83
  %v85 = vrot.slane %v80, %v84
  %v119 = vunpack.c.l.b16 %v44
  %v120 = vunpack.c.l.b16 %v45
  %v121 = vunpack.c.l.b16 %v46
  %v122 = vunpack.c.l.b16 %v47
  %v123 = vunpack.c.l.b16 %v48
  %v124 = vunpack.c.l.b16 %v49
  %v125 = vunpack.c.l.b16 %v50
  %v126 = vunpack.c.l.b16 %v51
  %v127 = vunpack.c.l.b16 %v52
  %v128 = vunpack.c.l.b16 %v53
  %v129 = vunpack.c.l.b16 %v54
  %v130 = vunpack.c.l.b16 %v55
  %v131 = vunpack.c.l.b16 %v56
  %v132 = vunpack.c.l.b16 %v57
  %v133 = vunpack.c.l.b16 %v58
  %v134 = vunpack.c.l.b16 %v59
  %v135 = vunpack.c.l.b16 %v60
  %v136 = vunpack.c.l.b16 %v61
  %v137 = vunpack.c.l.b16 %v62
  %v138 = vunpack.c.l.b16 %v63
  %v139 = vunpack.c.l.b16 %v64
  %v140 = vunpack.c.l.b16 %v65
  %v141 = vunpack.c.l.b16 %v66
  %v142 = vunpack.c.l.b16 %v67
  %v143 = vunpack.c.l.b16 %v68
  %v144 = vunpack.c.l.b16 %v69
  %v145 = vunpack.c.l.b16 %v70
  %v146 = vunpack.c.l.b16 %v71
  %v147 = vunpack.c.l.b16 %v72
  %v148 = vunpack.c.l.b16 %v73
  %v149 = vunpack.c.l.b16 %v74
  %v150 = vunpack.c.l.b16 %v75
  %v151 = vpack.c.b16 %v120, %v119
  %v152 = vpack.c.b16 %v122, %v121
  %v153 = vpack.c.b16 %v124, %v123
  %v154 = vpack.c.b16 %v126, %v125
  %v155 = vpack.c.b16 %v128, %v127
  %v156 = vpack.c.b16 %v130, %v129
  %v157 = vpack.c.b16 %v132, %v131
  %v158 = vpack.c.b16 %v134, %v133
  %v159 = vpack.c.b16 %v136, %v135
  %v160 = vpack.c.b16 %v138, %v137
  %v161 = vpack.c.b16 %v140, %v139
  %v162 = vpack.c.b16 %v142, %v141
  %v163 = vpack.c.b16 %v144, %v143
  %v164 = vpack.c.b16 %v146, %v145
  %v165 = vpack.c.b16 %v148, %v147
  %v166 = vpack.c.b16 %v150, %v149
  %v171 = vunpack.c.l.b16 %v76
  %v172 = vunpack.c.l.b16 %v77
  %v173 = vunpack.c.l.b16 %v78
  %v174 = vunpack.c.l.b16 %v79
  %v175 = vpack.c.b16 %v172, %v171
  %v176 = vpack.c.b16 %v174, %v173
  %vm179 = vcmask 261120
  %v181 = vsel %vm179, %v151, 0
  %v184 = vsel %vm179, %v152, 0
  %v187 = vsel %vm179, %v153, 0
  %v190 = vsel %vm179, %v154, 0
  %v193 = vsel %vm179, %v155, 0
  %v196 = vsel %vm179, %v156, 0
  %v199 = vsel %vm179, %v157, 0
  %v202 = vsel %vm179, %v158, 0
  %v205 = vsel %vm179, %v159, 0
  %v208 = vsel %vm179, %v160, 0
  %v211 = vsel %vm179, %v161, 0
  %v214 = vsel %vm179, %v162, 0
  %v217 = vsel %vm179, %v163, 0
  %v220 = vsel %vm179, %v164, 0
  %v223 = vsel %vm179, %v165, 0
  %v226 = vsel %vm179, %v166, 0
  %228 = vmatprep.subr.bf16.mxu0 0
  %229 = vmatpush1.bf16.msra.mxu0 0
  %230 = vmatprep.subr.bf16.mxu0 0
  %231 = vmatpush1.bf16.msra.mxu0 0
  %232 = vmatprep.subr.bf16.mxu0 0
  %233 = vmatpush1.bf16.msra.mxu0 0
  %234 = vmatprep.subr.bf16.mxu0 0
  %235 = vmatpush1.bf16.msra.mxu0 0
  %236 = vmatprep.subr.bf16.mxu0 0
  %237 = vmatpush1.bf16.msra.mxu0 0
  %238 = vmatprep.subr.bf16.mxu0 0
  %239 = vmatpush1.bf16.msra.mxu0 0
  %240 = vmatprep.subr.bf16.mxu0 0
  %241 = vmatpush1.bf16.msra.mxu0 %v176
  %242 = vmatprep.subr.bf16.mxu0 0
  %243 = vmatpush1.bf16.msra.mxu0 %v175
  %244 = vmatprep.subr.bf16.mxu0 0
  %245 = vmatpush2.bf16.msra.mxu0 0
  %246 = vmatprep.subr.bf16.mxu0 0
  %247 = vmatpush2.bf16.msra.mxu0 0
  %248 = vmatprep.subr.bf16.mxu0 0
  %249 = vmatpush2.bf16.msra.mxu0 0
  %250 = vmatprep.subr.bf16.mxu0 0
  %251 = vmatpush2.bf16.msra.mxu0 0
  %252 = vmatprep.subr.bf16.mxu0 0
  %253 = vmatpush2.bf16.msra.mxu0 0
  %254 = vmatprep.subr.bf16.mxu0 0
  %255 = vmatpush2.bf16.msra.mxu0 0
  %256 = vmatprep.subr.bf16.mxu0 0
  %257 = vmatpush2.bf16.msra.mxu0 0
  %258 = vmatprep.subr.bf16.mxu0 0
  %259 = vmatpush2.bf16.msra.mxu0 0
  %260 = vmatprep.mubr.bf16.mxu0 0
  %261 = vmatmul.mubr.bf16.gmra.mxu0 %v181
  %v262 = vpop.f32.mrf.mxu0
  %v263 = vadd.f32 %v85, %v262
  %v264 = vpop.f32.mrf.mxu0
  %v265 = vpop.f32.mrf.mxu0
  %v266 = vadd.f32 %v85, %v265
  %v267 = vpop.f32.mrf.mxu0
  %268 = vmatprep.mubr.bf16.mxu0 0
  %269 = vmatmul.mubr.bf16.gmra.mxu0 %v184
  %v270 = vpop.f32.mrf.mxu0
  %v271 = vadd.f32 %v85, %v270
  %v272 = vpop.f32.mrf.mxu0
  %v273 = vpop.f32.mrf.mxu0
  %v274 = vadd.f32 %v85, %v273
  %v275 = vpop.f32.mrf.mxu0
  %276 = vmatprep.mubr.bf16.mxu0 0
  %277 = vmatmul.mubr.bf16.gmra.mxu0 %v187
  %v278 = vpop.f32.mrf.mxu0
  %v279 = vadd.f32 %v85, %v278
  %v280 = vpop.f32.mrf.mxu0
  %v281 = vpop.f32.mrf.mxu0
  %v282 = vadd.f32 %v85, %v281
  %v283 = vpop.f32.mrf.mxu0
  %284 = vmatprep.mubr.bf16.mxu0 0
  %285 = vmatmul.mubr.bf16.gmra.mxu0 %v190
  %v286 = vpop.f32.mrf.mxu0
  %v287 = vadd.f32 %v85, %v286
  %v288 = vpop.f32.mrf.mxu0
  %v289 = vpop.f32.mrf.mxu0
  %v290 = vadd.f32 %v85, %v289
  %v291 = vpop.f32.mrf.mxu0
  %292 = vmatprep.mubr.bf16.mxu0 0
  %293 = vmatmul.mubr.bf16.gmra.mxu0 %v193
  %v294 = vpop.f32.mrf.mxu0
  %v295 = vadd.f32 %v85, %v294
  %v296 = vpop.f32.mrf.mxu0
  %v297 = vpop.f32.mrf.mxu0
  %v298 = vadd.f32 %v85, %v297
  %v299 = vpop.f32.mrf.mxu0
  %300 = vmatprep.mubr.bf16.mxu0 0
  %301 = vmatmul.mubr.bf16.gmra.mxu0 %v196
  %v302 = vpop.f32.mrf.mxu0
  %v303 = vadd.f32 %v85, %v302
  %v304 = vpop.f32.mrf.mxu0
  %v305 = vpop.f32.mrf.mxu0
  %v306 = vadd.f32 %v85, %v305
  %v307 = vpop.f32.mrf.mxu0
  %308 = vmatprep.mubr.bf16.mxu0 0
  %309 = vmatmul.mubr.bf16.gmra.mxu0 %v199
  %v310 = vpop.f32.mrf.mxu0
  %v311 = vadd.f32 %v85, %v310
  %v312 = vpop.f32.mrf.mxu0
  %v313 = vpop.f32.mrf.mxu0
  %v314 = vadd.f32 %v85, %v313
  %v315 = vpop.f32.mrf.mxu0
  %316 = vmatprep.mubr.bf16.mxu0 0
  %317 = vmatmul.mubr.bf16.gmra.mxu0 %v202
  %v318 = vpop.f32.mrf.mxu0
  %v319 = vadd.f32 %v85, %v318
  %v320 = vpop.f32.mrf.mxu0
  %v321 = vpop.f32.mrf.mxu0
  %v322 = vadd.f32 %v85, %v321
  %v323 = vpop.f32.mrf.mxu0
  %324 = vmatprep.mubr.bf16.mxu0 0
  %325 = vmatmul.mubr.bf16.gmra.mxu0 %v205
  %v326 = vpop.f32.mrf.mxu0
  %v327 = vadd.f32 %v85, %v326
  %v328 = vpop.f32.mrf.mxu0
  %v329 = vpop.f32.mrf.mxu0
  %v330 = vadd.f32 %v85, %v329
  %v331 = vpop.f32.mrf.mxu0
  %332 = vmatprep.mubr.bf16.mxu0 0
  %333 = vmatmul.mubr.bf16.gmra.mxu0 %v208
  %v334 = vpop.f32.mrf.mxu0
  %v335 = vadd.f32 %v85, %v334
  %v336 = vpop.f32.mrf.mxu0
  %v337 = vpop.f32.mrf.mxu0
  %v338 = vadd.f32 %v85, %v337
  %v339 = vpop.f32.mrf.mxu0
  %340 = vmatprep.mubr.bf16.mxu0 0
  %341 = vmatmul.mubr.bf16.gmra.mxu0 %v211
  %v342 = vpop.f32.mrf.mxu0
  %v343 = vadd.f32 %v85, %v342
  %v344 = vpop.f32.mrf.mxu0
  %v345 = vpop.f32.mrf.mxu0
  %v346 = vadd.f32 %v85, %v345
  %v347 = vpop.f32.mrf.mxu0
  %348 = vmatprep.mubr.bf16.mxu0 0
  %349 = vmatmul.mubr.bf16.gmra.mxu0 %v214
  %v350 = vpop.f32.mrf.mxu0
  %v351 = vadd.f32 %v85, %v350
  %v352 = vpop.f32.mrf.mxu0
  %v353 = vpop.f32.mrf.mxu0
  %v354 = vadd.f32 %v85, %v353
  %v355 = vpop.f32.mrf.mxu0
  %356 = vmatprep.mubr.bf16.mxu0 0
  %357 = vmatmul.mubr.bf16.gmra.mxu0 %v217
  %v358 = vpop.f32.mrf.mxu0
  %v359 = vadd.f32 %v85, %v358
  %v360 = vpop.f32.mrf.mxu0
  %v361 = vpop.f32.mrf.mxu0
  %v362 = vadd.f32 %v85, %v361
  %v363 = vpop.f32.mrf.mxu0
  %364 = vmatprep.mubr.bf16.mxu0 0
  %365 = vmatmul.mubr.bf16.gmra.mxu0 %v220
  %v366 = vpop.f32.mrf.mxu0
  %v367 = vadd.f32 %v85, %v366
  %v368 = vpop.f32.mrf.mxu0
  %v369 = vpop.f32.mrf.mxu0
  %v370 = vadd.f32 %v85, %v369
  %v371 = vpop.f32.mrf.mxu0
  %372 = vmatprep.mubr.bf16.mxu0 0
  %373 = vmatmul.mubr.bf16.gmra.mxu0 %v223
  %v374 = vpop.f32.mrf.mxu0
  %v375 = vadd.f32 %v85, %v374
  %v376 = vpop.f32.mrf.mxu0
  %v377 = vpop.f32.mrf.mxu0
  %v378 = vadd.f32 %v85, %v377
  %v379 = vpop.f32.mrf.mxu0
  %380 = vmatprep.mubr.bf16.mxu0 0
  %381 = vmatmul.mubr.bf16.gmra.mxu0 %v226
  %v382 = vpop.f32.mrf.mxu0
  %v383 = vadd.f32 %v85, %v382
  %v384 = vpop.f32.mrf.mxu0
  %v385 = vpop.f32.mrf.mxu0
  %v386 = vadd.f32 %v85, %v385
  %v387 = vpop.f32.mrf.mxu0
  %388 = vdwg.mxu0
  %v389 = vmax.f32 %v263, 0.0
  %v390 = vmax.f32 %v266, 0.0
  %v391 = vmax.f32 %v271, 0.0
  %v392 = vmax.f32 %v274, 0.0
  %v393 = vmax.f32 %v279, 0.0
  %v394 = vmax.f32 %v282, 0.0
  %v395 = vmax.f32 %v287, 0.0
  %v396 = vmax.f32 %v290, 0.0
  %v397 = vmax.f32 %v295, 0.0
  %v398 = vmax.f32 %v298, 0.0
  %v399 = vmax.f32 %v303, 0.0
  %v400 = vmax.f32 %v306, 0.0
  %v401 = vmax.f32 %v311, 0.0
  %v402 = vmax.f32 %v314, 0.0
  %v403 = vmax.f32 %v319, 0.0
  %v404 = vmax.f32 %v322, 0.0
  %v405 = vmax.f32 %v327, 0.0
  %v406 = vmax.f32 %v330, 0.0
  %v407 = vmax.f32 %v335, 0.0
  %v408 = vmax.f32 %v338, 0.0
  %v409 = vmax.f32 %v343, 0.0
  %v410 = vmax.f32 %v346, 0.0
  %v411 = vmax.f32 %v351, 0.0
  %v412 = vmax.f32 %v354, 0.0
  %v413 = vmax.f32 %v359, 0.0
  %v414 = vmax.f32 %v362, 0.0
  %v415 = vmax.f32 %v367, 0.0
  %v416 = vmax.f32 %v370, 0.0
  %v417 = vmax.f32 %v375, 0.0
  %v418 = vmax.f32 %v378, 0.0
  %v419 = vmax.f32 %v383, 0.0
  %v420 = vmax.f32 %v386, 0.0
  %v421 = vpack.c.bf16 %v390, %v389
  %v422 = vpack.c.bf16 %v392, %v391
  %v423 = vpack.c.bf16 %v394, %v393
  %v424 = vpack.c.bf16 %v396, %v395
  %v425 = vpack.c.bf16 %v398, %v397
  %v426 = vpack.c.bf16 %v400, %v399
  %v427 = vpack.c.bf16 %v402, %v401
  %v428 = vpack.c.bf16 %v404, %v403
  %v429 = vpack.c.bf16 %v406, %v405
  %v430 = vpack.c.bf16 %v408, %v407
  %v431 = vpack.c.bf16 %v410, %v409
  %v432 = vpack.c.bf16 %v412, %v411
  %v433 = vpack.c.bf16 %v414, %v413
  %v434 = vpack.c.bf16 %v416, %v415
  %v435 = vpack.c.bf16 %v418, %v417
  %v436 = vpack.c.bf16 %v420, %v419
  %v437 = vld [vmem:[%s3] sm:$0xf]
  %v438 = vld [vmem:[%s3 + $0x4] sm:$0xf]
  %v439 = vld [vmem:[%s3 + $0x8] sm:$0xf]
  %v440 = vld [vmem:[%s3 + $0xc] sm:$0xf]
  %v441 = vld [vmem:[%s4] sm:$0xf]
  %v442 = vld [vmem:[%s4 + $0x4] sm:$0xf]
  %v443 = vld [vmem:[%s4 + $0x8] sm:$0xf]
  %v444 = vld [vmem:[%s4 + $0xc] sm:$0xf]
  %v445 = vld [vmem:[%s4 + $0x10] sm:$0xf]
  %v446 = vld [vmem:[%s4 + $0x14] sm:$0xf]
  %v447 = vld [vmem:[%s4 + $0x18] sm:$0xf]
  %v448 = vld [vmem:[%s4 + $0x1c] sm:$0xf]
  %v449 = vld [vmem:[%s4 + $0x20] sm:$0xf]
  %v450 = vld [vmem:[%s4 + $0x24] sm:$0xf]
  %v451 = vld [vmem:[%s4 + $0x28] sm:$0xf]
  %v452 = vld [vmem:[%s4 + $0x2c] sm:$0xf]
  %v453 = vld [vmem:[%s4 + $0x30] sm:$0xf]
  %v454 = vld [vmem:[%s4 + $0x34] sm:$0xf]
  %v455 = vld [vmem:[%s4 + $0x38] sm:$0xf]
  %v456 = vld [vmem:[%s4 + $0x3c] sm:$0xf]
  %v473 = vunpack.c.l.b16 %v441
  %v474 = vunpack.c.l.b16 %v442
  %v475 = vunpack.c.l.b16 %v443
  %v476 = vunpack.c.l.b16 %v444
  %v477 = vunpack.c.l.b16 %v445
  %v478 = vunpack.c.l.b16 %v446
  %v479 = vunpack.c.l.b16 %v447
  %v480 = vunpack.c.l.b16 %v448
  %v481 = vunpack.c.l.b16 %v449
  %v482 = vunpack.c.l.b16 %v450
  %v483 = vunpack.c.l.b16 %v451
  %v484 = vunpack.c.l.b16 %v452
  %v485 = vunpack.c.l.b16 %v453
  %v486 = vunpack.c.l.b16 %v454
  %v487 = vunpack.c.l.b16 %v455
  %v488 = vunpack.c.l.b16 %v456
  %v489 = vpack.c.b16 %v474, %v473
  %v490 = vpack.c.b16 %v476, %v475
  %v491 = vpack.c.b16 %v478, %v477
  %v492 = vpack.c.b16 %v480, %v479
  %v493 = vpack.c.b16 %v482, %v481
  %v494 = vpack.c.b16 %v484, %v483
  %v495 = vpack.c.b16 %v486, %v485
  %v496 = vpack.c.b16 %v488, %v487
  %505 = vmatprep.subr.bf16.mxu0 0
  %506 = vmatpush1.bf16.msra.mxu0 %v496
  %507 = vmatprep.subr.bf16.mxu0 0
  %508 = vmatpush1.bf16.msra.mxu0 %v495
  %509 = vmatprep.subr.bf16.mxu0 0
  %510 = vmatpush1.bf16.msra.mxu0 %v494
  %511 = vmatprep.subr.bf16.mxu0 0
  %512 = vmatpush1.bf16.msra.mxu0 %v493
  %513 = vmatprep.subr.bf16.mxu0 0
  %514 = vmatpush1.bf16.msra.mxu0 %v492
  %515 = vmatprep.subr.bf16.mxu0 0
  %516 = vmatpush1.bf16.msra.mxu0 %v491
  %517 = vmatprep.subr.bf16.mxu0 0
  %518 = vmatpush1.bf16.msra.mxu0 %v490
  %519 = vmatprep.subr.bf16.mxu0 0
  %520 = vmatpush1.bf16.msra.mxu0 %v489
  %521 = vmatprep.subr.bf16.mxu0 0
  %522 = vmatpush2.bf16.msra.mxu0 0
  %523 = vmatprep.subr.bf16.mxu0 0
  %524 = vmatpush2.bf16.msra.mxu0 0
  %525 = vmatprep.subr.bf16.mxu0 0
  %526 = vmatpush2.bf16.msra.mxu0 0
  %527 = vmatprep.subr.bf16.mxu0 0
  %528 = vmatpush2.bf16.msra.mxu0 0
  %529 = vmatprep.subr.bf16.mxu0 0
  %530 = vmatpush2.bf16.msra.mxu0 0
  %531 = vmatprep.subr.bf16.mxu0 0
  %532 = vmatpush2.bf16.msra.mxu0 0
  %533 = vmatprep.subr.bf16.mxu0 0
  %534 = vmatpush2.bf16.msra.mxu0 0
  %535 = vmatprep.subr.bf16.mxu0 0
  %536 = vmatpush2.bf16.msra.mxu0 0
  %537 = vmatprep.mubr.bf16.mxu0 0
  %538 = vmatmul.mubr.bf16.gmra.mxu0 %v421
  %v539 = vpop.f32.mrf.mxu0
  %v540 = vadd.f32 0.0, %v539
  %v541 = vpop.f32.mrf.mxu0
  %v542 = vpop.f32.mrf.mxu0
  %v543 = vadd.f32 0.0, %v542
  %v544 = vpop.f32.mrf.mxu0
  %545 = vmatprep.mubr.bf16.mxu0 0
  %546 = vmatmul.mubr.bf16.gmra.mxu0 %v422
  %v547 = vpop.f32.mrf.mxu0
  %v548 = vadd.f32 0.0, %v547
  %v549 = vpop.f32.mrf.mxu0
  %v550 = vpop.f32.mrf.mxu0
  %v551 = vadd.f32 0.0, %v550
  %v552 = vpop.f32.mrf.mxu0
  %553 = vmatprep.mubr.bf16.mxu0 0
  %554 = vmatmul.mubr.bf16.gmra.mxu0 %v423
  %v555 = vpop.f32.mrf.mxu0
  %v556 = vadd.f32 0.0, %v555
  %v557 = vpop.f32.mrf.mxu0
  %v558 = vpop.f32.mrf.mxu0
  %v559 = vadd.f32 0.0, %v558
  %v560 = vpop.f32.mrf.mxu0
  %561 = vmatprep.mubr.bf16.mxu0 0
  %562 = vmatmul.mubr.bf16.gmra.mxu0 %v424
  %v563 = vpop.f32.mrf.mxu0
  %v564 = vadd.f32 0.0, %v563
  %v565 = vpop.f32.mrf.mxu0
  %v566 = vpop.f32.mrf.mxu0
  %v567 = vadd.f32 0.0, %v566
  %v568 = vpop.f32.mrf.mxu0
  %569 = vmatprep.mubr.bf16.mxu0 0
  %570 = vmatmul.mubr.bf16.gmra.mxu0 %v425
  %v571 = vpop.f32.mrf.mxu0
  %v572 = vadd.f32 0.0, %v571
  %v573 = vpop.f32.mrf.mxu0
  %v574 = vpop.f32.mrf.mxu0
  %v575 = vadd.f32 0.0, %v574
  %v576 = vpop.f32.mrf.mxu0
  %577 = vmatprep.mubr.bf16.mxu0 0
  %578 = vmatmul.mubr.bf16.gmra.mxu0 %v426
  %v579 = vpop.f32.mrf.mxu0
  %v580 = vadd.f32 0.0, %v579
  %v581 = vpop.f32.mrf.mxu0
  %v582 = vpop.f32.mrf.mxu0
  %v583 = vadd.f32 0.0, %v582
  %v584 = vpop.f32.mrf.mxu0
  %585 = vmatprep.mubr.bf16.mxu0 0
  %586 = vmatmul.mubr.bf16.gmra.mxu0 %v427
  %v587 = vpop.f32.mrf.mxu0
  %v588 = vadd.f32 0.0, %v587
  %v589 = vpop.f32.mrf.mxu0
  %v590 = vpop.f32.mrf.mxu0
  %v591 = vadd.f32 0.0, %v590
  %v592 = vpop.f32.mrf.mxu0
  %593 = vmatprep.mubr.bf16.mxu0 0
  %594 = vmatmul.mubr.bf16.gmra.mxu0 %v428
  %v595 = vpop.f32.mrf.mxu0
  %v596 = vadd.f32 0.0, %v595
  %v597 = vpop.f32.mrf.mxu0
  %v598 = vpop.f32.mrf.mxu0
  %v599 = vadd.f32 0.0, %v598
  %v600 = vpop.f32.mrf.mxu0
  %601 = vmatprep.mubr.bf16.mxu0 0
  %602 = vmatmul.mubr.bf16.gmra.mxu0 %v429
  %v603 = vpop.f32.mrf.mxu0
  %v604 = vadd.f32 0.0, %v603
  %v605 = vpop.f32.mrf.mxu0
  %v606 = vpop.f32.mrf.mxu0
  %v607 = vadd.f32 0.0, %v606
  %v608 = vpop.f32.mrf.mxu0
  %609 = vmatprep.mubr.bf16.mxu0 0
  %610 = vmatmul.mubr.bf16.gmra.mxu0 %v430
  %v611 = vpop.f32.mrf.mxu0
  %v612 = vadd.f32 0.0, %v611
  %v613 = vpop.f32.mrf.mxu0
  %v614 = vpop.f32.mrf.mxu0
  %v615 = vadd.f32 0.0, %v614
  %v616 = vpop.f32.mrf.mxu0
  %617 = vmatprep.mubr.bf16.mxu0 0
  %618 = vmatmul.mubr.bf16.gmra.mxu0 %v431
  %v619 = vpop.f32.mrf.mxu0
  %v620 = vadd.f32 0.0, %v619
  %v621 = vpop.f32.mrf.mxu0
  %v622 = vpop.f32.mrf.mxu0
  %v623 = vadd.f32 0.0, %v622
  %v624 = vpop.f32.mrf.mxu0
  %625 = vmatprep.mubr.bf16.mxu0 0
  %626 = vmatmul.mubr.bf16.gmra.mxu0 %v432
  %v627 = vpop.f32.mrf.mxu0
  %v628 = vadd.f32 0.0, %v627
  %v629 = vpop.f32.mrf.mxu0
  %v630 = vpop.f32.mrf.mxu0
  %v631 = vadd.f32 0.0, %v630
  %v632 = vpop.f32.mrf.mxu0
  %633 = vmatprep.mubr.bf16.mxu0 0
  %634 = vmatmul.mubr.bf16.gmra.mxu0 %v433
  %v635 = vpop.f32.mrf.mxu0
  %v636 = vadd.f32 0.0, %v635
  %v637 = vpop.f32.mrf.mxu0
  %v638 = vpop.f32.mrf.mxu0
  %v639 = vadd.f32 0.0, %v638
  %v640 = vpop.f32.mrf.mxu0
  %641 = vmatprep.mubr.bf16.mxu0 0
  %642 = vmatmul.mubr.bf16.gmra.mxu0 %v434
  %v643 = vpop.f32.mrf.mxu0
  %v644 = vadd.f32 0.0, %v643
  %v645 = vpop.f32.mrf.mxu0
  %v646 = vpop.f32.mrf.mxu0
  %v647 = vadd.f32 0.0, %v646
  %v648 = vpop.f32.mrf.mxu0
  %649 = vmatprep.mubr.bf16.mxu0 0
  %650 = vmatmul.mubr.bf16.gmra.mxu0 %v435
  %v651 = vpop.f32.mrf.mxu0
  %v652 = vadd.f32 0.0, %v651
  %v653 = vpop.f32.mrf.mxu0
  %v654 = vpop.f32.mrf.mxu0
  %v655 = vadd.f32 0.0, %v654
  %v656 = vpop.f32.mrf.mxu0
  %657 = vmatprep.mubr.bf16.mxu0 0
  %658 = vmatmul.mubr.bf16.gmra.mxu0 %v436
  %v659 = vpop.f32.mrf.mxu0
  %v660 = vadd.f32 0.0, %v659
  %v661 = vpop.f32.mrf.mxu0
  %v662 = vpop.f32.mrf.mxu0
  %v663 = vadd.f32 0.0, %v662
  %v664 = vpop.f32.mrf.mxu0
  %665 = vdwg.mxu0
  %v670 = vunpack.c.l.b16 %v437
  %v671 = vunpack.c.l.b16 %v438
  %v672 = vunpack.c.l.b16 %v439
  %v673 = vunpack.c.l.b16 %v440
  %v674 = vpack.c.b16 %v671, %v670
  %v675 = vpack.c.b16 %v673, %v672
  %678 = vmatprep.subr.bf16.mxu0 0
  %679 = vmatpush1.bf16.msra.mxu0 0
  %680 = vmatprep.subr.bf16.mxu0 0
  %681 = vmatpush1.bf16.msra.mxu0 0
  %682 = vmatprep.subr.bf16.mxu0 0
  %683 = vmatpush1.bf16.msra.mxu0 0
  %684 = vmatprep.subr.bf16.mxu0 0
  %685 = vmatpush1.bf16.msra.mxu0 0
  %686 = vmatprep.subr.bf16.mxu0 0
  %687 = vmatpush1.bf16.msra.mxu0 0
  %688 = vmatprep.subr.bf16.mxu0 0
  %689 = vmatpush1.bf16.msra.mxu0 0
  %690 = vmatprep.subr.bf16.mxu0 0
  %691 = vmatpush1.bf16.msra.mxu0 %v675
  %692 = vmatprep.subr.bf16.mxu0 0
  %693 = vmatpush1.bf16.msra.mxu0 %v674
  %694 = vmatprep.subr.bf16.mxu0 0
  %695 = vmatpush2.bf16.msra.mxu0 0
  %696 = vmatprep.subr.bf16.mxu0 0
  %697 = vmatpush2.bf16.msra.mxu0 0
  %698 = vmatprep.subr.bf16.mxu0 0
  %699 = vmatpush2.bf16.msra.mxu0 0
  %700 = vmatprep.subr.bf16.mxu0 0
  %701 = vmatpush2.bf16.msra.mxu0 0
  %702 = vmatprep.subr.bf16.mxu0 0
  %703 = vmatpush2.bf16.msra.mxu0 0
  %704 = vmatprep.subr.bf16.mxu0 0
  %705 = vmatpush2.bf16.msra.mxu0 0
  %706 = vmatprep.subr.bf16.mxu0 0
  %707 = vmatpush2.bf16.msra.mxu0 0
  %708 = vmatprep.subr.bf16.mxu0 0
  %709 = vmatpush2.bf16.msra.mxu0 0
  %710 = vmatprep.mubr.bf16.mxu0 0
  %711 = vmatmul.mubr.bf16.gmra.mxu0 %v181
  %v712 = vpop.f32.mrf.mxu0
  %v713 = vadd.f32 %v540, %v712
  %v714 = vpop.f32.mrf.mxu0
  %v715 = vpop.f32.mrf.mxu0
  %v716 = vadd.f32 %v543, %v715
  %v717 = vpop.f32.mrf.mxu0
  %718 = vmatprep.mubr.bf16.mxu0 0
  %719 = vmatmul.mubr.bf16.gmra.mxu0 %v184
  %v720 = vpop.f32.mrf.mxu0
  %v721 = vadd.f32 %v548, %v720
  %v722 = vpop.f32.mrf.mxu0
  %v723 = vpop.f32.mrf.mxu0
  %v724 = vadd.f32 %v551, %v723
  %v725 = vpop.f32.mrf.mxu0
  %726 = vmatprep.mubr.bf16.mxu0 0
  %727 = vmatmul.mubr.bf16.gmra.mxu0 %v187
  %v728 = vpop.f32.mrf.mxu0
  %v729 = vadd.f32 %v556, %v728
  %v730 = vpop.f32.mrf.mxu0
  %v731 = vpop.f32.mrf.mxu0
  %v732 = vadd.f32 %v559, %v731
  %v733 = vpop.f32.mrf.mxu0
  %734 = vmatprep.mubr.bf16.mxu0 0
  %735 = vmatmul.mubr.bf16.gmra.mxu0 %v190
  %v736 = vpop.f32.mrf.mxu0
  %v737 = vadd.f32 %v564, %v736
  %v738 = vpop.f32.mrf.mxu0
  %v739 = vpop.f32.mrf.mxu0
  %v740 = vadd.f32 %v567, %v739
  %v741 = vpop.f32.mrf.mxu0
  %742 = vmatprep.mubr.bf16.mxu0 0
  %743 = vmatmul.mubr.bf16.gmra.mxu0 %v193
  %v744 = vpop.f32.mrf.mxu0
  %v745 = vadd.f32 %v572, %v744
  %v746 = vpop.f32.mrf.mxu0
  %v747 = vpop.f32.mrf.mxu0
  %v748 = vadd.f32 %v575, %v747
  %v749 = vpop.f32.mrf.mxu0
  %750 = vmatprep.mubr.bf16.mxu0 0
  %751 = vmatmul.mubr.bf16.gmra.mxu0 %v196
  %v752 = vpop.f32.mrf.mxu0
  %v753 = vadd.f32 %v580, %v752
  %v754 = vpop.f32.mrf.mxu0
  %v755 = vpop.f32.mrf.mxu0
  %v756 = vadd.f32 %v583, %v755
  %v757 = vpop.f32.mrf.mxu0
  %758 = vmatprep.mubr.bf16.mxu0 0
  %759 = vmatmul.mubr.bf16.gmra.mxu0 %v199
  %v760 = vpop.f32.mrf.mxu0
  %v761 = vadd.f32 %v588, %v760
  %v762 = vpop.f32.mrf.mxu0
  %v763 = vpop.f32.mrf.mxu0
  %v764 = vadd.f32 %v591, %v763
  %v765 = vpop.f32.mrf.mxu0
  %766 = vmatprep.mubr.bf16.mxu0 0
  %767 = vmatmul.mubr.bf16.gmra.mxu0 %v202
  %v768 = vpop.f32.mrf.mxu0
  %v769 = vadd.f32 %v596, %v768
  %v770 = vpop.f32.mrf.mxu0
  %v771 = vpop.f32.mrf.mxu0
  %v772 = vadd.f32 %v599, %v771
  %v773 = vpop.f32.mrf.mxu0
  %774 = vmatprep.mubr.bf16.mxu0 0
  %775 = vmatmul.mubr.bf16.gmra.mxu0 %v205
  %v776 = vpop.f32.mrf.mxu0
  %v777 = vadd.f32 %v604, %v776
  %v778 = vpop.f32.mrf.mxu0
  %v779 = vpop.f32.mrf.mxu0
  %v780 = vadd.f32 %v607, %v779
  %v781 = vpop.f32.mrf.mxu0
  %782 = vmatprep.mubr.bf16.mxu0 0
  %783 = vmatmul.mubr.bf16.gmra.mxu0 %v208
  %v784 = vpop.f32.mrf.mxu0
  %v785 = vadd.f32 %v612, %v784
  %v786 = vpop.f32.mrf.mxu0
  %v787 = vpop.f32.mrf.mxu0
  %v788 = vadd.f32 %v615, %v787
  %v789 = vpop.f32.mrf.mxu0
  %790 = vmatprep.mubr.bf16.mxu0 0
  %791 = vmatmul.mubr.bf16.gmra.mxu0 %v211
  %v792 = vpop.f32.mrf.mxu0
  %v793 = vadd.f32 %v620, %v792
  %v794 = vpop.f32.mrf.mxu0
  %v795 = vpop.f32.mrf.mxu0
  %v796 = vadd.f32 %v623, %v795
  %v797 = vpop.f32.mrf.mxu0
  %798 = vmatprep.mubr.bf16.mxu0 0
  %799 = vmatmul.mubr.bf16.gmra.mxu0 %v214
  %v800 = vpop.f32.mrf.mxu0
  %v801 = vadd.f32 %v628, %v800
  %v802 = vpop.f32.mrf.mxu0
  %v803 = vpop.f32.mrf.mxu0
  %v804 = vadd.f32 %v631, %v803
  %v805 = vpop.f32.mrf.mxu0
  %806 = vmatprep.mubr.bf16.mxu0 0
  %807 = vmatmul.mubr.bf16.gmra.mxu0 %v217
  %v808 = vpop.f32.mrf.mxu0
  %v809 = vadd.f32 %v636, %v808
  %v810 = vpop.f32.mrf.mxu0
  %v811 = vpop.f32.mrf.mxu0
  %v812 = vadd.f32 %v639, %v811
  %v813 = vpop.f32.mrf.mxu0
  %814 = vmatprep.mubr.bf16.mxu0 0
  %815 = vmatmul.mubr.bf16.gmra.mxu0 %v220
  %v816 = vpop.f32.mrf.mxu0
  %v817 = vadd.f32 %v644, %v816
  %v818 = vpop.f32.mrf.mxu0
  %v819 = vpop.f32.mrf.mxu0
  %v820 = vadd.f32 %v647, %v819
  %v821 = vpop.f32.mrf.mxu0
  %822 = vmatprep.mubr.bf16.mxu0 0
  %823 = vmatmul.mubr.bf16.gmra.mxu0 %v223
  %v824 = vpop.f32.mrf.mxu0
  %v825 = vadd.f32 %v652, %v824
  %v826 = vpop.f32.mrf.mxu0
  %v827 = vpop.f32.mrf.mxu0
  %v828 = vadd.f32 %v655, %v827
  %v829 = vpop.f32.mrf.mxu0
  %830 = vmatprep.mubr.bf16.mxu0 0
  %831 = vmatmul.mubr.bf16.gmra.mxu0 %v226
  %v832 = vpop.f32.mrf.mxu0
  %v833 = vadd.f32 %v660, %v832
  %v834 = vpop.f32.mrf.mxu0
  %v835 = vpop.f32.mrf.mxu0
  %v836 = vadd.f32 %v663, %v835
  %v837 = vpop.f32.mrf.mxu0
  %838 = vdwg.mxu0
  %v839 = vld [vmem:[%s5] sm:$0x1]
  %v841 = vlaneseq
  %v842 = vshrl.u32 %v841, 7
  %v843 = vsub.s32 0, %v842
  %v844 = vrot.slane %v839, %v843
  %v846 = vadd.f32 %v713, %v844
  %v847 = vadd.f32 %v716, %v844
  %v848 = vadd.f32 %v721, %v844
  %v849 = vadd.f32 %v724, %v844
  %v850 = vadd.f32 %v729, %v844
  %v851 = vadd.f32 %v732, %v844
  %v852 = vadd.f32 %v737, %v844
  %v853 = vadd.f32 %v740, %v844
  %v854 = vadd.f32 %v745, %v844
  %v855 = vadd.f32 %v748, %v844
  %v856 = vadd.f32 %v753, %v844
  %v857 = vadd.f32 %v756, %v844
  %v858 = vadd.f32 %v761, %v844
  %v859 = vadd.f32 %v764, %v844
  %v860 = vadd.f32 %v769, %v844
  %v861 = vadd.f32 %v772, %v844
  %v862 = vadd.f32 %v777, %v844
  %v863 = vadd.f32 %v780, %v844
  %v864 = vadd.f32 %v785, %v844
  %v865 = vadd.f32 %v788, %v844
  %v866 = vadd.f32 %v793, %v844
  %v867 = vadd.f32 %v796, %v844
  %v868 = vadd.f32 %v801, %v844
  %v869 = vadd.f32 %v804, %v844
  %v870 = vadd.f32 %v809, %v844
  %v871 = vadd.f32 %v812, %v844
  %v872 = vadd.f32 %v817, %v844
  %v873 = vadd.f32 %v820, %v844
  %v874 = vadd.f32 %v825, %v844
  %v875 = vadd.f32 %v828, %v844
  %v876 = vadd.f32 %v833, %v844
  %v877 = vadd.f32 %v836, %v844
  %v878 = vmax.f32 %v846, 0.0
  %v879 = vmax.f32 %v847, 0.0
  %v880 = vmax.f32 %v848, 0.0
  %v881 = vmax.f32 %v849, 0.0
  %v882 = vmax.f32 %v850, 0.0
  %v883 = vmax.f32 %v851, 0.0
  %v884 = vmax.f32 %v852, 0.0
  %v885 = vmax.f32 %v853, 0.0
  %v886 = vmax.f32 %v854, 0.0
  %v887 = vmax.f32 %v855, 0.0
  %v888 = vmax.f32 %v856, 0.0
  %v889 = vmax.f32 %v857, 0.0
  %v890 = vmax.f32 %v858, 0.0
  %v891 = vmax.f32 %v859, 0.0
  %v892 = vmax.f32 %v860, 0.0
  %v893 = vmax.f32 %v861, 0.0
  %v894 = vmax.f32 %v862, 0.0
  %v895 = vmax.f32 %v863, 0.0
  %v896 = vmax.f32 %v864, 0.0
  %v897 = vmax.f32 %v865, 0.0
  %v898 = vmax.f32 %v866, 0.0
  %v899 = vmax.f32 %v867, 0.0
  %v900 = vmax.f32 %v868, 0.0
  %v901 = vmax.f32 %v869, 0.0
  %v902 = vmax.f32 %v870, 0.0
  %v903 = vmax.f32 %v871, 0.0
  %v904 = vmax.f32 %v872, 0.0
  %v905 = vmax.f32 %v873, 0.0
  %v906 = vmax.f32 %v874, 0.0
  %v907 = vmax.f32 %v875, 0.0
  %v908 = vmax.f32 %v876, 0.0
  %v909 = vmax.f32 %v877, 0.0
  %v910 = vpack.c.bf16 %v879, %v878
  %v911 = vpack.c.bf16 %v881, %v880
  %v912 = vpack.c.bf16 %v883, %v882
  %v913 = vpack.c.bf16 %v885, %v884
  %v914 = vpack.c.bf16 %v887, %v886
  %v915 = vpack.c.bf16 %v889, %v888
  %v916 = vpack.c.bf16 %v891, %v890
  %v917 = vpack.c.bf16 %v893, %v892
  %v918 = vpack.c.bf16 %v895, %v894
  %v919 = vpack.c.bf16 %v897, %v896
  %v920 = vpack.c.bf16 %v899, %v898
  %v921 = vpack.c.bf16 %v901, %v900
  %v922 = vpack.c.bf16 %v903, %v902
  %v923 = vpack.c.bf16 %v905, %v904
  %v924 = vpack.c.bf16 %v907, %v906
  %v925 = vpack.c.bf16 %v909, %v908
  %v926 = vld [vmem:[%s6] sm:$0xf]
  %v927 = vld [vmem:[%s6 + $0x4] sm:$0xf]
  %v928 = vld [vmem:[%s6 + $0x8] sm:$0xf]
  %v929 = vld [vmem:[%s6 + $0xc] sm:$0xf]
  %v930 = vld [vmem:[%s6 + $0x10] sm:$0xf]
  %v931 = vld [vmem:[%s6 + $0x14] sm:$0xf]
  %v932 = vld [vmem:[%s6 + $0x18] sm:$0xf]
  %v933 = vld [vmem:[%s6 + $0x1c] sm:$0xf]
  %v934 = vld [vmem:[%s7] sm:$0xf]
  %v935 = vld [vmem:[%s7 + $0x4] sm:$0xf]
  %v936 = vld [vmem:[%s7 + $0x8] sm:$0xf]
  %v937 = vld [vmem:[%s7 + $0xc] sm:$0xf]
  %v942 = vunpack.c.l.b16 %v934
  %v943 = vunpack.c.l.b16 %v935
  %v944 = vunpack.c.l.b16 %v936
  %v945 = vunpack.c.l.b16 %v937
  %v946 = vpack.c.b16 %v943, %v942
  %v947 = vpack.c.b16 %v945, %v944
  %950 = vmatprep.subr.bf16.mxu0 0
  %951 = vmatpush1.bf16.msra.mxu0 0
  %952 = vmatprep.subr.bf16.mxu0 0
  %953 = vmatpush1.bf16.msra.mxu0 0
  %954 = vmatprep.subr.bf16.mxu0 0
  %955 = vmatpush1.bf16.msra.mxu0 0
  %956 = vmatprep.subr.bf16.mxu0 0
  %957 = vmatpush1.bf16.msra.mxu0 0
  %958 = vmatprep.subr.bf16.mxu0 0
  %959 = vmatpush1.bf16.msra.mxu0 0
  %960 = vmatprep.subr.bf16.mxu0 0
  %961 = vmatpush1.bf16.msra.mxu0 0
  %962 = vmatprep.subr.bf16.mxu0 0
  %963 = vmatpush1.bf16.msra.mxu0 %v947
  %964 = vmatprep.subr.bf16.mxu0 0
  %965 = vmatpush1.bf16.msra.mxu0 %v946
  %966 = vmatprep.subr.bf16.mxu0 0
  %967 = vmatpush2.bf16.msra.mxu0 0
  %968 = vmatprep.subr.bf16.mxu0 0
  %969 = vmatpush2.bf16.msra.mxu0 0
  %970 = vmatprep.subr.bf16.mxu0 0
  %971 = vmatpush2.bf16.msra.mxu0 0
  %972 = vmatprep.subr.bf16.mxu0 0
  %973 = vmatpush2.bf16.msra.mxu0 0
  %974 = vmatprep.subr.bf16.mxu0 0
  %975 = vmatpush2.bf16.msra.mxu0 0
  %976 = vmatprep.subr.bf16.mxu0 0
  %977 = vmatpush2.bf16.msra.mxu0 0
  %978 = vmatprep.subr.bf16.mxu0 0
  %979 = vmatpush2.bf16.msra.mxu0 0
  %980 = vmatprep.subr.bf16.mxu0 0
  %981 = vmatpush2.bf16.msra.mxu0 0
  %982 = vmatprep.mubr.bf16.mxu0 0
  %983 = vmatmul.mubr.bf16.gmra.mxu0 %v181
  %v984 = vpop.f32.mrf.mxu0
  %v985 = vadd.f32 0.0, %v984
  %v986 = vpop.f32.mrf.mxu0
  %v987 = vpop.f32.mrf.mxu0
  %v988 = vadd.f32 0.0, %v987
  %v989 = vpop.f32.mrf.mxu0
  %990 = vmatprep.mubr.bf16.mxu0 0
  %991 = vmatmul.mubr.bf16.gmra.mxu0 %v184
  %v992 = vpop.f32.mrf.mxu0
  %v993 = vadd.f32 0.0, %v992
  %v994 = vpop.f32.mrf.mxu0
  %v995 = vpop.f32.mrf.mxu0
  %v996 = vadd.f32 0.0, %v995
  %v997 = vpop.f32.mrf.mxu0
  %998 = vmatprep.mubr.bf16.mxu0 0
  %999 = vmatmul.mubr.bf16.gmra.mxu0 %v187
  %v1000 = vpop.f32.mrf.mxu0
  %v1001 = vadd.f32 0.0, %v1000
  %v1002 = vpop.f32.mrf.mxu0
  %v1003 = vpop.f32.mrf.mxu0
  %v1004 = vadd.f32 0.0, %v1003
  %v1005 = vpop.f32.mrf.mxu0
  %1006 = vmatprep.mubr.bf16.mxu0 0
  %1007 = vmatmul.mubr.bf16.gmra.mxu0 %v190
  %v1008 = vpop.f32.mrf.mxu0
  %v1009 = vadd.f32 0.0, %v1008
  %v1010 = vpop.f32.mrf.mxu0
  %v1011 = vpop.f32.mrf.mxu0
  %v1012 = vadd.f32 0.0, %v1011
  %v1013 = vpop.f32.mrf.mxu0
  %1014 = vmatprep.mubr.bf16.mxu0 0
  %1015 = vmatmul.mubr.bf16.gmra.mxu0 %v193
  %v1016 = vpop.f32.mrf.mxu0
  %v1017 = vadd.f32 0.0, %v1016
  %v1018 = vpop.f32.mrf.mxu0
  %v1019 = vpop.f32.mrf.mxu0
  %v1020 = vadd.f32 0.0, %v1019
  %v1021 = vpop.f32.mrf.mxu0
  %1022 = vmatprep.mubr.bf16.mxu0 0
  %1023 = vmatmul.mubr.bf16.gmra.mxu0 %v196
  %v1024 = vpop.f32.mrf.mxu0
  %v1025 = vadd.f32 0.0, %v1024
  %v1026 = vpop.f32.mrf.mxu0
  %v1027 = vpop.f32.mrf.mxu0
  %v1028 = vadd.f32 0.0, %v1027
  %v1029 = vpop.f32.mrf.mxu0
  %1030 = vmatprep.mubr.bf16.mxu0 0
  %1031 = vmatmul.mubr.bf16.gmra.mxu0 %v199
  %v1032 = vpop.f32.mrf.mxu0
  %v1033 = vadd.f32 0.0, %v1032
  %v1034 = vpop.f32.mrf.mxu0
  %v1035 = vpop.f32.mrf.mxu0
  %v1036 = vadd.f32 0.0, %v1035
  %v1037 = vpop.f32.mrf.mxu0
  %1038 = vmatprep.mubr.bf16.mxu0 0
  %1039 = vmatmul.mubr.bf16.gmra.mxu0 %v202
  %v1040 = vpop.f32.mrf.mxu0
  %v1041 = vadd.f32 0.0, %v1040
  %v1042 = vpop.f32.mrf.mxu0
  %v1043 = vpop.f32.mrf.mxu0
  %v1044 = vadd.f32 0.0, %v1043
  %v1045 = vpop.f32.mrf.mxu0
  %1046 = vmatprep.mubr.bf16.mxu0 0
  %1047 = vmatmul.mubr.bf16.gmra.mxu0 %v205
  %v1048 = vpop.f32.mrf.mxu0
  %v1049 = vadd.f32 0.0, %v1048
  %v1050 = vpop.f32.mrf.mxu0
  %v1051 = vpop.f32.mrf.mxu0
  %v1052 = vadd.f32 0.0, %v1051
  %v1053 = vpop.f32.mrf.mxu0
  %1054 = vmatprep.mubr.bf16.mxu0 0
  %1055 = vmatmul.mubr.bf16.gmra.mxu0 %v208
  %v1056 = vpop.f32.mrf.mxu0
  %v1057 = vadd.f32 0.0, %v1056
  %v1058 = vpop.f32.mrf.mxu0
  %v1059 = vpop.f32.mrf.mxu0
  %v1060 = vadd.f32 0.0, %v1059
  %v1061 = vpop.f32.mrf.mxu0
  %1062 = vmatprep.mubr.bf16.mxu0 0
  %1063 = vmatmul.mubr.bf16.gmra.mxu0 %v211
  %v1064 = vpop.f32.mrf.mxu0
  %v1065 = vadd.f32 0.0, %v1064
  %v1066 = vpop.f32.mrf.mxu0
  %v1067 = vpop.f32.mrf.mxu0
  %v1068 = vadd.f32 0.0, %v1067
  %v1069 = vpop.f32.mrf.mxu0
  %1070 = vmatprep.mubr.bf16.mxu0 0
  %1071 = vmatmul.mubr.bf16.gmra.mxu0 %v214
  %v1072 = vpop.f32.mrf.mxu0
  %v1073 = vadd.f32 0.0, %v1072
  %v1074 = vpop.f32.mrf.mxu0
  %v1075 = vpop.f32.mrf.mxu0
  %v1076 = vadd.f32 0.0, %v1075
  %v1077 = vpop.f32.mrf.mxu0
  %1078 = vmatprep.mubr.bf16.mxu0 0
  %1079 = vmatmul.mubr.bf16.gmra.mxu0 %v217
  %v1080 = vpop.f32.mrf.mxu0
  %v1081 = vadd.f32 0.0, %v1080
  %v1082 = vpop.f32.mrf.mxu0
  %v1083 = vpop.f32.mrf.mxu0
  %v1084 = vadd.f32 0.0, %v1083
  %v1085 = vpop.f32.mrf.mxu0
  %1086 = vmatprep.mubr.bf16.mxu0 0
  %1087 = vmatmul.mubr.bf16.gmra.mxu0 %v220
  %v1088 = vpop.f32.mrf.mxu0
  %v1089 = vadd.f32 0.0, %v1088
  %v1090 = vpop.f32.mrf.mxu0
  %v1091 = vpop.f32.mrf.mxu0
  %v1092 = vadd.f32 0.0, %v1091
  %v1093 = vpop.f32.mrf.mxu0
  %1094 = vmatprep.mubr.bf16.mxu0 0
  %1095 = vmatmul.mubr.bf16.gmra.mxu0 %v223
  %v1096 = vpop.f32.mrf.mxu0
  %v1097 = vadd.f32 0.0, %v1096
  %v1098 = vpop.f32.mrf.mxu0
  %v1099 = vpop.f32.mrf.mxu0
  %v1100 = vadd.f32 0.0, %v1099
  %v1101 = vpop.f32.mrf.mxu0
  %1102 = vmatprep.mubr.bf16.mxu0 0
  %1103 = vmatmul.mubr.bf16.gmra.mxu0 %v226
  %v1104 = vpop.f32.mrf.mxu0
  %v1105 = vadd.f32 0.0, %v1104
  %v1106 = vpop.f32.mrf.mxu0
  %v1107 = vpop.f32.mrf.mxu0
  %v1108 = vadd.f32 0.0, %v1107
  %v1109 = vpop.f32.mrf.mxu0
  %1110 = vdwg.mxu0
  %v1119 = vunpack.c.l.b16 %v926
  %v1120 = vunpack.c.l.b16 %v927
  %v1121 = vunpack.c.l.b16 %v928
  %v1122 = vunpack.c.l.b16 %v929
  %v1123 = vunpack.c.l.b16 %v930
  %v1124 = vunpack.c.l.b16 %v931
  %v1125 = vunpack.c.l.b16 %v932
  %v1126 = vunpack.c.l.b16 %v933
  %v1127 = vpack.c.b16 %v1120, %v1119
  %v1128 = vpack.c.b16 %v1122, %v1121
  %v1129 = vpack.c.b16 %v1124, %v1123
  %v1130 = vpack.c.b16 %v1126, %v1125
  %vm1135 = vcmask 523264
  %v1137 = vsel %vm1135, %v910, 0
  %v1140 = vsel %vm1135, %v911, 0
  %v1143 = vsel %vm1135, %v912, 0
  %v1146 = vsel %vm1135, %v913, 0
  %v1149 = vsel %vm1135, %v914, 0
  %v1152 = vsel %vm1135, %v915, 0
  %v1155 = vsel %vm1135, %v916, 0
  %v1158 = vsel %vm1135, %v917, 0
  %v1161 = vsel %vm1135, %v918, 0
  %v1164 = vsel %vm1135, %v919, 0
  %v1167 = vsel %vm1135, %v920, 0
  %v1170 = vsel %vm1135, %v921, 0
  %v1173 = vsel %vm1135, %v922, 0
  %v1176 = vsel %vm1135, %v923, 0
  %v1179 = vsel %vm1135, %v924, 0
  %v1182 = vsel %vm1135, %v925, 0
  %1184 = vmatprep.subr.bf16.mxu0 0
  %1185 = vmatpush1.bf16.msra.mxu0 0
  %1186 = vmatprep.subr.bf16.mxu0 0
  %1187 = vmatpush1.bf16.msra.mxu0 0
  %1188 = vmatprep.subr.bf16.mxu0 0
  %1189 = vmatpush1.bf16.msra.mxu0 0
  %1190 = vmatprep.subr.bf16.mxu0 0
  %1191 = vmatpush1.bf16.msra.mxu0 0
  %1192 = vmatprep.subr.bf16.mxu0 0
  %1193 = vmatpush1.bf16.msra.mxu0 %v1130
  %1194 = vmatprep.subr.bf16.mxu0 0
  %1195 = vmatpush1.bf16.msra.mxu0 %v1129
  %1196 = vmatprep.subr.bf16.mxu0 0
  %1197 = vmatpush1.bf16.msra.mxu0 %v1128
  %1198 = vmatprep.subr.bf16.mxu0 0
  %1199 = vmatpush1.bf16.msra.mxu0 %v1127
  %1200 = vmatprep.subr.bf16.mxu0 0
  %1201 = vmatpush2.bf16.msra.mxu0 0
  %1202 = vmatprep.subr.bf16.mxu0 0
  %1203 = vmatpush2.bf16.msra.mxu0 0
  %1204 = vmatprep.subr.bf16.mxu0 0
  %1205 = vmatpush2.bf16.msra.mxu0 0
  %1206 = vmatprep.subr.bf16.mxu0 0
  %1207 = vmatpush2.bf16.msra.mxu0 0
  %1208 = vmatprep.subr.bf16.mxu0 0
  %1209 = vmatpush2.bf16.msra.mxu0 0
  %1210 = vmatprep.subr.bf16.mxu0 0
  %1211 = vmatpush2.bf16.msra.mxu0 0
  %1212 = vmatprep.subr.bf16.mxu0 0
  %1213 = vmatpush2.bf16.msra.mxu0 0
  %1214 = vmatprep.subr.bf16.mxu0 0
  %1215 = vmatpush2.bf16.msra.mxu0 0
  %1216 = vmatprep.mubr.bf16.mxu0 0
  %1217 = vmatmul.mubr.bf16.gmra.mxu0 %v1137
  %v1218 = vpop.f32.mrf.mxu0
  %v1219 = vadd.f32 %v985, %v1218
  %v1220 = vpop.f32.mrf.mxu0
  %v1221 = vpop.f32.mrf.mxu0
  %v1222 = vadd.f32 %v988, %v1221
  %v1223 = vpop.f32.mrf.mxu0
  %1224 = vmatprep.mubr.bf16.mxu0 0
  %1225 = vmatmul.mubr.bf16.gmra.mxu0 %v1140
  %v1226 = vpop.f32.mrf.mxu0
  %v1227 = vadd.f32 %v993, %v1226
  %v1228 = vpop.f32.mrf.mxu0
  %v1229 = vpop.f32.mrf.mxu0
  %v1230 = vadd.f32 %v996, %v1229
  %v1231 = vpop.f32.mrf.mxu0
  %1232 = vmatprep.mubr.bf16.mxu0 0
  %1233 = vmatmul.mubr.bf16.gmra.mxu0 %v1143
  %v1234 = vpop.f32.mrf.mxu0
  %v1235 = vadd.f32 %v1001, %v1234
  %v1236 = vpop.f32.mrf.mxu0
  %v1237 = vpop.f32.mrf.mxu0
  %v1238 = vadd.f32 %v1004, %v1237
  %v1239 = vpop.f32.mrf.mxu0
  %1240 = vmatprep.mubr.bf16.mxu0 0
  %1241 = vmatmul.mubr.bf16.gmra.mxu0 %v1146
  %v1242 = vpop.f32.mrf.mxu0
  %v1243 = vadd.f32 %v1009, %v1242
  %v1244 = vpop.f32.mrf.mxu0
  %v1245 = vpop.f32.mrf.mxu0
  %v1246 = vadd.f32 %v1012, %v1245
  %v1247 = vpop.f32.mrf.mxu0
  %1248 = vmatprep.mubr.bf16.mxu0 0
  %1249 = vmatmul.mubr.bf16.gmra.mxu0 %v1149
  %v1250 = vpop.f32.mrf.mxu0
  %v1251 = vadd.f32 %v1017, %v1250
  %v1252 = vpop.f32.mrf.mxu0
  %v1253 = vpop.f32.mrf.mxu0
  %v1254 = vadd.f32 %v1020, %v1253
  %v1255 = vpop.f32.mrf.mxu0
  %1256 = vmatprep.mubr.bf16.mxu0 0
  %1257 = vmatmul.mubr.bf16.gmra.mxu0 %v1152
  %v1258 = vpop.f32.mrf.mxu0
  %v1259 = vadd.f32 %v1025, %v1258
  %v1260 = vpop.f32.mrf.mxu0
  %v1261 = vpop.f32.mrf.mxu0
  %v1262 = vadd.f32 %v1028, %v1261
  %v1263 = vpop.f32.mrf.mxu0
  %1264 = vmatprep.mubr.bf16.mxu0 0
  %1265 = vmatmul.mubr.bf16.gmra.mxu0 %v1155
  %v1266 = vpop.f32.mrf.mxu0
  %v1267 = vadd.f32 %v1033, %v1266
  %v1268 = vpop.f32.mrf.mxu0
  %v1269 = vpop.f32.mrf.mxu0
  %v1270 = vadd.f32 %v1036, %v1269
  %v1271 = vpop.f32.mrf.mxu0
  %1272 = vmatprep.mubr.bf16.mxu0 0
  %1273 = vmatmul.mubr.bf16.gmra.mxu0 %v1158
  %v1274 = vpop.f32.mrf.mxu0
  %v1275 = vadd.f32 %v1041, %v1274
  %v1276 = vpop.f32.mrf.mxu0
  %v1277 = vpop.f32.mrf.mxu0
  %v1278 = vadd.f32 %v1044, %v1277
  %v1279 = vpop.f32.mrf.mxu0
  %1280 = vmatprep.mubr.bf16.mxu0 0
  %1281 = vmatmul.mubr.bf16.gmra.mxu0 %v1161
  %v1282 = vpop.f32.mrf.mxu0
  %v1283 = vadd.f32 %v1049, %v1282
  %v1284 = vpop.f32.mrf.mxu0
  %v1285 = vpop.f32.mrf.mxu0
  %v1286 = vadd.f32 %v1052, %v1285
  %v1287 = vpop.f32.mrf.mxu0
  %1288 = vmatprep.mubr.bf16.mxu0 0
  %1289 = vmatmul.mubr.bf16.gmra.mxu0 %v1164
  %v1290 = vpop.f32.mrf.mxu0
  %v1291 = vadd.f32 %v1057, %v1290
  %v1292 = vpop.f32.mrf.mxu0
  %v1293 = vpop.f32.mrf.mxu0
  %v1294 = vadd.f32 %v1060, %v1293
  %v1295 = vpop.f32.mrf.mxu0
  %1296 = vmatprep.mubr.bf16.mxu0 0
  %1297 = vmatmul.mubr.bf16.gmra.mxu0 %v1167
  %v1298 = vpop.f32.mrf.mxu0
  %v1299 = vadd.f32 %v1065, %v1298
  %v1300 = vpop.f32.mrf.mxu0
  %v1301 = vpop.f32.mrf.mxu0
  %v1302 = vadd.f32 %v1068, %v1301
  %v1303 = vpop.f32.mrf.mxu0
  %1304 = vmatprep.mubr.bf16.mxu0 0
  %1305 = vmatmul.mubr.bf16.gmra.mxu0 %v1170
  %v1306 = vpop.f32.mrf.mxu0
  %v1307 = vadd.f32 %v1073, %v1306
  %v1308 = vpop.f32.mrf.mxu0
  %v1309 = vpop.f32.mrf.mxu0
  %v1310 = vadd.f32 %v1076, %v1309
  %v1311 = vpop.f32.mrf.mxu0
  %1312 = vmatprep.mubr.bf16.mxu0 0
  %1313 = vmatmul.mubr.bf16.gmra.mxu0 %v1173
  %v1314 = vpop.f32.mrf.mxu0
  %v1315 = vadd.f32 %v1081, %v1314
  %v1316 = vpop.f32.mrf.mxu0
  %v1317 = vpop.f32.mrf.mxu0
  %v1318 = vadd.f32 %v1084, %v1317
  %v1319 = vpop.f32.mrf.mxu0
  %1320 = vmatprep.mubr.bf16.mxu0 0
  %1321 = vmatmul.mubr.bf16.gmra.mxu0 %v1176
  %v1322 = vpop.f32.mrf.mxu0
  %v1323 = vadd.f32 %v1089, %v1322
  %v1324 = vpop.f32.mrf.mxu0
  %v1325 = vpop.f32.mrf.mxu0
  %v1326 = vadd.f32 %v1092, %v1325
  %v1327 = vpop.f32.mrf.mxu0
  %1328 = vmatprep.mubr.bf16.mxu0 0
  %1329 = vmatmul.mubr.bf16.gmra.mxu0 %v1179
  %v1330 = vpop.f32.mrf.mxu0
  %v1331 = vadd.f32 %v1097, %v1330
  %v1332 = vpop.f32.mrf.mxu0
  %v1333 = vpop.f32.mrf.mxu0
  %v1334 = vadd.f32 %v1100, %v1333
  %v1335 = vpop.f32.mrf.mxu0
  %1336 = vmatprep.mubr.bf16.mxu0 0
  %1337 = vmatmul.mubr.bf16.gmra.mxu0 %v1182
  %v1338 = vpop.f32.mrf.mxu0
  %v1339 = vadd.f32 %v1105, %v1338
  %v1340 = vpop.f32.mrf.mxu0
  %v1341 = vpop.f32.mrf.mxu0
  %v1342 = vadd.f32 %v1108, %v1341
  %v1343 = vpop.f32.mrf.mxu0
  %1344 = vdwg.mxu0
  %v1345 = vld [vmem:[%s8] sm:$0xf]
  %v1346 = vld [vmem:[%s8 + $0x4] sm:$0xf]
  %v1347 = vld [vmem:[%s8 + $0x8] sm:$0xf]
  %v1348 = vld [vmem:[%s8 + $0xc] sm:$0xf]
  %v1349 = vld [vmem:[%s8 + $0x10] sm:$0xf]
  %v1350 = vld [vmem:[%s8 + $0x14] sm:$0xf]
  %v1351 = vld [vmem:[%s8 + $0x18] sm:$0xf]
  %v1352 = vld [vmem:[%s8 + $0x1c] sm:$0xf]
  %v1353 = vld [vmem:[%s8 + $0x20] sm:$0xf]
  %v1354 = vld [vmem:[%s8 + $0x24] sm:$0xf]
  %v1355 = vld [vmem:[%s8 + $0x28] sm:$0xf]
  %v1356 = vld [vmem:[%s8 + $0x2c] sm:$0xf]
  %v1357 = vld [vmem:[%s8 + $0x30] sm:$0xf]
  %v1358 = vld [vmem:[%s8 + $0x34] sm:$0xf]
  %v1359 = vld [vmem:[%s8 + $0x38] sm:$0xf]
  %v1360 = vld [vmem:[%s8 + $0x3c] sm:$0xf]
  %v1377 = vunpack.c.l.b16 %v1345
  %v1378 = vunpack.c.l.b16 %v1346
  %v1379 = vunpack.c.l.b16 %v1347
  %v1380 = vunpack.c.l.b16 %v1348
  %v1381 = vunpack.c.l.b16 %v1349
  %v1382 = vunpack.c.l.b16 %v1350
  %v1383 = vunpack.c.l.b16 %v1351
  %v1384 = vunpack.c.l.b16 %v1352
  %v1385 = vunpack.c.l.b16 %v1353
  %v1386 = vunpack.c.l.b16 %v1354
  %v1387 = vunpack.c.l.b16 %v1355
  %v1388 = vunpack.c.l.b16 %v1356
  %v1389 = vunpack.c.l.b16 %v1357
  %v1390 = vunpack.c.l.b16 %v1358
  %v1391 = vunpack.c.l.b16 %v1359
  %v1392 = vunpack.c.l.b16 %v1360
  %v1393 = vpack.c.b16 %v1378, %v1377
  %v1394 = vpack.c.b16 %v1380, %v1379
  %v1395 = vpack.c.b16 %v1382, %v1381
  %v1396 = vpack.c.b16 %v1384, %v1383
  %v1397 = vpack.c.b16 %v1386, %v1385
  %v1398 = vpack.c.b16 %v1388, %v1387
  %v1399 = vpack.c.b16 %v1390, %v1389
  %v1400 = vpack.c.b16 %v1392, %v1391
  %1409 = vmatprep.subr.bf16.mxu0 0
  %1410 = vmatpush1.bf16.msra.mxu0 %v1400
  %1411 = vmatprep.subr.bf16.mxu0 0
  %1412 = vmatpush1.bf16.msra.mxu0 %v1399
  %1413 = vmatprep.subr.bf16.mxu0 0
  %1414 = vmatpush1.bf16.msra.mxu0 %v1398
  %1415 = vmatprep.subr.bf16.mxu0 0
  %1416 = vmatpush1.bf16.msra.mxu0 %v1397
  %1417 = vmatprep.subr.bf16.mxu0 0
  %1418 = vmatpush1.bf16.msra.mxu0 %v1396
  %1419 = vmatprep.subr.bf16.mxu0 0
  %1420 = vmatpush1.bf16.msra.mxu0 %v1395
  %1421 = vmatprep.subr.bf16.mxu0 0
  %1422 = vmatpush1.bf16.msra.mxu0 %v1394
  %1423 = vmatprep.subr.bf16.mxu0 0
  %1424 = vmatpush1.bf16.msra.mxu0 %v1393
  %1425 = vmatprep.subr.bf16.mxu0 0
  %1426 = vmatpush2.bf16.msra.mxu0 0
  %1427 = vmatprep.subr.bf16.mxu0 0
  %1428 = vmatpush2.bf16.msra.mxu0 0
  %1429 = vmatprep.subr.bf16.mxu0 0
  %1430 = vmatpush2.bf16.msra.mxu0 0
  %1431 = vmatprep.subr.bf16.mxu0 0
  %1432 = vmatpush2.bf16.msra.mxu0 0
  %1433 = vmatprep.subr.bf16.mxu0 0
  %1434 = vmatpush2.bf16.msra.mxu0 0
  %1435 = vmatprep.subr.bf16.mxu0 0
  %1436 = vmatpush2.bf16.msra.mxu0 0
  %1437 = vmatprep.subr.bf16.mxu0 0
  %1438 = vmatpush2.bf16.msra.mxu0 0
  %1439 = vmatprep.subr.bf16.mxu0 0
  %1440 = vmatpush2.bf16.msra.mxu0 0
  %1441 = vmatprep.mubr.bf16.mxu0 0
  %1442 = vmatmul.mubr.bf16.gmra.mxu0 %v421
  %v1443 = vpop.f32.mrf.mxu0
  %v1444 = vadd.f32 0.0, %v1443
  %v1445 = vpop.f32.mrf.mxu0
  %v1446 = vpop.f32.mrf.mxu0
  %v1447 = vadd.f32 0.0, %v1446
  %v1448 = vpop.f32.mrf.mxu0
  %1449 = vmatprep.mubr.bf16.mxu0 0
  %1450 = vmatmul.mubr.bf16.gmra.mxu0 %v422
  %v1451 = vpop.f32.mrf.mxu0
  %v1452 = vadd.f32 0.0, %v1451
  %v1453 = vpop.f32.mrf.mxu0
  %v1454 = vpop.f32.mrf.mxu0
  %v1455 = vadd.f32 0.0, %v1454
  %v1456 = vpop.f32.mrf.mxu0
  %1457 = vmatprep.mubr.bf16.mxu0 0
  %1458 = vmatmul.mubr.bf16.gmra.mxu0 %v423
  %v1459 = vpop.f32.mrf.mxu0
  %v1460 = vadd.f32 0.0, %v1459
  %v1461 = vpop.f32.mrf.mxu0
  %v1462 = vpop.f32.mrf.mxu0
  %v1463 = vadd.f32 0.0, %v1462
  %v1464 = vpop.f32.mrf.mxu0
  %1465 = vmatprep.mubr.bf16.mxu0 0
  %1466 = vmatmul.mubr.bf16.gmra.mxu0 %v424
  %v1467 = vpop.f32.mrf.mxu0
  %v1468 = vadd.f32 0.0, %v1467
  %v1469 = vpop.f32.mrf.mxu0
  %v1470 = vpop.f32.mrf.mxu0
  %v1471 = vadd.f32 0.0, %v1470
  %v1472 = vpop.f32.mrf.mxu0
  %1473 = vmatprep.mubr.bf16.mxu0 0
  %1474 = vmatmul.mubr.bf16.gmra.mxu0 %v425
  %v1475 = vpop.f32.mrf.mxu0
  %v1476 = vadd.f32 0.0, %v1475
  %v1477 = vpop.f32.mrf.mxu0
  %v1478 = vpop.f32.mrf.mxu0
  %v1479 = vadd.f32 0.0, %v1478
  %v1480 = vpop.f32.mrf.mxu0
  %1481 = vmatprep.mubr.bf16.mxu0 0
  %1482 = vmatmul.mubr.bf16.gmra.mxu0 %v426
  %v1483 = vpop.f32.mrf.mxu0
  %v1484 = vadd.f32 0.0, %v1483
  %v1485 = vpop.f32.mrf.mxu0
  %v1486 = vpop.f32.mrf.mxu0
  %v1487 = vadd.f32 0.0, %v1486
  %v1488 = vpop.f32.mrf.mxu0
  %1489 = vmatprep.mubr.bf16.mxu0 0
  %1490 = vmatmul.mubr.bf16.gmra.mxu0 %v427
  %v1491 = vpop.f32.mrf.mxu0
  %v1492 = vadd.f32 0.0, %v1491
  %v1493 = vpop.f32.mrf.mxu0
  %v1494 = vpop.f32.mrf.mxu0
  %v1495 = vadd.f32 0.0, %v1494
  %v1496 = vpop.f32.mrf.mxu0
  %1497 = vmatprep.mubr.bf16.mxu0 0
  %1498 = vmatmul.mubr.bf16.gmra.mxu0 %v428
  %v1499 = vpop.f32.mrf.mxu0
  %v1500 = vadd.f32 0.0, %v1499
  %v1501 = vpop.f32.mrf.mxu0
  %v1502 = vpop.f32.mrf.mxu0
  %v1503 = vadd.f32 0.0, %v1502
  %v1504 = vpop.f32.mrf.mxu0
  %1505 = vmatprep.mubr.bf16.mxu0 0
  %1506 = vmatmul.mubr.bf16.gmra.mxu0 %v429
  %v1507 = vpop.f32.mrf.mxu0
  %v1508 = vadd.f32 0.0, %v1507
  %v1509 = vpop.f32.mrf.mxu0
  %v1510 = vpop.f32.mrf.mxu0
  %v1511 = vadd.f32 0.0, %v1510
  %v1512 = vpop.f32.mrf.mxu0
  %1513 = vmatprep.mubr.bf16.mxu0 0
  %1514 = vmatmul.mubr.bf16.gmra.mxu0 %v430
  %v1515 = vpop.f32.mrf.mxu0
  %v1516 = vadd.f32 0.0, %v1515
  %v1517 = vpop.f32.mrf.mxu0
  %v1518 = vpop.f32.mrf.mxu0
  %v1519 = vadd.f32 0.0, %v1518
  %v1520 = vpop.f32.mrf.mxu0
  %1521 = vmatprep.mubr.bf16.mxu0 0
  %1522 = vmatmul.mubr.bf16.gmra.mxu0 %v431
  %v1523 = vpop.f32.mrf.mxu0
  %v1524 = vadd.f32 0.0, %v1523
  %v1525 = vpop.f32.mrf.mxu0
  %v1526 = vpop.f32.mrf.mxu0
  %v1527 = vadd.f32 0.0, %v1526
  %v1528 = vpop.f32.mrf.mxu0
  %1529 = vmatprep.mubr.bf16.mxu0 0
  %1530 = vmatmul.mubr.bf16.gmra.mxu0 %v432
  %v1531 = vpop.f32.mrf.mxu0
  %v1532 = vadd.f32 0.0, %v1531
  %v1533 = vpop.f32.mrf.mxu0
  %v1534 = vpop.f32.mrf.mxu0
  %v1535 = vadd.f32 0.0, %v1534
  %v1536 = vpop.f32.mrf.mxu0
  %1537 = vmatprep.mubr.bf16.mxu0 0
  %1538 = vmatmul.mubr.bf16.gmra.mxu0 %v433
  %v1539 = vpop.f32.mrf.mxu0
  %v1540 = vadd.f32 0.0, %v1539
  %v1541 = vpop.f32.mrf.mxu0
  %v1542 = vpop.f32.mrf.mxu0
  %v1543 = vadd.f32 0.0, %v1542
  %v1544 = vpop.f32.mrf.mxu0
  %1545 = vmatprep.mubr.bf16.mxu0 0
  %1546 = vmatmul.mubr.bf16.gmra.mxu0 %v434
  %v1547 = vpop.f32.mrf.mxu0
  %v1548 = vadd.f32 0.0, %v1547
  %v1549 = vpop.f32.mrf.mxu0
  %v1550 = vpop.f32.mrf.mxu0
  %v1551 = vadd.f32 0.0, %v1550
  %v1552 = vpop.f32.mrf.mxu0
  %1553 = vmatprep.mubr.bf16.mxu0 0
  %1554 = vmatmul.mubr.bf16.gmra.mxu0 %v435
  %v1555 = vpop.f32.mrf.mxu0
  %v1556 = vadd.f32 0.0, %v1555
  %v1557 = vpop.f32.mrf.mxu0
  %v1558 = vpop.f32.mrf.mxu0
  %v1559 = vadd.f32 0.0, %v1558
  %v1560 = vpop.f32.mrf.mxu0
  %1561 = vmatprep.mubr.bf16.mxu0 0
  %1562 = vmatmul.mubr.bf16.gmra.mxu0 %v436
  %v1563 = vpop.f32.mrf.mxu0
  %v1564 = vadd.f32 0.0, %v1563
  %v1565 = vpop.f32.mrf.mxu0
  %v1566 = vpop.f32.mrf.mxu0
  %v1567 = vadd.f32 0.0, %v1566
  %v1568 = vpop.f32.mrf.mxu0
  %1569 = vdwg.mxu0
  %v1570 = vadd.f32 %v1219, %v1444
  %v1571 = vadd.f32 %v1222, %v1447
  %v1572 = vadd.f32 %v1227, %v1452
  %v1573 = vadd.f32 %v1230, %v1455
  %v1574 = vadd.f32 %v1235, %v1460
  %v1575 = vadd.f32 %v1238, %v1463
  %v1576 = vadd.f32 %v1243, %v1468
  %v1577 = vadd.f32 %v1246, %v1471
  %v1578 = vadd.f32 %v1251, %v1476
  %v1579 = vadd.f32 %v1254, %v1479
  %v1580 = vadd.f32 %v1259, %v1484
  %v1581 = vadd.f32 %v1262, %v1487
  %v1582 = vadd.f32 %v1267, %v1492
  %v1583 = vadd.f32 %v1270, %v1495
  %v1584 = vadd.f32 %v1275, %v1500
  %v1585 = vadd.f32 %v1278, %v1503
  %v1586 = vadd.f32 %v1283, %v1508
  %v1587 = vadd.f32 %v1286, %v1511
  %v1588 = vadd.f32 %v1291, %v1516
  %v1589 = vadd.f32 %v1294, %v1519
  %v1590 = vadd.f32 %v1299, %v1524
  %v1591 = vadd.f32 %v1302, %v1527
  %v1592 = vadd.f32 %v1307, %v1532
  %v1593 = vadd.f32 %v1310, %v1535
  %v1594 = vadd.f32 %v1315, %v1540
  %v1595 = vadd.f32 %v1318, %v1543
  %v1596 = vadd.f32 %v1323, %v1548
  %v1597 = vadd.f32 %v1326, %v1551
  %v1598 = vadd.f32 %v1331, %v1556
  %v1599 = vadd.f32 %v1334, %v1559
  %v1600 = vadd.f32 %v1339, %v1564
  %v1601 = vadd.f32 %v1342, %v1567
  %v1602 = vld [vmem:[%s9] sm:$0x1]
  %v1604 = vlaneseq
  %v1605 = vshrl.u32 %v1604, 7
  %v1606 = vsub.s32 0, %v1605
  %v1607 = vrot.slane %v1602, %v1606
  %v1609 = vadd.f32 %v1570, %v1607
  %v1610 = vadd.f32 %v1571, %v1607
  %v1611 = vadd.f32 %v1572, %v1607
  %v1612 = vadd.f32 %v1573, %v1607
  %v1613 = vadd.f32 %v1574, %v1607
  %v1614 = vadd.f32 %v1575, %v1607
  %v1615 = vadd.f32 %v1576, %v1607
  %v1616 = vadd.f32 %v1577, %v1607
  %v1617 = vadd.f32 %v1578, %v1607
  %v1618 = vadd.f32 %v1579, %v1607
  %v1619 = vadd.f32 %v1580, %v1607
  %v1620 = vadd.f32 %v1581, %v1607
  %v1621 = vadd.f32 %v1582, %v1607
  %v1622 = vadd.f32 %v1583, %v1607
  %v1623 = vadd.f32 %v1584, %v1607
  %v1624 = vadd.f32 %v1585, %v1607
  %v1625 = vadd.f32 %v1586, %v1607
  %v1626 = vadd.f32 %v1587, %v1607
  %v1627 = vadd.f32 %v1588, %v1607
  %v1628 = vadd.f32 %v1589, %v1607
  %v1629 = vadd.f32 %v1590, %v1607
  %v1630 = vadd.f32 %v1591, %v1607
  %v1631 = vadd.f32 %v1592, %v1607
  %v1632 = vadd.f32 %v1593, %v1607
  %v1633 = vadd.f32 %v1594, %v1607
  %v1634 = vadd.f32 %v1595, %v1607
  %v1635 = vadd.f32 %v1596, %v1607
  %v1636 = vadd.f32 %v1597, %v1607
  %v1637 = vadd.f32 %v1598, %v1607
  %v1638 = vadd.f32 %v1599, %v1607
  %v1639 = vadd.f32 %v1600, %v1607
  %v1640 = vadd.f32 %v1601, %v1607
  %v1641 = vmax.f32 %v1609, 0.0
  %v1642 = vmax.f32 %v1610, 0.0
  %v1643 = vmax.f32 %v1611, 0.0
  %v1644 = vmax.f32 %v1612, 0.0
  %v1645 = vmax.f32 %v1613, 0.0
  %v1646 = vmax.f32 %v1614, 0.0
  %v1647 = vmax.f32 %v1615, 0.0
  %v1648 = vmax.f32 %v1616, 0.0
  %v1649 = vmax.f32 %v1617, 0.0
  %v1650 = vmax.f32 %v1618, 0.0
  %v1651 = vmax.f32 %v1619, 0.0
  %v1652 = vmax.f32 %v1620, 0.0
  %v1653 = vmax.f32 %v1621, 0.0
  %v1654 = vmax.f32 %v1622, 0.0
  %v1655 = vmax.f32 %v1623, 0.0
  %v1656 = vmax.f32 %v1624, 0.0
  %v1657 = vmax.f32 %v1625, 0.0
  %v1658 = vmax.f32 %v1626, 0.0
  %v1659 = vmax.f32 %v1627, 0.0
  %v1660 = vmax.f32 %v1628, 0.0
  %v1661 = vmax.f32 %v1629, 0.0
  %v1662 = vmax.f32 %v1630, 0.0
  %v1663 = vmax.f32 %v1631, 0.0
  %v1664 = vmax.f32 %v1632, 0.0
  %v1665 = vmax.f32 %v1633, 0.0
  %v1666 = vmax.f32 %v1634, 0.0
  %v1667 = vmax.f32 %v1635, 0.0
  %v1668 = vmax.f32 %v1636, 0.0
  %v1669 = vmax.f32 %v1637, 0.0
  %v1670 = vmax.f32 %v1638, 0.0
  %v1671 = vmax.f32 %v1639, 0.0
  %v1672 = vmax.f32 %v1640, 0.0
  %v1673 = vld [vmem:[%s10] sm:$0x1]
  %v1675 = vlaneseq
  %v1676 = vshrl.u32 %v1675, 7
  %v1677 = vsub.s32 0, %v1676
  %v1678 = vrot.slane %v1673, %v1677
  %v1680 = vmul.f32 %v1641, %v1678
  %v1681 = vmul.f32 %v1642, %v1678
  %v1682 = vmul.f32 %v1643, %v1678
  %v1683 = vmul.f32 %v1644, %v1678
  %v1684 = vmul.f32 %v1645, %v1678
  %v1685 = vmul.f32 %v1646, %v1678
  %v1686 = vmul.f32 %v1647, %v1678
  %v1687 = vmul.f32 %v1648, %v1678
  %v1688 = vmul.f32 %v1649, %v1678
  %v1689 = vmul.f32 %v1650, %v1678
  %v1690 = vmul.f32 %v1651, %v1678
  %v1691 = vmul.f32 %v1652, %v1678
  %v1692 = vmul.f32 %v1653, %v1678
  %v1693 = vmul.f32 %v1654, %v1678
  %v1694 = vmul.f32 %v1655, %v1678
  %v1695 = vmul.f32 %v1656, %v1678
  %v1696 = vmul.f32 %v1657, %v1678
  %v1697 = vmul.f32 %v1658, %v1678
  %v1698 = vmul.f32 %v1659, %v1678
  %v1699 = vmul.f32 %v1660, %v1678
  %v1700 = vmul.f32 %v1661, %v1678
  %v1701 = vmul.f32 %v1662, %v1678
  %v1702 = vmul.f32 %v1663, %v1678
  %v1703 = vmul.f32 %v1664, %v1678
  %v1704 = vmul.f32 %v1665, %v1678
  %v1705 = vmul.f32 %v1666, %v1678
  %v1706 = vmul.f32 %v1667, %v1678
  %v1707 = vmul.f32 %v1668, %v1678
  %v1708 = vmul.f32 %v1669, %v1678
  %v1709 = vmul.f32 %v1670, %v1678
  %v1710 = vmul.f32 %v1671, %v1678
  %v1711 = vmul.f32 %v1672, %v1678
  %vm1712 = vcmask 130048
  %v1713 = vsel %vm1712, %v1680, 0.0
  %1714 = vadd.xlane.f32.xlu0 %v1713
  %v1715 = vpop.xlane.xlu0 %1714
  %v1716 = vsel %vm1712, %v1681, 0.0
  %1717 = vadd.xlane.f32.xlu0 %v1716
  %v1718 = vpop.xlane.xlu0 %1717
  %v1719 = vsel %vm1712, %v1682, 0.0
  %1720 = vadd.xlane.f32.xlu0 %v1719
  %v1721 = vpop.xlane.xlu0 %1720
  %v1722 = vsel %vm1712, %v1683, 0.0
  %1723 = vadd.xlane.f32.xlu0 %v1722
  %v1724 = vpop.xlane.xlu0 %1723
  %v1725 = vsel %vm1712, %v1684, 0.0
  %1726 = vadd.xlane.f32.xlu0 %v1725
  %v1727 = vpop.xlane.xlu0 %1726
  %v1728 = vsel %vm1712, %v1685, 0.0
  %1729 = vadd.xlane.f32.xlu0 %v1728
  %v1730 = vpop.xlane.xlu0 %1729
  %v1731 = vsel %vm1712, %v1686, 0.0
  %1732 = vadd.xlane.f32.xlu0 %v1731
  %v1733 = vpop.xlane.xlu0 %1732
  %v1734 = vsel %vm1712, %v1687, 0.0
  %1735 = vadd.xlane.f32.xlu0 %v1734
  %v1736 = vpop.xlane.xlu0 %1735
  %v1737 = vsel %vm1712, %v1688, 0.0
  %1738 = vadd.xlane.f32.xlu0 %v1737
  %v1739 = vpop.xlane.xlu0 %1738
  %v1740 = vsel %vm1712, %v1689, 0.0
  %1741 = vadd.xlane.f32.xlu0 %v1740
  %v1742 = vpop.xlane.xlu0 %1741
  %v1743 = vsel %vm1712, %v1690, 0.0
  %1744 = vadd.xlane.f32.xlu0 %v1743
  %v1745 = vpop.xlane.xlu0 %1744
  %v1746 = vsel %vm1712, %v1691, 0.0
  %1747 = vadd.xlane.f32.xlu0 %v1746
  %v1748 = vpop.xlane.xlu0 %1747
  %v1749 = vsel %vm1712, %v1692, 0.0
  %1750 = vadd.xlane.f32.xlu0 %v1749
  %v1751 = vpop.xlane.xlu0 %1750
  %v1752 = vsel %vm1712, %v1693, 0.0
  %1753 = vadd.xlane.f32.xlu0 %v1752
  %v1754 = vpop.xlane.xlu0 %1753
  %v1755 = vsel %vm1712, %v1694, 0.0
  %1756 = vadd.xlane.f32.xlu0 %v1755
  %v1757 = vpop.xlane.xlu0 %1756
  %v1758 = vsel %vm1712, %v1695, 0.0
  %1759 = vadd.xlane.f32.xlu0 %v1758
  %v1760 = vpop.xlane.xlu0 %1759
  %v1761 = vsel %vm1712, %v1696, 0.0
  %1762 = vadd.xlane.f32.xlu0 %v1761
  %v1763 = vpop.xlane.xlu0 %1762
  %v1764 = vsel %vm1712, %v1697, 0.0
  %1765 = vadd.xlane.f32.xlu0 %v1764
  %v1766 = vpop.xlane.xlu0 %1765
  %v1767 = vsel %vm1712, %v1698, 0.0
  %1768 = vadd.xlane.f32.xlu0 %v1767
  %v1769 = vpop.xlane.xlu0 %1768
  %v1770 = vsel %vm1712, %v1699, 0.0
  %1771 = vadd.xlane.f32.xlu0 %v1770
  %v1772 = vpop.xlane.xlu0 %1771
  %v1773 = vsel %vm1712, %v1700, 0.0
  %1774 = vadd.xlane.f32.xlu0 %v1773
  %v1775 = vpop.xlane.xlu0 %1774
  %v1776 = vsel %vm1712, %v1701, 0.0
  %1777 = vadd.xlane.f32.xlu0 %v1776
  %v1778 = vpop.xlane.xlu0 %1777
  %v1779 = vsel %vm1712, %v1702, 0.0
  %1780 = vadd.xlane.f32.xlu0 %v1779
  %v1781 = vpop.xlane.xlu0 %1780
  %v1782 = vsel %vm1712, %v1703, 0.0
  %1783 = vadd.xlane.f32.xlu0 %v1782
  %v1784 = vpop.xlane.xlu0 %1783
  %v1785 = vsel %vm1712, %v1704, 0.0
  %1786 = vadd.xlane.f32.xlu0 %v1785
  %v1787 = vpop.xlane.xlu0 %1786
  %v1788 = vsel %vm1712, %v1705, 0.0
  %1789 = vadd.xlane.f32.xlu0 %v1788
  %v1790 = vpop.xlane.xlu0 %1789
  %v1791 = vsel %vm1712, %v1706, 0.0
  %1792 = vadd.xlane.f32.xlu0 %v1791
  %v1793 = vpop.xlane.xlu0 %1792
  %v1794 = vsel %vm1712, %v1707, 0.0
  %1795 = vadd.xlane.f32.xlu0 %v1794
  %v1796 = vpop.xlane.xlu0 %1795
  %v1797 = vsel %vm1712, %v1708, 0.0
  %1798 = vadd.xlane.f32.xlu0 %v1797
  %v1799 = vpop.xlane.xlu0 %1798
  %v1800 = vsel %vm1712, %v1709, 0.0
  %1801 = vadd.xlane.f32.xlu0 %v1800
  %v1802 = vpop.xlane.xlu0 %1801
  %v1803 = vsel %vm1712, %v1710, 0.0
  %1804 = vadd.xlane.f32.xlu0 %v1803
  %v1805 = vpop.xlane.xlu0 %1804
  %v1806 = vsel %vm1712, %v1711, 0.0
  %1807 = vadd.xlane.f32.xlu0 %v1806
  %v1808 = vpop.xlane.xlu0 %1807
  %v1809 = vld [vmem:[#allocation2] sm:$0x1]
  %1811 = vset.pattern.permute.xlu0 0
  %1812 = vperm.xlu0 %1811, %v1809
  %v1813 = vpop.permute.xlu0 %1812
  %v1815 = vlaneseq
  %v1816 = vshrl.u32 %v1815, 7
  %v1817 = vsub.s32 0, %v1816
  %v1818 = vrot.slane %v1813, %v1817
  %v1819 = vadd.f32 %v1715, %v1818
  %v1820 = vadd.f32 %v1718, %v1818
  %v1821 = vadd.f32 %v1721, %v1818
  %v1822 = vadd.f32 %v1724, %v1818
  %v1823 = vadd.f32 %v1727, %v1818
  %v1824 = vadd.f32 %v1730, %v1818
  %v1825 = vadd.f32 %v1733, %v1818
  %v1826 = vadd.f32 %v1736, %v1818
  %v1827 = vadd.f32 %v1739, %v1818
  %v1828 = vadd.f32 %v1742, %v1818
  %v1829 = vadd.f32 %v1745, %v1818
  %v1830 = vadd.f32 %v1748, %v1818
  %v1831 = vadd.f32 %v1751, %v1818
  %v1832 = vadd.f32 %v1754, %v1818
  %v1833 = vadd.f32 %v1757, %v1818
  %v1834 = vadd.f32 %v1760, %v1818
  %v1835 = vadd.f32 %v1763, %v1818
  %v1836 = vadd.f32 %v1766, %v1818
  %v1837 = vadd.f32 %v1769, %v1818
  %v1838 = vadd.f32 %v1772, %v1818
  %v1839 = vadd.f32 %v1775, %v1818
  %v1840 = vadd.f32 %v1778, %v1818
  %v1841 = vadd.f32 %v1781, %v1818
  %v1842 = vadd.f32 %v1784, %v1818
  %v1843 = vadd.f32 %v1787, %v1818
  %v1844 = vadd.f32 %v1790, %v1818
  %v1845 = vadd.f32 %v1793, %v1818
  %v1846 = vadd.f32 %v1796, %v1818
  %v1847 = vadd.f32 %v1799, %v1818
  %v1848 = vadd.f32 %v1802, %v1818
  %v1849 = vadd.f32 %v1805, %v1818
  %v1850 = vadd.f32 %v1808, %v1818
  %vm1851 = vcmp.gt.f32.partialorder %v1819, 20.0
  %vm1852 = vcmp.gt.f32.partialorder %v1820, 20.0
  %vm1853 = vcmp.gt.f32.partialorder %v1821, 20.0
  %vm1854 = vcmp.gt.f32.partialorder %v1822, 20.0
  %vm1855 = vcmp.gt.f32.partialorder %v1823, 20.0
  %vm1856 = vcmp.gt.f32.partialorder %v1824, 20.0
  %vm1857 = vcmp.gt.f32.partialorder %v1825, 20.0
  %vm1858 = vcmp.gt.f32.partialorder %v1826, 20.0
  %vm1859 = vcmp.gt.f32.partialorder %v1827, 20.0
  %vm1860 = vcmp.gt.f32.partialorder %v1828, 20.0
  %vm1861 = vcmp.gt.f32.partialorder %v1829, 20.0
  %vm1862 = vcmp.gt.f32.partialorder %v1830, 20.0
  %vm1863 = vcmp.gt.f32.partialorder %v1831, 20.0
  %vm1864 = vcmp.gt.f32.partialorder %v1832, 20.0
  %vm1865 = vcmp.gt.f32.partialorder %v1833, 20.0
  %vm1866 = vcmp.gt.f32.partialorder %v1834, 20.0
  %vm1867 = vcmp.gt.f32.partialorder %v1835, 20.0
  %vm1868 = vcmp.gt.f32.partialorder %v1836, 20.0
  %vm1869 = vcmp.gt.f32.partialorder %v1837, 20.0
  %vm1870 = vcmp.gt.f32.partialorder %v1838, 20.0
  %vm1871 = vcmp.gt.f32.partialorder %v1839, 20.0
  %vm1872 = vcmp.gt.f32.partialorder %v1840, 20.0
  %vm1873 = vcmp.gt.f32.partialorder %v1841, 20.0
  %vm1874 = vcmp.gt.f32.partialorder %v1842, 20.0
  %vm1875 = vcmp.gt.f32.partialorder %v1843, 20.0
  %vm1876 = vcmp.gt.f32.partialorder %v1844, 20.0
  %vm1877 = vcmp.gt.f32.partialorder %v1845, 20.0
  %vm1878 = vcmp.gt.f32.partialorder %v1846, 20.0
  %vm1879 = vcmp.gt.f32.partialorder %v1847, 20.0
  %vm1880 = vcmp.gt.f32.partialorder %v1848, 20.0
  %vm1881 = vcmp.gt.f32.partialorder %v1849, 20.0
  %vm1882 = vcmp.gt.f32.partialorder %v1850, 20.0
  %v1883 = vmin.f32 %v1819, 20.0
  %v1884 = vmin.f32 %v1820, 20.0
  %v1885 = vmin.f32 %v1821, 20.0
  %v1886 = vmin.f32 %v1822, 20.0
  %v1887 = vmin.f32 %v1823, 20.0
  %v1888 = vmin.f32 %v1824, 20.0
  %v1889 = vmin.f32 %v1825, 20.0
  %v1890 = vmin.f32 %v1826, 20.0
  %v1891 = vmin.f32 %v1827, 20.0
  %v1892 = vmin.f32 %v1828, 20.0
  %v1893 = vmin.f32 %v1829, 20.0
  %v1894 = vmin.f32 %v1830, 20.0
  %v1895 = vmin.f32 %v1831, 20.0
  %v1896 = vmin.f32 %v1832, 20.0
  %v1897 = vmin.f32 %v1833, 20.0
  %v1898 = vmin.f32 %v1834, 20.0
  %v1899 = vmin.f32 %v1835, 20.0
  %v1900 = vmin.f32 %v1836, 20.0
  %v1901 = vmin.f32 %v1837, 20.0
  %v1902 = vmin.f32 %v1838, 20.0
  %v1903 = vmin.f32 %v1839, 20.0
  %v1904 = vmin.f32 %v1840, 20.0
  %v1905 = vmin.f32 %v1841, 20.0
  %v1906 = vmin.f32 %v1842, 20.0
  %v1907 = vmin.f32 %v1843, 20.0
  %v1908 = vmin.f32 %v1844, 20.0
  %v1909 = vmin.f32 %v1845, 20.0
  %v1910 = vmin.f32 %v1846, 20.0
  %v1911 = vmin.f32 %v1847, 20.0
  %v1912 = vmin.f32 %v1848, 20.0
  %v1913 = vmin.f32 %v1849, 20.0
  %v1914 = vmin.f32 %v1850, 20.0
  %v1915 = vmul.f32 %v1883, 1.442695
  %v1916 = vpow.pop %v1915
  %v1917 = vmul.f32 %v1884, 1.442695
  %v1918 = vpow.pop %v1917
  %v1919 = vmul.f32 %v1885, 1.442695
  %v1920 = vpow.pop %v1919
  %v1921 = vmul.f32 %v1886, 1.442695
  %v1922 = vpow.pop %v1921
  %v1923 = vmul.f32 %v1887, 1.442695
  %v1924 = vpow.pop %v1923
  %v1925 = vmul.f32 %v1888, 1.442695
  %v1926 = vpow.pop %v1925
  %v1927 = vmul.f32 %v1889, 1.442695
  %v1928 = vpow.pop %v1927
  %v1929 = vmul.f32 %v1890, 1.442695
  %v1930 = vpow.pop %v1929
  %v1931 = vmul.f32 %v1891, 1.442695
  %v1932 = vpow.pop %v1931
  %v1933 = vmul.f32 %v1892, 1.442695
  %v1934 = vpow.pop %v1933
  %v1935 = vmul.f32 %v1893, 1.442695
  %v1936 = vpow.pop %v1935
  %v1937 = vmul.f32 %v1894, 1.442695
  %v1938 = vpow.pop %v1937
  %v1939 = vmul.f32 %v1895, 1.442695
  %v1940 = vpow.pop %v1939
  %v1941 = vmul.f32 %v1896, 1.442695
  %v1942 = vpow.pop %v1941
  %v1943 = vmul.f32 %v1897, 1.442695
  %v1944 = vpow.pop %v1943
  %v1945 = vmul.f32 %v1898, 1.442695
  %v1946 = vpow.pop %v1945
  %v1947 = vmul.f32 %v1899, 1.442695
  %v1948 = vpow.pop %v1947
  %v1949 = vmul.f32 %v1900, 1.442695
  %v1950 = vpow.pop %v1949
  %v1951 = vmul.f32 %v1901, 1.442695
  %v1952 = vpow.pop %v1951
  %v1953 = vmul.f32 %v1902, 1.442695
  %v1954 = vpow.pop %v1953
  %v1955 = vmul.f32 %v1903, 1.442695
  %v1956 = vpow.pop %v1955
  %v1957 = vmul.f32 %v1904, 1.442695
  %v1958 = vpow.pop %v1957
  %v1959 = vmul.f32 %v1905, 1.442695
  %v1960 = vpow.pop %v1959
  %v1961 = vmul.f32 %v1906, 1.442695
  %v1962 = vpow.pop %v1961
  %v1963 = vmul.f32 %v1907, 1.442695
  %v1964 = vpow.pop %v1963
  %v1965 = vmul.f32 %v1908, 1.442695
  %v1966 = vpow.pop %v1965
  %v1967 = vmul.f32 %v1909, 1.442695
  %v1968 = vpow.pop %v1967
  %v1969 = vmul.f32 %v1910, 1.442695
  %v1970 = vpow.pop %v1969
  %v1971 = vmul.f32 %v1911, 1.442695
  %v1972 = vpow.pop %v1971
  %v1973 = vmul.f32 %v1912, 1.442695
  %v1974 = vpow.pop %v1973
  %v1975 = vmul.f32 %v1913, 1.442695
  %v1976 = vpow.pop %v1975
  %v1977 = vmul.f32 %v1914, 1.442695
  %v1978 = vpow.pop %v1977
  %v1979 = vadd.f32 %v1916, 1.0
  %v1980 = vlog2.pop %v1979
  %v1981 = vmul.f32 %v1980, 0.6931472
  %v1982 = vmul.f32 -0.5, %v1916
  %v1983 = vadd.f32 %v1982, 1.0
  %v1984 = vmul.f32 %v1983, %v1916
  %v1985 = vand.u32 2147483647, %v1916
  %vm1986 = vcmp.lt.f32.partialorder %v1985, 0.0004427343
  %v1987 = vsel %vm1986, %v1984, %v1981
  %v1988 = vadd.f32 %v1918, 1.0
  %v1989 = vlog2.pop %v1988
  %v1990 = vmul.f32 %v1989, 0.6931472
  %v1991 = vmul.f32 -0.5, %v1918
  %v1992 = vadd.f32 %v1991, 1.0
  %v1993 = vmul.f32 %v1992, %v1918
  %v1994 = vand.u32 2147483647, %v1918
  %vm1995 = vcmp.lt.f32.partialorder %v1994, 0.0004427343
  %v1996 = vsel %vm1995, %v1993, %v1990
  %v1997 = vadd.f32 %v1920, 1.0
  %v1998 = vlog2.pop %v1997
  %v1999 = vmul.f32 %v1998, 0.6931472
  %v2000 = vmul.f32 -0.5, %v1920
  %v2001 = vadd.f32 %v2000, 1.0
  %v2002 = vmul.f32 %v2001, %v1920
  %v2003 = vand.u32 2147483647, %v1920
  %vm2004 = vcmp.lt.f32.partialorder %v2003, 0.0004427343
  %v2005 = vsel %vm2004, %v2002, %v1999
  %v2006 = vadd.f32 %v1922, 1.0
  %v2007 = vlog2.pop %v2006
  %v2008 = vmul.f32 %v2007, 0.6931472
  %v2009 = vmul.f32 -0.5, %v1922
  %v2010 = vadd.f32 %v2009, 1.0
  %v2011 = vmul.f32 %v2010, %v1922
  %v2012 = vand.u32 2147483647, %v1922
  %vm2013 = vcmp.lt.f32.partialorder %v2012, 0.0004427343
  %v2014 = vsel %vm2013, %v2011, %v2008
  %v2015 = vadd.f32 %v1924, 1.0
  %v2016 = vlog2.pop %v2015
  %v2017 = vmul.f32 %v2016, 0.6931472
  %v2018 = vmul.f32 -0.5, %v1924
  %v2019 = vadd.f32 %v2018, 1.0
  %v2020 = vmul.f32 %v2019, %v1924
  %v2021 = vand.u32 2147483647, %v1924
  %vm2022 = vcmp.lt.f32.partialorder %v2021, 0.0004427343
  %v2023 = vsel %vm2022, %v2020, %v2017
  %v2024 = vadd.f32 %v1926, 1.0
  %v2025 = vlog2.pop %v2024
  %v2026 = vmul.f32 %v2025, 0.6931472
  %v2027 = vmul.f32 -0.5, %v1926
  %v2028 = vadd.f32 %v2027, 1.0
  %v2029 = vmul.f32 %v2028, %v1926
  %v2030 = vand.u32 2147483647, %v1926
  %vm2031 = vcmp.lt.f32.partialorder %v2030, 0.0004427343
  %v2032 = vsel %vm2031, %v2029, %v2026
  %v2033 = vadd.f32 %v1928, 1.0
  %v2034 = vlog2.pop %v2033
  %v2035 = vmul.f32 %v2034, 0.6931472
  %v2036 = vmul.f32 -0.5, %v1928
  %v2037 = vadd.f32 %v2036, 1.0
  %v2038 = vmul.f32 %v2037, %v1928
  %v2039 = vand.u32 2147483647, %v1928
  %vm2040 = vcmp.lt.f32.partialorder %v2039, 0.0004427343
  %v2041 = vsel %vm2040, %v2038, %v2035
  %v2042 = vadd.f32 %v1930, 1.0
  %v2043 = vlog2.pop %v2042
  %v2044 = vmul.f32 %v2043, 0.6931472
  %v2045 = vmul.f32 -0.5, %v1930
  %v2046 = vadd.f32 %v2045, 1.0
  %v2047 = vmul.f32 %v2046, %v1930
  %v2048 = vand.u32 2147483647, %v1930
  %vm2049 = vcmp.lt.f32.partialorder %v2048, 0.0004427343
  %v2050 = vsel %vm2049, %v2047, %v2044
  %v2051 = vadd.f32 %v1932, 1.0
  %v2052 = vlog2.pop %v2051
  %v2053 = vmul.f32 %v2052, 0.6931472
  %v2054 = vmul.f32 -0.5, %v1932
  %v2055 = vadd.f32 %v2054, 1.0
  %v2056 = vmul.f32 %v2055, %v1932
  %v2057 = vand.u32 2147483647, %v1932
  %vm2058 = vcmp.lt.f32.partialorder %v2057, 0.0004427343
  %v2059 = vsel %vm2058, %v2056, %v2053
  %v2060 = vadd.f32 %v1934, 1.0
  %v2061 = vlog2.pop %v2060
  %v2062 = vmul.f32 %v2061, 0.6931472
  %v2063 = vmul.f32 -0.5, %v1934
  %v2064 = vadd.f32 %v2063, 1.0
  %v2065 = vmul.f32 %v2064, %v1934
  %v2066 = vand.u32 2147483647, %v1934
  %vm2067 = vcmp.lt.f32.partialorder %v2066, 0.0004427343
  %v2068 = vsel %vm2067, %v2065, %v2062
  %v2069 = vadd.f32 %v1936, 1.0
  %v2070 = vlog2.pop %v2069
  %v2071 = vmul.f32 %v2070, 0.6931472
  %v2072 = vmul.f32 -0.5, %v1936
  %v2073 = vadd.f32 %v2072, 1.0
  %v2074 = vmul.f32 %v2073, %v1936
  %v2075 = vand.u32 2147483647, %v1936
  %vm2076 = vcmp.lt.f32.partialorder %v2075, 0.0004427343
  %v2077 = vsel %vm2076, %v2074, %v2071
  %v2078 = vadd.f32 %v1938, 1.0
  %v2079 = vlog2.pop %v2078
  %v2080 = vmul.f32 %v2079, 0.6931472
  %v2081 = vmul.f32 -0.5, %v1938
  %v2082 = vadd.f32 %v2081, 1.0
  %v2083 = vmul.f32 %v2082, %v1938
  %v2084 = vand.u32 2147483647, %v1938
  %vm2085 = vcmp.lt.f32.partialorder %v2084, 0.0004427343
  %v2086 = vsel %vm2085, %v2083, %v2080
  %v2087 = vadd.f32 %v1940, 1.0
  %v2088 = vlog2.pop %v2087
  %v2089 = vmul.f32 %v2088, 0.6931472
  %v2090 = vmul.f32 -0.5, %v1940
  %v2091 = vadd.f32 %v2090, 1.0
  %v2092 = vmul.f32 %v2091, %v1940
  %v2093 = vand.u32 2147483647, %v1940
  %vm2094 = vcmp.lt.f32.partialorder %v2093, 0.0004427343
  %v2095 = vsel %vm2094, %v2092, %v2089
  %v2096 = vadd.f32 %v1942, 1.0
  %v2097 = vlog2.pop %v2096
  %v2098 = vmul.f32 %v2097, 0.6931472
  %v2099 = vmul.f32 -0.5, %v1942
  %v2100 = vadd.f32 %v2099, 1.0
  %v2101 = vmul.f32 %v2100, %v1942
  %v2102 = vand.u32 2147483647, %v1942
  %vm2103 = vcmp.lt.f32.partialorder %v2102, 0.0004427343
  %v2104 = vsel %vm2103, %v2101, %v2098
  %v2105 = vadd.f32 %v1944, 1.0
  %v2106 = vlog2.pop %v2105
  %v2107 = vmul.f32 %v2106, 0.6931472
  %v2108 = vmul.f32 -0.5, %v1944
  %v2109 = vadd.f32 %v2108, 1.0
  %v2110 = vmul.f32 %v2109, %v1944
  %v2111 = vand.u32 2147483647, %v1944
  %vm2112 = vcmp.lt.f32.partialorder %v2111, 0.0004427343
  %v2113 = vsel %vm2112, %v2110, %v2107
  %v2114 = vadd.f32 %v1946, 1.0
  %v2115 = vlog2.pop %v2114
  %v2116 = vmul.f32 %v2115, 0.6931472
  %v2117 = vmul.f32 -0.5, %v1946
  %v2118 = vadd.f32 %v2117, 1.0
  %v2119 = vmul.f32 %v2118, %v1946
  %v2120 = vand.u32 2147483647, %v1946
  %vm2121 = vcmp.lt.f32.partialorder %v2120, 0.0004427343
  %v2122 = vsel %vm2121, %v2119, %v2116
  %v2123 = vadd.f32 %v1948, 1.0
  %v2124 = vlog2.pop %v2123
  %v2125 = vmul.f32 %v2124, 0.6931472
  %v2126 = vmul.f32 -0.5, %v1948
  %v2127 = vadd.f32 %v2126, 1.0
  %v2128 = vmul.f32 %v2127, %v1948
  %v2129 = vand.u32 2147483647, %v1948
  %vm2130 = vcmp.lt.f32.partialorder %v2129, 0.0004427343
  %v2131 = vsel %vm2130, %v2128, %v2125
  %v2132 = vadd.f32 %v1950, 1.0
  %v2133 = vlog2.pop %v2132
  %v2134 = vmul.f32 %v2133, 0.6931472
  %v2135 = vmul.f32 -0.5, %v1950
  %v2136 = vadd.f32 %v2135, 1.0
  %v2137 = vmul.f32 %v2136, %v1950
  %v2138 = vand.u32 2147483647, %v1950
  %vm2139 = vcmp.lt.f32.partialorder %v2138, 0.0004427343
  %v2140 = vsel %vm2139, %v2137, %v2134
  %v2141 = vadd.f32 %v1952, 1.0
  %v2142 = vlog2.pop %v2141
  %v2143 = vmul.f32 %v2142, 0.6931472
  %v2144 = vmul.f32 -0.5, %v1952
  %v2145 = vadd.f32 %v2144, 1.0
  %v2146 = vmul.f32 %v2145, %v1952
  %v2147 = vand.u32 2147483647, %v1952
  %vm2148 = vcmp.lt.f32.partialorder %v2147, 0.0004427343
  %v2149 = vsel %vm2148, %v2146, %v2143
  %v2150 = vadd.f32 %v1954, 1.0
  %v2151 = vlog2.pop %v2150
  %v2152 = vmul.f32 %v2151, 0.6931472
  %v2153 = vmul.f32 -0.5, %v1954
  %v2154 = vadd.f32 %v2153, 1.0
  %v2155 = vmul.f32 %v2154, %v1954
  %v2156 = vand.u32 2147483647, %v1954
  %vm2157 = vcmp.lt.f32.partialorder %v2156, 0.0004427343
  %v2158 = vsel %vm2157, %v2155, %v2152
  %v2159 = vadd.f32 %v1956, 1.0
  %v2160 = vlog2.pop %v2159
  %v2161 = vmul.f32 %v2160, 0.6931472
  %v2162 = vmul.f32 -0.5, %v1956
  %v2163 = vadd.f32 %v2162, 1.0
  %v2164 = vmul.f32 %v2163, %v1956
  %v2165 = vand.u32 2147483647, %v1956
  %vm2166 = vcmp.lt.f32.partialorder %v2165, 0.0004427343
  %v2167 = vsel %vm2166, %v2164, %v2161
  %v2168 = vadd.f32 %v1958, 1.0
  %v2169 = vlog2.pop %v2168
  %v2170 = vmul.f32 %v2169, 0.6931472
  %v2171 = vmul.f32 -0.5, %v1958
  %v2172 = vadd.f32 %v2171, 1.0
  %v2173 = vmul.f32 %v2172, %v1958
  %v2174 = vand.u32 2147483647, %v1958
  %vm2175 = vcmp.lt.f32.partialorder %v2174, 0.0004427343
  %v2176 = vsel %vm2175, %v2173, %v2170
  %v2177 = vadd.f32 %v1960, 1.0
  %v2178 = vlog2.pop %v2177
  %v2179 = vmul.f32 %v2178, 0.6931472
  %v2180 = vmul.f32 -0.5, %v1960
  %v2181 = vadd.f32 %v2180, 1.0
  %v2182 = vmul.f32 %v2181, %v1960
  %v2183 = vand.u32 2147483647, %v1960
  %vm2184 = vcmp.lt.f32.partialorder %v2183, 0.0004427343
  %v2185 = vsel %vm2184, %v2182, %v2179
  %v2186 = vadd.f32 %v1962, 1.0
  %v2187 = vlog2.pop %v2186
  %v2188 = vmul.f32 %v2187, 0.6931472
  %v2189 = vmul.f32 -0.5, %v1962
  %v2190 = vadd.f32 %v2189, 1.0
  %v2191 = vmul.f32 %v2190, %v1962
  %v2192 = vand.u32 2147483647, %v1962
  %vm2193 = vcmp.lt.f32.partialorder %v2192, 0.0004427343
  %v2194 = vsel %vm2193, %v2191, %v2188
  %v2195 = vadd.f32 %v1964, 1.0
  %v2196 = vlog2.pop %v2195
  %v2197 = vmul.f32 %v2196, 0.6931472
  %v2198 = vmul.f32 -0.5, %v1964
  %v2199 = vadd.f32 %v2198, 1.0
  %v2200 = vmul.f32 %v2199, %v1964
  %v2201 = vand.u32 2147483647, %v1964
  %vm2202 = vcmp.lt.f32.partialorder %v2201, 0.0004427343
  %v2203 = vsel %vm2202, %v2200, %v2197
  %v2204 = vadd.f32 %v1966, 1.0
  %v2205 = vlog2.pop %v2204
  %v2206 = vmul.f32 %v2205, 0.6931472
  %v2207 = vmul.f32 -0.5, %v1966
  %v2208 = vadd.f32 %v2207, 1.0
  %v2209 = vmul.f32 %v2208, %v1966
  %v2210 = vand.u32 2147483647, %v1966
  %vm2211 = vcmp.lt.f32.partialorder %v2210, 0.0004427343
  %v2212 = vsel %vm2211, %v2209, %v2206
  %v2213 = vadd.f32 %v1968, 1.0
  %v2214 = vlog2.pop %v2213
  %v2215 = vmul.f32 %v2214, 0.6931472
  %v2216 = vmul.f32 -0.5, %v1968
  %v2217 = vadd.f32 %v2216, 1.0
  %v2218 = vmul.f32 %v2217, %v1968
  %v2219 = vand.u32 2147483647, %v1968
  %vm2220 = vcmp.lt.f32.partialorder %v2219, 0.0004427343
  %v2221 = vsel %vm2220, %v2218, %v2215
  %v2222 = vadd.f32 %v1970, 1.0
  %v2223 = vlog2.pop %v2222
  %v2224 = vmul.f32 %v2223, 0.6931472
  %v2225 = vmul.f32 -0.5, %v1970
  %v2226 = vadd.f32 %v2225, 1.0
  %v2227 = vmul.f32 %v2226, %v1970
  %v2228 = vand.u32 2147483647, %v1970
  %vm2229 = vcmp.lt.f32.partialorder %v2228, 0.0004427343
  %v2230 = vsel %vm2229, %v2227, %v2224
  %v2231 = vadd.f32 %v1972, 1.0
  %v2232 = vlog2.pop %v2231
  %v2233 = vmul.f32 %v2232, 0.6931472
  %v2234 = vmul.f32 -0.5, %v1972
  %v2235 = vadd.f32 %v2234, 1.0
  %v2236 = vmul.f32 %v2235, %v1972
  %v2237 = vand.u32 2147483647, %v1972
  %vm2238 = vcmp.lt.f32.partialorder %v2237, 0.0004427343
  %v2239 = vsel %vm2238, %v2236, %v2233
  %v2240 = vadd.f32 %v1974, 1.0
  %v2241 = vlog2.pop %v2240
  %v2242 = vmul.f32 %v2241, 0.6931472
  %v2243 = vmul.f32 -0.5, %v1974
  %v2244 = vadd.f32 %v2243, 1.0
  %v2245 = vmul.f32 %v2244, %v1974
  %v2246 = vand.u32 2147483647, %v1974
  %vm2247 = vcmp.lt.f32.partialorder %v2246, 0.0004427343
  %v2248 = vsel %vm2247, %v2245, %v2242
  %v2249 = vadd.f32 %v1976, 1.0
  %v2250 = vlog2.pop %v2249
  %v2251 = vmul.f32 %v2250, 0.6931472
  %v2252 = vmul.f32 -0.5, %v1976
  %v2253 = vadd.f32 %v2252, 1.0
  %v2254 = vmul.f32 %v2253, %v1976
  %v2255 = vand.u32 2147483647, %v1976
  %vm2256 = vcmp.lt.f32.partialorder %v2255, 0.0004427343
  %v2257 = vsel %vm2256, %v2254, %v2251
  %v2258 = vadd.f32 %v1978, 1.0
  %v2259 = vlog2.pop %v2258
  %v2260 = vmul.f32 %v2259, 0.6931472
  %v2261 = vmul.f32 -0.5, %v1978
  %v2262 = vadd.f32 %v2261, 1.0
  %v2263 = vmul.f32 %v2262, %v1978
  %v2264 = vand.u32 2147483647, %v1978
  %vm2265 = vcmp.lt.f32.partialorder %v2264, 0.0004427343
  %v2266 = vsel %vm2265, %v2263, %v2260
  %v2267 = vsel %vm1851, %v1819, %v1987
  %v2268 = vsel %vm1852, %v1820, %v1996
  %v2269 = vsel %vm1853, %v1821, %v2005
  %v2270 = vsel %vm1854, %v1822, %v2014
  %v2271 = vsel %vm1855, %v1823, %v2023
  %v2272 = vsel %vm1856, %v1824, %v2032
  %v2273 = vsel %vm1857, %v1825, %v2041
  %v2274 = vsel %vm1858, %v1826, %v2050
  %v2275 = vsel %vm1859, %v1827, %v2059
  %v2276 = vsel %vm1860, %v1828, %v2068
  %v2277 = vsel %vm1861, %v1829, %v2077
  %v2278 = vsel %vm1862, %v1830, %v2086
  %v2279 = vsel %vm1863, %v1831, %v2095
  %v2280 = vsel %vm1864, %v1832, %v2104
  %v2281 = vsel %vm1865, %v1833, %v2113
  %v2282 = vsel %vm1866, %v1834, %v2122
  %v2283 = vsel %vm1867, %v1835, %v2131
  %v2284 = vsel %vm1868, %v1836, %v2140
  %v2285 = vsel %vm1869, %v1837, %v2149
  %v2286 = vsel %vm1870, %v1838, %v2158
  %v2287 = vsel %vm1871, %v1839, %v2167
  %v2288 = vsel %vm1872, %v1840, %v2176
  %v2289 = vsel %vm1873, %v1841, %v2185
  %v2290 = vsel %vm1874, %v1842, %v2194
  %v2291 = vsel %vm1875, %v1843, %v2203
  %v2292 = vsel %vm1876, %v1844, %v2212
  %v2293 = vsel %vm1877, %v1845, %v2221
  %v2294 = vsel %vm1878, %v1846, %v2230
  %v2295 = vsel %vm1879, %v1847, %v2239
  %v2296 = vsel %vm1880, %v1848, %v2248
  %v2297 = vsel %vm1881, %v1849, %v2257
  %v2298 = vsel %vm1882, %v1850, %v2266
  %v2331 = vlaneseq
  %v2332 = vshrl.u32 %v2331, 7
  %v2333 = vsub.s32 0, %v2332
  %v2334 = vrot.slane %v2267, %v2333
  %v2335 = vlaneseq
  %v2336 = vshrl.u32 %v2335, 7
  %v2337 = vsub.s32 1, %v2336
  %v2338 = vrot.slane %v2267, %v2337
  %v2339 = vlaneseq
  %v2340 = vshrl.u32 %v2339, 7
  %v2341 = vsub.s32 2, %v2340
  %v2342 = vrot.slane %v2267, %v2341
  %v2343 = vlaneseq
  %v2344 = vshrl.u32 %v2343, 7
  %v2345 = vsub.s32 3, %v2344
  %v2346 = vrot.slane %v2267, %v2345
  %v2347 = vlaneseq
  %v2348 = vshrl.u32 %v2347, 7
  %v2349 = vsub.s32 4, %v2348
  %v2350 = vrot.slane %v2267, %v2349
  %v2351 = vlaneseq
  %v2352 = vshrl.u32 %v2351, 7
  %v2353 = vsub.s32 5, %v2352
  %v2354 = vrot.slane %v2267, %v2353
  %v2355 = vlaneseq
  %v2356 = vshrl.u32 %v2355, 7
  %v2357 = vsub.s32 6, %v2356
  %v2358 = vrot.slane %v2267, %v2357
  %v2359 = vlaneseq
  %v2360 = vshrl.u32 %v2359, 7
  %v2361 = vsub.s32 7, %v2360
  %v2362 = vrot.slane %v2267, %v2361
  %v2363 = vlaneseq
  %v2364 = vshrl.u32 %v2363, 7
  %v2365 = vsub.s32 0, %v2364
  %v2366 = vrot.slane %v2268, %v2365
  %v2367 = vlaneseq
  %v2368 = vshrl.u32 %v2367, 7
  %v2369 = vsub.s32 1, %v2368
  %v2370 = vrot.slane %v2268, %v2369
  %v2371 = vlaneseq
  %v2372 = vshrl.u32 %v2371, 7
  %v2373 = vsub.s32 2, %v2372
  %v2374 = vrot.slane %v2268, %v2373
  %v2375 = vlaneseq
  %v2376 = vshrl.u32 %v2375, 7
  %v2377 = vsub.s32 3, %v2376
  %v2378 = vrot.slane %v2268, %v2377
  %v2379 = vlaneseq
  %v2380 = vshrl.u32 %v2379, 7
  %v2381 = vsub.s32 4, %v2380
  %v2382 = vrot.slane %v2268, %v2381
  %v2383 = vlaneseq
  %v2384 = vshrl.u32 %v2383, 7
  %v2385 = vsub.s32 5, %v2384
  %v2386 = vrot.slane %v2268, %v2385
  %v2387 = vlaneseq
  %v2388 = vshrl.u32 %v2387, 7
  %v2389 = vsub.s32 6, %v2388
  %v2390 = vrot.slane %v2268, %v2389
  %v2391 = vlaneseq
  %v2392 = vshrl.u32 %v2391, 7
  %v2393 = vsub.s32 7, %v2392
  %v2394 = vrot.slane %v2268, %v2393
  %v2395 = vlaneseq
  %v2396 = vshrl.u32 %v2395, 7
  %v2397 = vsub.s32 0, %v2396
  %v2398 = vrot.slane %v2269, %v2397
  %v2399 = vlaneseq
  %v2400 = vshrl.u32 %v2399, 7
  %v2401 = vsub.s32 1, %v2400
  %v2402 = vrot.slane %v2269, %v2401
  %v2403 = vlaneseq
  %v2404 = vshrl.u32 %v2403, 7
  %v2405 = vsub.s32 2, %v2404
  %v2406 = vrot.slane %v2269, %v2405
  %v2407 = vlaneseq
  %v2408 = vshrl.u32 %v2407, 7
  %v2409 = vsub.s32 3, %v2408
  %v2410 = vrot.slane %v2269, %v2409
  %v2411 = vlaneseq
  %v2412 = vshrl.u32 %v2411, 7
  %v2413 = vsub.s32 4, %v2412
  %v2414 = vrot.slane %v2269, %v2413
  %v2415 = vlaneseq
  %v2416 = vshrl.u32 %v2415, 7
  %v2417 = vsub.s32 5, %v2416
  %v2418 = vrot.slane %v2269, %v2417
  %v2419 = vlaneseq
  %v2420 = vshrl.u32 %v2419, 7
  %v2421 = vsub.s32 6, %v2420
  %v2422 = vrot.slane %v2269, %v2421
  %v2423 = vlaneseq
  %v2424 = vshrl.u32 %v2423, 7
  %v2425 = vsub.s32 7, %v2424
  %v2426 = vrot.slane %v2269, %v2425
  %v2427 = vlaneseq
  %v2428 = vshrl.u32 %v2427, 7
  %v2429 = vsub.s32 0, %v2428
  %v2430 = vrot.slane %v2270, %v2429
  %v2431 = vlaneseq
  %v2432 = vshrl.u32 %v2431, 7
  %v2433 = vsub.s32 1, %v2432
  %v2434 = vrot.slane %v2270, %v2433
  %v2435 = vlaneseq
  %v2436 = vshrl.u32 %v2435, 7
  %v2437 = vsub.s32 2, %v2436
  %v2438 = vrot.slane %v2270, %v2437
  %v2439 = vlaneseq
  %v2440 = vshrl.u32 %v2439, 7
  %v2441 = vsub.s32 3, %v2440
  %v2442 = vrot.slane %v2270, %v2441
  %v2443 = vlaneseq
  %v2444 = vshrl.u32 %v2443, 7
  %v2445 = vsub.s32 4, %v2444
  %v2446 = vrot.slane %v2270, %v2445
  %v2447 = vlaneseq
  %v2448 = vshrl.u32 %v2447, 7
  %v2449 = vsub.s32 5, %v2448
  %v2450 = vrot.slane %v2270, %v2449
  %v2451 = vlaneseq
  %v2452 = vshrl.u32 %v2451, 7
  %v2453 = vsub.s32 6, %v2452
  %v2454 = vrot.slane %v2270, %v2453
  %v2455 = vlaneseq
  %v2456 = vshrl.u32 %v2455, 7
  %v2457 = vsub.s32 7, %v2456
  %v2458 = vrot.slane %v2270, %v2457
  %v2459 = vlaneseq
  %v2460 = vshrl.u32 %v2459, 7
  %v2461 = vsub.s32 0, %v2460
  %v2462 = vrot.slane %v2271, %v2461
  %v2463 = vlaneseq
  %v2464 = vshrl.u32 %v2463, 7
  %v2465 = vsub.s32 1, %v2464
  %v2466 = vrot.slane %v2271, %v2465
  %v2467 = vlaneseq
  %v2468 = vshrl.u32 %v2467, 7
  %v2469 = vsub.s32 2, %v2468
  %v2470 = vrot.slane %v2271, %v2469
  %v2471 = vlaneseq
  %v2472 = vshrl.u32 %v2471, 7
  %v2473 = vsub.s32 3, %v2472
  %v2474 = vrot.slane %v2271, %v2473
  %v2475 = vlaneseq
  %v2476 = vshrl.u32 %v2475, 7
  %v2477 = vsub.s32 4, %v2476
  %v2478 = vrot.slane %v2271, %v2477
  %v2479 = vlaneseq
  %v2480 = vshrl.u32 %v2479, 7
  %v2481 = vsub.s32 5, %v2480
  %v2482 = vrot.slane %v2271, %v2481
  %v2483 = vlaneseq
  %v2484 = vshrl.u32 %v2483, 7
  %v2485 = vsub.s32 6, %v2484
  %v2486 = vrot.slane %v2271, %v2485
  %v2487 = vlaneseq
  %v2488 = vshrl.u32 %v2487, 7
  %v2489 = vsub.s32 7, %v2488
  %v2490 = vrot.slane %v2271, %v2489
  %v2491 = vlaneseq
  %v2492 = vshrl.u32 %v2491, 7
  %v2493 = vsub.s32 0, %v2492
  %v2494 = vrot.slane %v2272, %v2493
  %v2495 = vlaneseq
  %v2496 = vshrl.u32 %v2495, 7
  %v2497 = vsub.s32 1, %v2496
  %v2498 = vrot.slane %v2272, %v2497
  %v2499 = vlaneseq
  %v2500 = vshrl.u32 %v2499, 7
  %v2501 = vsub.s32 2, %v2500
  %v2502 = vrot.slane %v2272, %v2501
  %v2503 = vlaneseq
  %v2504 = vshrl.u32 %v2503, 7
  %v2505 = vsub.s32 3, %v2504
  %v2506 = vrot.slane %v2272, %v2505
  %v2507 = vlaneseq
  %v2508 = vshrl.u32 %v2507, 7
  %v2509 = vsub.s32 4, %v2508
  %v2510 = vrot.slane %v2272, %v2509
  %v2511 = vlaneseq
  %v2512 = vshrl.u32 %v2511, 7
  %v2513 = vsub.s32 5, %v2512
  %v2514 = vrot.slane %v2272, %v2513
  %v2515 = vlaneseq
  %v2516 = vshrl.u32 %v2515, 7
  %v2517 = vsub.s32 6, %v2516
  %v2518 = vrot.slane %v2272, %v2517
  %v2519 = vlaneseq
  %v2520 = vshrl.u32 %v2519, 7
  %v2521 = vsub.s32 7, %v2520
  %v2522 = vrot.slane %v2272, %v2521
  %v2523 = vlaneseq
  %v2524 = vshrl.u32 %v2523, 7
  %v2525 = vsub.s32 0, %v2524
  %v2526 = vrot.slane %v2273, %v2525
  %v2527 = vlaneseq
  %v2528 = vshrl.u32 %v2527, 7
  %v2529 = vsub.s32 1, %v2528
  %v2530 = vrot.slane %v2273, %v2529
  %v2531 = vlaneseq
  %v2532 = vshrl.u32 %v2531, 7
  %v2533 = vsub.s32 2, %v2532
  %v2534 = vrot.slane %v2273, %v2533
  %v2535 = vlaneseq
  %v2536 = vshrl.u32 %v2535, 7
  %v2537 = vsub.s32 3, %v2536
  %v2538 = vrot.slane %v2273, %v2537
  %v2539 = vlaneseq
  %v2540 = vshrl.u32 %v2539, 7
  %v2541 = vsub.s32 4, %v2540
  %v2542 = vrot.slane %v2273, %v2541
  %v2543 = vlaneseq
  %v2544 = vshrl.u32 %v2543, 7
  %v2545 = vsub.s32 5, %v2544
  %v2546 = vrot.slane %v2273, %v2545
  %v2547 = vlaneseq
  %v2548 = vshrl.u32 %v2547, 7
  %v2549 = vsub.s32 6, %v2548
  %v2550 = vrot.slane %v2273, %v2549
  %v2551 = vlaneseq
  %v2552 = vshrl.u32 %v2551, 7
  %v2553 = vsub.s32 7, %v2552
  %v2554 = vrot.slane %v2273, %v2553
  %v2555 = vlaneseq
  %v2556 = vshrl.u32 %v2555, 7
  %v2557 = vsub.s32 0, %v2556
  %v2558 = vrot.slane %v2274, %v2557
  %v2559 = vlaneseq
  %v2560 = vshrl.u32 %v2559, 7
  %v2561 = vsub.s32 1, %v2560
  %v2562 = vrot.slane %v2274, %v2561
  %v2563 = vlaneseq
  %v2564 = vshrl.u32 %v2563, 7
  %v2565 = vsub.s32 2, %v2564
  %v2566 = vrot.slane %v2274, %v2565
  %v2567 = vlaneseq
  %v2568 = vshrl.u32 %v2567, 7
  %v2569 = vsub.s32 3, %v2568
  %v2570 = vrot.slane %v2274, %v2569
  %v2571 = vlaneseq
  %v2572 = vshrl.u32 %v2571, 7
  %v2573 = vsub.s32 4, %v2572
  %v2574 = vrot.slane %v2274, %v2573
  %v2575 = vlaneseq
  %v2576 = vshrl.u32 %v2575, 7
  %v2577 = vsub.s32 5, %v2576
  %v2578 = vrot.slane %v2274, %v2577
  %v2579 = vlaneseq
  %v2580 = vshrl.u32 %v2579, 7
  %v2581 = vsub.s32 6, %v2580
  %v2582 = vrot.slane %v2274, %v2581
  %v2583 = vlaneseq
  %v2584 = vshrl.u32 %v2583, 7
  %v2585 = vsub.s32 7, %v2584
  %v2586 = vrot.slane %v2274, %v2585
  %v2587 = vlaneseq
  %v2588 = vshrl.u32 %v2587, 7
  %v2589 = vsub.s32 0, %v2588
  %v2590 = vrot.slane %v2275, %v2589
  %v2591 = vlaneseq
  %v2592 = vshrl.u32 %v2591, 7
  %v2593 = vsub.s32 1, %v2592
  %v2594 = vrot.slane %v2275, %v2593
  %v2595 = vlaneseq
  %v2596 = vshrl.u32 %v2595, 7
  %v2597 = vsub.s32 2, %v2596
  %v2598 = vrot.slane %v2275, %v2597
  %v2599 = vlaneseq
  %v2600 = vshrl.u32 %v2599, 7
  %v2601 = vsub.s32 3, %v2600
  %v2602 = vrot.slane %v2275, %v2601
  %v2603 = vlaneseq
  %v2604 = vshrl.u32 %v2603, 7
  %v2605 = vsub.s32 4, %v2604
  %v2606 = vrot.slane %v2275, %v2605
  %v2607 = vlaneseq
  %v2608 = vshrl.u32 %v2607, 7
  %v2609 = vsub.s32 5, %v2608
  %v2610 = vrot.slane %v2275, %v2609
  %v2611 = vlaneseq
  %v2612 = vshrl.u32 %v2611, 7
  %v2613 = vsub.s32 6, %v2612
  %v2614 = vrot.slane %v2275, %v2613
  %v2615 = vlaneseq
  %v2616 = vshrl.u32 %v2615, 7
  %v2617 = vsub.s32 7, %v2616
  %v2618 = vrot.slane %v2275, %v2617
  %v2619 = vlaneseq
  %v2620 = vshrl.u32 %v2619, 7
  %v2621 = vsub.s32 0, %v2620
  %v2622 = vrot.slane %v2276, %v2621
  %v2623 = vlaneseq
  %v2624 = vshrl.u32 %v2623, 7
  %v2625 = vsub.s32 1, %v2624
  %v2626 = vrot.slane %v2276, %v2625
  %v2627 = vlaneseq
  %v2628 = vshrl.u32 %v2627, 7
  %v2629 = vsub.s32 2, %v2628
  %v2630 = vrot.slane %v2276, %v2629
  %v2631 = vlaneseq
  %v2632 = vshrl.u32 %v2631, 7
  %v2633 = vsub.s32 3, %v2632
  %v2634 = vrot.slane %v2276, %v2633
  %v2635 = vlaneseq
  %v2636 = vshrl.u32 %v2635, 7
  %v2637 = vsub.s32 4, %v2636
  %v2638 = vrot.slane %v2276, %v2637
  %v2639 = vlaneseq
  %v2640 = vshrl.u32 %v2639, 7
  %v2641 = vsub.s32 5, %v2640
  %v2642 = vrot.slane %v2276, %v2641
  %v2643 = vlaneseq
  %v2644 = vshrl.u32 %v2643, 7
  %v2645 = vsub.s32 6, %v2644
  %v2646 = vrot.slane %v2276, %v2645
  %v2647 = vlaneseq
  %v2648 = vshrl.u32 %v2647, 7
  %v2649 = vsub.s32 7, %v2648
  %v2650 = vrot.slane %v2276, %v2649
  %v2651 = vlaneseq
  %v2652 = vshrl.u32 %v2651, 7
  %v2653 = vsub.s32 0, %v2652
  %v2654 = vrot.slane %v2277, %v2653
  %v2655 = vlaneseq
  %v2656 = vshrl.u32 %v2655, 7
  %v2657 = vsub.s32 1, %v2656
  %v2658 = vrot.slane %v2277, %v2657
  %v2659 = vlaneseq
  %v2660 = vshrl.u32 %v2659, 7
  %v2661 = vsub.s32 2, %v2660
  %v2662 = vrot.slane %v2277, %v2661
  %v2663 = vlaneseq
  %v2664 = vshrl.u32 %v2663, 7
  %v2665 = vsub.s32 3, %v2664
  %v2666 = vrot.slane %v2277, %v2665
  %v2667 = vlaneseq
  %v2668 = vshrl.u32 %v2667, 7
  %v2669 = vsub.s32 4, %v2668
  %v2670 = vrot.slane %v2277, %v2669
  %v2671 = vlaneseq
  %v2672 = vshrl.u32 %v2671, 7
  %v2673 = vsub.s32 5, %v2672
  %v2674 = vrot.slane %v2277, %v2673
  %v2675 = vlaneseq
  %v2676 = vshrl.u32 %v2675, 7
  %v2677 = vsub.s32 6, %v2676
  %v2678 = vrot.slane %v2277, %v2677
  %v2679 = vlaneseq
  %v2680 = vshrl.u32 %v2679, 7
  %v2681 = vsub.s32 7, %v2680
  %v2682 = vrot.slane %v2277, %v2681
  %v2683 = vlaneseq
  %v2684 = vshrl.u32 %v2683, 7
  %v2685 = vsub.s32 0, %v2684
  %v2686 = vrot.slane %v2278, %v2685
  %v2687 = vlaneseq
  %v2688 = vshrl.u32 %v2687, 7
  %v2689 = vsub.s32 1, %v2688
  %v2690 = vrot.slane %v2278, %v2689
  %v2691 = vlaneseq
  %v2692 = vshrl.u32 %v2691, 7
  %v2693 = vsub.s32 2, %v2692
  %v2694 = vrot.slane %v2278, %v2693
  %v2695 = vlaneseq
  %v2696 = vshrl.u32 %v2695, 7
  %v2697 = vsub.s32 3, %v2696
  %v2698 = vrot.slane %v2278, %v2697
  %v2699 = vlaneseq
  %v2700 = vshrl.u32 %v2699, 7
  %v2701 = vsub.s32 4, %v2700
  %v2702 = vrot.slane %v2278, %v2701
  %v2703 = vlaneseq
  %v2704 = vshrl.u32 %v2703, 7
  %v2705 = vsub.s32 5, %v2704
  %v2706 = vrot.slane %v2278, %v2705
  %v2707 = vlaneseq
  %v2708 = vshrl.u32 %v2707, 7
  %v2709 = vsub.s32 6, %v2708
  %v2710 = vrot.slane %v2278, %v2709
  %v2711 = vlaneseq
  %v2712 = vshrl.u32 %v2711, 7
  %v2713 = vsub.s32 7, %v2712
  %v2714 = vrot.slane %v2278, %v2713
  %v2715 = vlaneseq
  %v2716 = vshrl.u32 %v2715, 7
  %v2717 = vsub.s32 0, %v2716
  %v2718 = vrot.slane %v2279, %v2717
  %v2719 = vlaneseq
  %v2720 = vshrl.u32 %v2719, 7
  %v2721 = vsub.s32 1, %v2720
  %v2722 = vrot.slane %v2279, %v2721
  %v2723 = vlaneseq
  %v2724 = vshrl.u32 %v2723, 7
  %v2725 = vsub.s32 2, %v2724
  %v2726 = vrot.slane %v2279, %v2725
  %v2727 = vlaneseq
  %v2728 = vshrl.u32 %v2727, 7
  %v2729 = vsub.s32 3, %v2728
  %v2730 = vrot.slane %v2279, %v2729
  %v2731 = vlaneseq
  %v2732 = vshrl.u32 %v2731, 7
  %v2733 = vsub.s32 4, %v2732
  %v2734 = vrot.slane %v2279, %v2733
  %v2735 = vlaneseq
  %v2736 = vshrl.u32 %v2735, 7
  %v2737 = vsub.s32 5, %v2736
  %v2738 = vrot.slane %v2279, %v2737
  %v2739 = vlaneseq
  %v2740 = vshrl.u32 %v2739, 7
  %v2741 = vsub.s32 6, %v2740
  %v2742 = vrot.slane %v2279, %v2741
  %v2743 = vlaneseq
  %v2744 = vshrl.u32 %v2743, 7
  %v2745 = vsub.s32 7, %v2744
  %v2746 = vrot.slane %v2279, %v2745
  %v2747 = vlaneseq
  %v2748 = vshrl.u32 %v2747, 7
  %v2749 = vsub.s32 0, %v2748
  %v2750 = vrot.slane %v2280, %v2749
  %v2751 = vlaneseq
  %v2752 = vshrl.u32 %v2751, 7
  %v2753 = vsub.s32 1, %v2752
  %v2754 = vrot.slane %v2280, %v2753
  %v2755 = vlaneseq
  %v2756 = vshrl.u32 %v2755, 7
  %v2757 = vsub.s32 2, %v2756
  %v2758 = vrot.slane %v2280, %v2757
  %v2759 = vlaneseq
  %v2760 = vshrl.u32 %v2759, 7
  %v2761 = vsub.s32 3, %v2760
  %v2762 = vrot.slane %v2280, %v2761
  %v2763 = vlaneseq
  %v2764 = vshrl.u32 %v2763, 7
  %v2765 = vsub.s32 4, %v2764
  %v2766 = vrot.slane %v2280, %v2765
  %v2767 = vlaneseq
  %v2768 = vshrl.u32 %v2767, 7
  %v2769 = vsub.s32 5, %v2768
  %v2770 = vrot.slane %v2280, %v2769
  %v2771 = vlaneseq
  %v2772 = vshrl.u32 %v2771, 7
  %v2773 = vsub.s32 6, %v2772
  %v2774 = vrot.slane %v2280, %v2773
  %v2775 = vlaneseq
  %v2776 = vshrl.u32 %v2775, 7
  %v2777 = vsub.s32 7, %v2776
  %v2778 = vrot.slane %v2280, %v2777
  %v2779 = vlaneseq
  %v2780 = vshrl.u32 %v2779, 7
  %v2781 = vsub.s32 0, %v2780
  %v2782 = vrot.slane %v2281, %v2781
  %v2783 = vlaneseq
  %v2784 = vshrl.u32 %v2783, 7
  %v2785 = vsub.s32 1, %v2784
  %v2786 = vrot.slane %v2281, %v2785
  %v2787 = vlaneseq
  %v2788 = vshrl.u32 %v2787, 7
  %v2789 = vsub.s32 2, %v2788
  %v2790 = vrot.slane %v2281, %v2789
  %v2791 = vlaneseq
  %v2792 = vshrl.u32 %v2791, 7
  %v2793 = vsub.s32 3, %v2792
  %v2794 = vrot.slane %v2281, %v2793
  %v2795 = vlaneseq
  %v2796 = vshrl.u32 %v2795, 7
  %v2797 = vsub.s32 4, %v2796
  %v2798 = vrot.slane %v2281, %v2797
  %v2799 = vlaneseq
  %v2800 = vshrl.u32 %v2799, 7
  %v2801 = vsub.s32 5, %v2800
  %v2802 = vrot.slane %v2281, %v2801
  %v2803 = vlaneseq
  %v2804 = vshrl.u32 %v2803, 7
  %v2805 = vsub.s32 6, %v2804
  %v2806 = vrot.slane %v2281, %v2805
  %v2807 = vlaneseq
  %v2808 = vshrl.u32 %v2807, 7
  %v2809 = vsub.s32 7, %v2808
  %v2810 = vrot.slane %v2281, %v2809
  %v2811 = vlaneseq
  %v2812 = vshrl.u32 %v2811, 7
  %v2813 = vsub.s32 0, %v2812
  %v2814 = vrot.slane %v2282, %v2813
  %v2815 = vlaneseq
  %v2816 = vshrl.u32 %v2815, 7
  %v2817 = vsub.s32 1, %v2816
  %v2818 = vrot.slane %v2282, %v2817
  %v2819 = vlaneseq
  %v2820 = vshrl.u32 %v2819, 7
  %v2821 = vsub.s32 2, %v2820
  %v2822 = vrot.slane %v2282, %v2821
  %v2823 = vlaneseq
  %v2824 = vshrl.u32 %v2823, 7
  %v2825 = vsub.s32 3, %v2824
  %v2826 = vrot.slane %v2282, %v2825
  %v2827 = vlaneseq
  %v2828 = vshrl.u32 %v2827, 7
  %v2829 = vsub.s32 4, %v2828
  %v2830 = vrot.slane %v2282, %v2829
  %v2831 = vlaneseq
  %v2832 = vshrl.u32 %v2831, 7
  %v2833 = vsub.s32 5, %v2832
  %v2834 = vrot.slane %v2282, %v2833
  %v2835 = vlaneseq
  %v2836 = vshrl.u32 %v2835, 7
  %v2837 = vsub.s32 6, %v2836
  %v2838 = vrot.slane %v2282, %v2837
  %v2839 = vlaneseq
  %v2840 = vshrl.u32 %v2839, 7
  %v2841 = vsub.s32 7, %v2840
  %v2842 = vrot.slane %v2282, %v2841
  %v2843 = vlaneseq
  %v2844 = vshrl.u32 %v2843, 7
  %v2845 = vsub.s32 0, %v2844
  %v2846 = vrot.slane %v2283, %v2845
  %v2847 = vlaneseq
  %v2848 = vshrl.u32 %v2847, 7
  %v2849 = vsub.s32 1, %v2848
  %v2850 = vrot.slane %v2283, %v2849
  %v2851 = vlaneseq
  %v2852 = vshrl.u32 %v2851, 7
  %v2853 = vsub.s32 2, %v2852
  %v2854 = vrot.slane %v2283, %v2853
  %v2855 = vlaneseq
  %v2856 = vshrl.u32 %v2855, 7
  %v2857 = vsub.s32 3, %v2856
  %v2858 = vrot.slane %v2283, %v2857
  %v2859 = vlaneseq
  %v2860 = vshrl.u32 %v2859, 7
  %v2861 = vsub.s32 4, %v2860
  %v2862 = vrot.slane %v2283, %v2861
  %v2863 = vlaneseq
  %v2864 = vshrl.u32 %v2863, 7
  %v2865 = vsub.s32 5, %v2864
  %v2866 = vrot.slane %v2283, %v2865
  %v2867 = vlaneseq
  %v2868 = vshrl.u32 %v2867, 7
  %v2869 = vsub.s32 6, %v2868
  %v2870 = vrot.slane %v2283, %v2869
  %v2871 = vlaneseq
  %v2872 = vshrl.u32 %v2871, 7
  %v2873 = vsub.s32 7, %v2872
  %v2874 = vrot.slane %v2283, %v2873
  %v2875 = vlaneseq
  %v2876 = vshrl.u32 %v2875, 7
  %v2877 = vsub.s32 0, %v2876
  %v2878 = vrot.slane %v2284, %v2877
  %v2879 = vlaneseq
  %v2880 = vshrl.u32 %v2879, 7
  %v2881 = vsub.s32 1, %v2880
  %v2882 = vrot.slane %v2284, %v2881
  %v2883 = vlaneseq
  %v2884 = vshrl.u32 %v2883, 7
  %v2885 = vsub.s32 2, %v2884
  %v2886 = vrot.slane %v2284, %v2885
  %v2887 = vlaneseq
  %v2888 = vshrl.u32 %v2887, 7
  %v2889 = vsub.s32 3, %v2888
  %v2890 = vrot.slane %v2284, %v2889
  %v2891 = vlaneseq
  %v2892 = vshrl.u32 %v2891, 7
  %v2893 = vsub.s32 4, %v2892
  %v2894 = vrot.slane %v2284, %v2893
  %v2895 = vlaneseq
  %v2896 = vshrl.u32 %v2895, 7
  %v2897 = vsub.s32 5, %v2896
  %v2898 = vrot.slane %v2284, %v2897
  %v2899 = vlaneseq
  %v2900 = vshrl.u32 %v2899, 7
  %v2901 = vsub.s32 6, %v2900
  %v2902 = vrot.slane %v2284, %v2901
  %v2903 = vlaneseq
  %v2904 = vshrl.u32 %v2903, 7
  %v2905 = vsub.s32 7, %v2904
  %v2906 = vrot.slane %v2284, %v2905
  %v2907 = vlaneseq
  %v2908 = vshrl.u32 %v2907, 7
  %v2909 = vsub.s32 0, %v2908
  %v2910 = vrot.slane %v2285, %v2909
  %v2911 = vlaneseq
  %v2912 = vshrl.u32 %v2911, 7
  %v2913 = vsub.s32 1, %v2912
  %v2914 = vrot.slane %v2285, %v2913
  %v2915 = vlaneseq
  %v2916 = vshrl.u32 %v2915, 7
  %v2917 = vsub.s32 2, %v2916
  %v2918 = vrot.slane %v2285, %v2917
  %v2919 = vlaneseq
  %v2920 = vshrl.u32 %v2919, 7
  %v2921 = vsub.s32 3, %v2920
  %v2922 = vrot.slane %v2285, %v2921
  %v2923 = vlaneseq
  %v2924 = vshrl.u32 %v2923, 7
  %v2925 = vsub.s32 4, %v2924
  %v2926 = vrot.slane %v2285, %v2925
  %v2927 = vlaneseq
  %v2928 = vshrl.u32 %v2927, 7
  %v2929 = vsub.s32 5, %v2928
  %v2930 = vrot.slane %v2285, %v2929
  %v2931 = vlaneseq
  %v2932 = vshrl.u32 %v2931, 7
  %v2933 = vsub.s32 6, %v2932
  %v2934 = vrot.slane %v2285, %v2933
  %v2935 = vlaneseq
  %v2936 = vshrl.u32 %v2935, 7
  %v2937 = vsub.s32 7, %v2936
  %v2938 = vrot.slane %v2285, %v2937
  %v2939 = vlaneseq
  %v2940 = vshrl.u32 %v2939, 7
  %v2941 = vsub.s32 0, %v2940
  %v2942 = vrot.slane %v2286, %v2941
  %v2943 = vlaneseq
  %v2944 = vshrl.u32 %v2943, 7
  %v2945 = vsub.s32 1, %v2944
  %v2946 = vrot.slane %v2286, %v2945
  %v2947 = vlaneseq
  %v2948 = vshrl.u32 %v2947, 7
  %v2949 = vsub.s32 2, %v2948
  %v2950 = vrot.slane %v2286, %v2949
  %v2951 = vlaneseq
  %v2952 = vshrl.u32 %v2951, 7
  %v2953 = vsub.s32 3, %v2952
  %v2954 = vrot.slane %v2286, %v2953
  %v2955 = vlaneseq
  %v2956 = vshrl.u32 %v2955, 7
  %v2957 = vsub.s32 4, %v2956
  %v2958 = vrot.slane %v2286, %v2957
  %v2959 = vlaneseq
  %v2960 = vshrl.u32 %v2959, 7
  %v2961 = vsub.s32 5, %v2960
  %v2962 = vrot.slane %v2286, %v2961
  %v2963 = vlaneseq
  %v2964 = vshrl.u32 %v2963, 7
  %v2965 = vsub.s32 6, %v2964
  %v2966 = vrot.slane %v2286, %v2965
  %v2967 = vlaneseq
  %v2968 = vshrl.u32 %v2967, 7
  %v2969 = vsub.s32 7, %v2968
  %v2970 = vrot.slane %v2286, %v2969
  %v2971 = vlaneseq
  %v2972 = vshrl.u32 %v2971, 7
  %v2973 = vsub.s32 0, %v2972
  %v2974 = vrot.slane %v2287, %v2973
  %v2975 = vlaneseq
  %v2976 = vshrl.u32 %v2975, 7
  %v2977 = vsub.s32 1, %v2976
  %v2978 = vrot.slane %v2287, %v2977
  %v2979 = vlaneseq
  %v2980 = vshrl.u32 %v2979, 7
  %v2981 = vsub.s32 2, %v2980
  %v2982 = vrot.slane %v2287, %v2981
  %v2983 = vlaneseq
  %v2984 = vshrl.u32 %v2983, 7
  %v2985 = vsub.s32 3, %v2984
  %v2986 = vrot.slane %v2287, %v2985
  %v2987 = vlaneseq
  %v2988 = vshrl.u32 %v2987, 7
  %v2989 = vsub.s32 4, %v2988
  %v2990 = vrot.slane %v2287, %v2989
  %v2991 = vlaneseq
  %v2992 = vshrl.u32 %v2991, 7
  %v2993 = vsub.s32 5, %v2992
  %v2994 = vrot.slane %v2287, %v2993
  %v2995 = vlaneseq
  %v2996 = vshrl.u32 %v2995, 7
  %v2997 = vsub.s32 6, %v2996
  %v2998 = vrot.slane %v2287, %v2997
  %v2999 = vlaneseq
  %v3000 = vshrl.u32 %v2999, 7
  %v3001 = vsub.s32 7, %v3000
  %v3002 = vrot.slane %v2287, %v3001
  %v3003 = vlaneseq
  %v3004 = vshrl.u32 %v3003, 7
  %v3005 = vsub.s32 0, %v3004
  %v3006 = vrot.slane %v2288, %v3005
  %v3007 = vlaneseq
  %v3008 = vshrl.u32 %v3007, 7
  %v3009 = vsub.s32 1, %v3008
  %v3010 = vrot.slane %v2288, %v3009
  %v3011 = vlaneseq
  %v3012 = vshrl.u32 %v3011, 7
  %v3013 = vsub.s32 2, %v3012
  %v3014 = vrot.slane %v2288, %v3013
  %v3015 = vlaneseq
  %v3016 = vshrl.u32 %v3015, 7
  %v3017 = vsub.s32 3, %v3016
  %v3018 = vrot.slane %v2288, %v3017
  %v3019 = vlaneseq
  %v3020 = vshrl.u32 %v3019, 7
  %v3021 = vsub.s32 4, %v3020
  %v3022 = vrot.slane %v2288, %v3021
  %v3023 = vlaneseq
  %v3024 = vshrl.u32 %v3023, 7
  %v3025 = vsub.s32 5, %v3024
  %v3026 = vrot.slane %v2288, %v3025
  %v3027 = vlaneseq
  %v3028 = vshrl.u32 %v3027, 7
  %v3029 = vsub.s32 6, %v3028
  %v3030 = vrot.slane %v2288, %v3029
  %v3031 = vlaneseq
  %v3032 = vshrl.u32 %v3031, 7
  %v3033 = vsub.s32 7, %v3032
  %v3034 = vrot.slane %v2288, %v3033
  %v3035 = vlaneseq
  %v3036 = vshrl.u32 %v3035, 7
  %v3037 = vsub.s32 0, %v3036
  %v3038 = vrot.slane %v2289, %v3037
  %v3039 = vlaneseq
  %v3040 = vshrl.u32 %v3039, 7
  %v3041 = vsub.s32 1, %v3040
  %v3042 = vrot.slane %v2289, %v3041
  %v3043 = vlaneseq
  %v3044 = vshrl.u32 %v3043, 7
  %v3045 = vsub.s32 2, %v3044
  %v3046 = vrot.slane %v2289, %v3045
  %v3047 = vlaneseq
  %v3048 = vshrl.u32 %v3047, 7
  %v3049 = vsub.s32 3, %v3048
  %v3050 = vrot.slane %v2289, %v3049
  %v3051 = vlaneseq
  %v3052 = vshrl.u32 %v3051, 7
  %v3053 = vsub.s32 4, %v3052
  %v3054 = vrot.slane %v2289, %v3053
  %v3055 = vlaneseq
  %v3056 = vshrl.u32 %v3055, 7
  %v3057 = vsub.s32 5, %v3056
  %v3058 = vrot.slane %v2289, %v3057
  %v3059 = vlaneseq
  %v3060 = vshrl.u32 %v3059, 7
  %v3061 = vsub.s32 6, %v3060
  %v3062 = vrot.slane %v2289, %v3061
  %v3063 = vlaneseq
  %v3064 = vshrl.u32 %v3063, 7
  %v3065 = vsub.s32 7, %v3064
  %v3066 = vrot.slane %v2289, %v3065
  %v3067 = vlaneseq
  %v3068 = vshrl.u32 %v3067, 7
  %v3069 = vsub.s32 0, %v3068
  %v3070 = vrot.slane %v2290, %v3069
  %v3071 = vlaneseq
  %v3072 = vshrl.u32 %v3071, 7
  %v3073 = vsub.s32 1, %v3072
  %v3074 = vrot.slane %v2290, %v3073
  %v3075 = vlaneseq
  %v3076 = vshrl.u32 %v3075, 7
  %v3077 = vsub.s32 2, %v3076
  %v3078 = vrot.slane %v2290, %v3077
  %v3079 = vlaneseq
  %v3080 = vshrl.u32 %v3079, 7
  %v3081 = vsub.s32 3, %v3080
  %v3082 = vrot.slane %v2290, %v3081
  %v3083 = vlaneseq
  %v3084 = vshrl.u32 %v3083, 7
  %v3085 = vsub.s32 4, %v3084
  %v3086 = vrot.slane %v2290, %v3085
  %v3087 = vlaneseq
  %v3088 = vshrl.u32 %v3087, 7
  %v3089 = vsub.s32 5, %v3088
  %v3090 = vrot.slane %v2290, %v3089
  %v3091 = vlaneseq
  %v3092 = vshrl.u32 %v3091, 7
  %v3093 = vsub.s32 6, %v3092
  %v3094 = vrot.slane %v2290, %v3093
  %v3095 = vlaneseq
  %v3096 = vshrl.u32 %v3095, 7
  %v3097 = vsub.s32 7, %v3096
  %v3098 = vrot.slane %v2290, %v3097
  %v3099 = vlaneseq
  %v3100 = vshrl.u32 %v3099, 7
  %v3101 = vsub.s32 0, %v3100
  %v3102 = vrot.slane %v2291, %v3101
  %v3103 = vlaneseq
  %v3104 = vshrl.u32 %v3103, 7
  %v3105 = vsub.s32 1, %v3104
  %v3106 = vrot.slane %v2291, %v3105
  %v3107 = vlaneseq
  %v3108 = vshrl.u32 %v3107, 7
  %v3109 = vsub.s32 2, %v3108
  %v3110 = vrot.slane %v2291, %v3109
  %v3111 = vlaneseq
  %v3112 = vshrl.u32 %v3111, 7
  %v3113 = vsub.s32 3, %v3112
  %v3114 = vrot.slane %v2291, %v3113
  %v3115 = vlaneseq
  %v3116 = vshrl.u32 %v3115, 7
  %v3117 = vsub.s32 4, %v3116
  %v3118 = vrot.slane %v2291, %v3117
  %v3119 = vlaneseq
  %v3120 = vshrl.u32 %v3119, 7
  %v3121 = vsub.s32 5, %v3120
  %v3122 = vrot.slane %v2291, %v3121
  %v3123 = vlaneseq
  %v3124 = vshrl.u32 %v3123, 7
  %v3125 = vsub.s32 6, %v3124
  %v3126 = vrot.slane %v2291, %v3125
  %v3127 = vlaneseq
  %v3128 = vshrl.u32 %v3127, 7
  %v3129 = vsub.s32 7, %v3128
  %v3130 = vrot.slane %v2291, %v3129
  %v3131 = vlaneseq
  %v3132 = vshrl.u32 %v3131, 7
  %v3133 = vsub.s32 0, %v3132
  %v3134 = vrot.slane %v2292, %v3133
  %v3135 = vlaneseq
  %v3136 = vshrl.u32 %v3135, 7
  %v3137 = vsub.s32 1, %v3136
  %v3138 = vrot.slane %v2292, %v3137
  %v3139 = vlaneseq
  %v3140 = vshrl.u32 %v3139, 7
  %v3141 = vsub.s32 2, %v3140
  %v3142 = vrot.slane %v2292, %v3141
  %v3143 = vlaneseq
  %v3144 = vshrl.u32 %v3143, 7
  %v3145 = vsub.s32 3, %v3144
  %v3146 = vrot.slane %v2292, %v3145
  %v3147 = vlaneseq
  %v3148 = vshrl.u32 %v3147, 7
  %v3149 = vsub.s32 4, %v3148
  %v3150 = vrot.slane %v2292, %v3149
  %v3151 = vlaneseq
  %v3152 = vshrl.u32 %v3151, 7
  %v3153 = vsub.s32 5, %v3152
  %v3154 = vrot.slane %v2292, %v3153
  %v3155 = vlaneseq
  %v3156 = vshrl.u32 %v3155, 7
  %v3157 = vsub.s32 6, %v3156
  %v3158 = vrot.slane %v2292, %v3157
  %v3159 = vlaneseq
  %v3160 = vshrl.u32 %v3159, 7
  %v3161 = vsub.s32 7, %v3160
  %v3162 = vrot.slane %v2292, %v3161
  %v3163 = vlaneseq
  %v3164 = vshrl.u32 %v3163, 7
  %v3165 = vsub.s32 0, %v3164
  %v3166 = vrot.slane %v2293, %v3165
  %v3167 = vlaneseq
  %v3168 = vshrl.u32 %v3167, 7
  %v3169 = vsub.s32 1, %v3168
  %v3170 = vrot.slane %v2293, %v3169
  %v3171 = vlaneseq
  %v3172 = vshrl.u32 %v3171, 7
  %v3173 = vsub.s32 2, %v3172
  %v3174 = vrot.slane %v2293, %v3173
  %v3175 = vlaneseq
  %v3176 = vshrl.u32 %v3175, 7
  %v3177 = vsub.s32 3, %v3176
  %v3178 = vrot.slane %v2293, %v3177
  %v3179 = vlaneseq
  %v3180 = vshrl.u32 %v3179, 7
  %v3181 = vsub.s32 4, %v3180
  %v3182 = vrot.slane %v2293, %v3181
  %v3183 = vlaneseq
  %v3184 = vshrl.u32 %v3183, 7
  %v3185 = vsub.s32 5, %v3184
  %v3186 = vrot.slane %v2293, %v3185
  %v3187 = vlaneseq
  %v3188 = vshrl.u32 %v3187, 7
  %v3189 = vsub.s32 6, %v3188
  %v3190 = vrot.slane %v2293, %v3189
  %v3191 = vlaneseq
  %v3192 = vshrl.u32 %v3191, 7
  %v3193 = vsub.s32 7, %v3192
  %v3194 = vrot.slane %v2293, %v3193
  %v3195 = vlaneseq
  %v3196 = vshrl.u32 %v3195, 7
  %v3197 = vsub.s32 0, %v3196
  %v3198 = vrot.slane %v2294, %v3197
  %v3199 = vlaneseq
  %v3200 = vshrl.u32 %v3199, 7
  %v3201 = vsub.s32 1, %v3200
  %v3202 = vrot.slane %v2294, %v3201
  %v3203 = vlaneseq
  %v3204 = vshrl.u32 %v3203, 7
  %v3205 = vsub.s32 2, %v3204
  %v3206 = vrot.slane %v2294, %v3205
  %v3207 = vlaneseq
  %v3208 = vshrl.u32 %v3207, 7
  %v3209 = vsub.s32 3, %v3208
  %v3210 = vrot.slane %v2294, %v3209
  %v3211 = vlaneseq
  %v3212 = vshrl.u32 %v3211, 7
  %v3213 = vsub.s32 4, %v3212
  %v3214 = vrot.slane %v2294, %v3213
  %v3215 = vlaneseq
  %v3216 = vshrl.u32 %v3215, 7
  %v3217 = vsub.s32 5, %v3216
  %v3218 = vrot.slane %v2294, %v3217
  %v3219 = vlaneseq
  %v3220 = vshrl.u32 %v3219, 7
  %v3221 = vsub.s32 6, %v3220
  %v3222 = vrot.slane %v2294, %v3221
  %v3223 = vlaneseq
  %v3224 = vshrl.u32 %v3223, 7
  %v3225 = vsub.s32 7, %v3224
  %v3226 = vrot.slane %v2294, %v3225
  %v3227 = vlaneseq
  %v3228 = vshrl.u32 %v3227, 7
  %v3229 = vsub.s32 0, %v3228
  %v3230 = vrot.slane %v2295, %v3229
  %v3231 = vlaneseq
  %v3232 = vshrl.u32 %v3231, 7
  %v3233 = vsub.s32 1, %v3232
  %v3234 = vrot.slane %v2295, %v3233
  %v3235 = vlaneseq
  %v3236 = vshrl.u32 %v3235, 7
  %v3237 = vsub.s32 2, %v3236
  %v3238 = vrot.slane %v2295, %v3237
  %v3239 = vlaneseq
  %v3240 = vshrl.u32 %v3239, 7
  %v3241 = vsub.s32 3, %v3240
  %v3242 = vrot.slane %v2295, %v3241
  %v3243 = vlaneseq
  %v3244 = vshrl.u32 %v3243, 7
  %v3245 = vsub.s32 4, %v3244
  %v3246 = vrot.slane %v2295, %v3245
  %v3247 = vlaneseq
  %v3248 = vshrl.u32 %v3247, 7
  %v3249 = vsub.s32 5, %v3248
  %v3250 = vrot.slane %v2295, %v3249
  %v3251 = vlaneseq
  %v3252 = vshrl.u32 %v3251, 7
  %v3253 = vsub.s32 6, %v3252
  %v3254 = vrot.slane %v2295, %v3253
  %v3255 = vlaneseq
  %v3256 = vshrl.u32 %v3255, 7
  %v3257 = vsub.s32 7, %v3256
  %v3258 = vrot.slane %v2295, %v3257
  %v3259 = vlaneseq
  %v3260 = vshrl.u32 %v3259, 7
  %v3261 = vsub.s32 0, %v3260
  %v3262 = vrot.slane %v2296, %v3261
  %v3263 = vlaneseq
  %v3264 = vshrl.u32 %v3263, 7
  %v3265 = vsub.s32 1, %v3264
  %v3266 = vrot.slane %v2296, %v3265
  %v3267 = vlaneseq
  %v3268 = vshrl.u32 %v3267, 7
  %v3269 = vsub.s32 2, %v3268
  %v3270 = vrot.slane %v2296, %v3269
  %v3271 = vlaneseq
  %v3272 = vshrl.u32 %v3271, 7
  %v3273 = vsub.s32 3, %v3272
  %v3274 = vrot.slane %v2296, %v3273
  %v3275 = vlaneseq
  %v3276 = vshrl.u32 %v3275, 7
  %v3277 = vsub.s32 4, %v3276
  %v3278 = vrot.slane %v2296, %v3277
  %v3279 = vlaneseq
  %v3280 = vshrl.u32 %v3279, 7
  %v3281 = vsub.s32 5, %v3280
  %v3282 = vrot.slane %v2296, %v3281
  %v3283 = vlaneseq
  %v3284 = vshrl.u32 %v3283, 7
  %v3285 = vsub.s32 6, %v3284
  %v3286 = vrot.slane %v2296, %v3285
  %v3287 = vlaneseq
  %v3288 = vshrl.u32 %v3287, 7
  %v3289 = vsub.s32 7, %v3288
  %v3290 = vrot.slane %v2296, %v3289
  %v3291 = vlaneseq
  %v3292 = vshrl.u32 %v3291, 7
  %v3293 = vsub.s32 0, %v3292
  %v3294 = vrot.slane %v2297, %v3293
  %v3295 = vlaneseq
  %v3296 = vshrl.u32 %v3295, 7
  %v3297 = vsub.s32 1, %v3296
  %v3298 = vrot.slane %v2297, %v3297
  %v3299 = vlaneseq
  %v3300 = vshrl.u32 %v3299, 7
  %v3301 = vsub.s32 2, %v3300
  %v3302 = vrot.slane %v2297, %v3301
  %v3303 = vlaneseq
  %v3304 = vshrl.u32 %v3303, 7
  %v3305 = vsub.s32 3, %v3304
  %v3306 = vrot.slane %v2297, %v3305
  %v3307 = vlaneseq
  %v3308 = vshrl.u32 %v3307, 7
  %v3309 = vsub.s32 4, %v3308
  %v3310 = vrot.slane %v2297, %v3309
  %v3311 = vlaneseq
  %v3312 = vshrl.u32 %v3311, 7
  %v3313 = vsub.s32 5, %v3312
  %v3314 = vrot.slane %v2297, %v3313
  %v3315 = vlaneseq
  %v3316 = vshrl.u32 %v3315, 7
  %v3317 = vsub.s32 6, %v3316
  %v3318 = vrot.slane %v2297, %v3317
  %v3319 = vlaneseq
  %v3320 = vshrl.u32 %v3319, 7
  %v3321 = vsub.s32 7, %v3320
  %v3322 = vrot.slane %v2297, %v3321
  %v3323 = vlaneseq
  %v3324 = vshrl.u32 %v3323, 7
  %v3325 = vsub.s32 0, %v3324
  %v3326 = vrot.slane %v2298, %v3325
  %v3327 = vlaneseq
  %v3328 = vshrl.u32 %v3327, 7
  %v3329 = vsub.s32 1, %v3328
  %v3330 = vrot.slane %v2298, %v3329
  %v3331 = vlaneseq
  %v3332 = vshrl.u32 %v3331, 7
  %v3333 = vsub.s32 2, %v3332
  %v3334 = vrot.slane %v2298, %v3333
  %v3335 = vlaneseq
  %v3336 = vshrl.u32 %v3335, 7
  %v3337 = vsub.s32 3, %v3336
  %v3338 = vrot.slane %v2298, %v3337
  %v3339 = vlaneseq
  %v3340 = vshrl.u32 %v3339, 7
  %v3341 = vsub.s32 4, %v3340
  %v3342 = vrot.slane %v2298, %v3341
  %v3343 = vlaneseq
  %v3344 = vshrl.u32 %v3343, 7
  %v3345 = vsub.s32 5, %v3344
  %v3346 = vrot.slane %v2298, %v3345
  %v3347 = vlaneseq
  %v3348 = vshrl.u32 %v3347, 7
  %v3349 = vsub.s32 6, %v3348
  %v3350 = vrot.slane %v2298, %v3349
  %v3351 = vlaneseq
  %v3352 = vshrl.u32 %v3351, 7
  %v3353 = vsub.s32 7, %v3352
  %v3354 = vrot.slane %v2298, %v3353
  %v3355 = vcombine.low %v2334, %v2338
  %v3356 = vcombine.low %v2342, %v2346
  %v3357 = vcombine.low %v2350, %v2354
  %v3358 = vcombine.low %v2358, %v2362
  %v3360 = vunpack.c.l.s4 1966171168
  %v3361 = vunpack.c.0.s8 %v3360
  %v3362 = vlaneseq
  %v3363 = vshrl.u32 %v3362, 7
  %v3364 = vsub.s32 %v3361, %v3363
  %v3365 = vrot.slane %v3355, %v3364
  %v3367 = vunpack.c.l.s4 1966171168
  %v3368 = vunpack.c.0.s8 %v3367
  %v3369 = vlaneseq
  %v3370 = vshrl.u32 %v3369, 7
  %v3371 = vsub.s32 %v3368, %v3370
  %v3372 = vrot.slane %v3356, %v3371
  %v3374 = vunpack.c.l.s4 1966171168
  %v3375 = vunpack.c.0.s8 %v3374
  %v3376 = vlaneseq
  %v3377 = vshrl.u32 %v3376, 7
  %v3378 = vsub.s32 %v3375, %v3377
  %v3379 = vrot.slane %v3357, %v3378
  %v3381 = vunpack.c.l.s4 1966171168
  %v3382 = vunpack.c.0.s8 %v3381
  %v3383 = vlaneseq
  %v3384 = vshrl.u32 %v3383, 7
  %v3385 = vsub.s32 %v3382, %v3384
  %v3386 = vrot.slane %v3358, %v3385
  %v3387 = vcombine.low %v3365, %v3372
  %v3388 = vcombine.low %v3379, %v3386
  %v3390 = vunpack.c.l.s4 1966171168
  %v3391 = vunpack.c.0.s8 %v3390
  %v3392 = vlaneseq
  %v3393 = vshrl.u32 %v3392, 7
  %v3394 = vsub.s32 %v3391, %v3393
  %v3395 = vrot.slane %v3387, %v3394
  %v3397 = vunpack.c.l.s4 1966171168
  %v3398 = vunpack.c.0.s8 %v3397
  %v3399 = vlaneseq
  %v3400 = vshrl.u32 %v3399, 7
  %v3401 = vsub.s32 %v3398, %v3400
  %v3402 = vrot.slane %v3388, %v3401
  %v3403 = vcombine.low %v3395, %v3402
  %v3404 = vcombine.low %v2366, %v2370
  %v3405 = vcombine.low %v2374, %v2378
  %v3406 = vcombine.low %v2382, %v2386
  %v3407 = vcombine.low %v2390, %v2394
  %v3409 = vunpack.c.l.s4 1966171168
  %v3410 = vunpack.c.0.s8 %v3409
  %v3411 = vlaneseq
  %v3412 = vshrl.u32 %v3411, 7
  %v3413 = vsub.s32 %v3410, %v3412
  %v3414 = vrot.slane %v3404, %v3413
  %v3416 = vunpack.c.l.s4 1966171168
  %v3417 = vunpack.c.0.s8 %v3416
  %v3418 = vlaneseq
  %v3419 = vshrl.u32 %v3418, 7
  %v3420 = vsub.s32 %v3417, %v3419
  %v3421 = vrot.slane %v3405, %v3420
  %v3423 = vunpack.c.l.s4 1966171168
  %v3424 = vunpack.c.0.s8 %v3423
  %v3425 = vlaneseq
  %v3426 = vshrl.u32 %v3425, 7
  %v3427 = vsub.s32 %v3424, %v3426
  %v3428 = vrot.slane %v3406, %v3427
  %v3430 = vunpack.c.l.s4 1966171168
  %v3431 = vunpack.c.0.s8 %v3430
  %v3432 = vlaneseq
  %v3433 = vshrl.u32 %v3432, 7
  %v3434 = vsub.s32 %v3431, %v3433
  %v3435 = vrot.slane %v3407, %v3434
  %v3436 = vcombine.low %v3414, %v3421
  %v3437 = vcombine.low %v3428, %v3435
  %v3439 = vunpack.c.l.s4 1966171168
  %v3440 = vunpack.c.0.s8 %v3439
  %v3441 = vlaneseq
  %v3442 = vshrl.u32 %v3441, 7
  %v3443 = vsub.s32 %v3440, %v3442
  %v3444 = vrot.slane %v3436, %v3443
  %v3446 = vunpack.c.l.s4 1966171168
  %v3447 = vunpack.c.0.s8 %v3446
  %v3448 = vlaneseq
  %v3449 = vshrl.u32 %v3448, 7
  %v3450 = vsub.s32 %v3447, %v3449
  %v3451 = vrot.slane %v3437, %v3450
  %v3452 = vcombine.low %v3444, %v3451
  %v3453 = vcombine.low %v2398, %v2402
  %v3454 = vcombine.low %v2406, %v2410
  %v3455 = vcombine.low %v2414, %v2418
  %v3456 = vcombine.low %v2422, %v2426
  %v3458 = vunpack.c.l.s4 1966171168
  %v3459 = vunpack.c.0.s8 %v3458
  %v3460 = vlaneseq
  %v3461 = vshrl.u32 %v3460, 7
  %v3462 = vsub.s32 %v3459, %v3461
  %v3463 = vrot.slane %v3453, %v3462
  %v3465 = vunpack.c.l.s4 1966171168
  %v3466 = vunpack.c.0.s8 %v3465
  %v3467 = vlaneseq
  %v3468 = vshrl.u32 %v3467, 7
  %v3469 = vsub.s32 %v3466, %v3468
  %v3470 = vrot.slane %v3454, %v3469
  %v3472 = vunpack.c.l.s4 1966171168
  %v3473 = vunpack.c.0.s8 %v3472
  %v3474 = vlaneseq
  %v3475 = vshrl.u32 %v3474, 7
  %v3476 = vsub.s32 %v3473, %v3475
  %v3477 = vrot.slane %v3455, %v3476
  %v3479 = vunpack.c.l.s4 1966171168
  %v3480 = vunpack.c.0.s8 %v3479
  %v3481 = vlaneseq
  %v3482 = vshrl.u32 %v3481, 7
  %v3483 = vsub.s32 %v3480, %v3482
  %v3484 = vrot.slane %v3456, %v3483
  %v3485 = vcombine.low %v3463, %v3470
  %v3486 = vcombine.low %v3477, %v3484
  %v3488 = vunpack.c.l.s4 1966171168
  %v3489 = vunpack.c.0.s8 %v3488
  %v3490 = vlaneseq
  %v3491 = vshrl.u32 %v3490, 7
  %v3492 = vsub.s32 %v3489, %v3491
  %v3493 = vrot.slane %v3485, %v3492
  %v3495 = vunpack.c.l.s4 1966171168
  %v3496 = vunpack.c.0.s8 %v3495
  %v3497 = vlaneseq
  %v3498 = vshrl.u32 %v3497, 7
  %v3499 = vsub.s32 %v3496, %v3498
  %v3500 = vrot.slane %v3486, %v3499
  %v3501 = vcombine.low %v3493, %v3500
  %v3502 = vcombine.low %v2430, %v2434
  %v3503 = vcombine.low %v2438, %v2442
  %v3504 = vcombine.low %v2446, %v2450
  %v3505 = vcombine.low %v2454, %v2458
  %v3507 = vunpack.c.l.s4 1966171168
  %v3508 = vunpack.c.0.s8 %v3507
  %v3509 = vlaneseq
  %v3510 = vshrl.u32 %v3509, 7
  %v3511 = vsub.s32 %v3508, %v3510
  %v3512 = vrot.slane %v3502, %v3511
  %v3514 = vunpack.c.l.s4 1966171168
  %v3515 = vunpack.c.0.s8 %v3514
  %v3516 = vlaneseq
  %v3517 = vshrl.u32 %v3516, 7
  %v3518 = vsub.s32 %v3515, %v3517
  %v3519 = vrot.slane %v3503, %v3518
  %v3521 = vunpack.c.l.s4 1966171168
  %v3522 = vunpack.c.0.s8 %v3521
  %v3523 = vlaneseq
  %v3524 = vshrl.u32 %v3523, 7
  %v3525 = vsub.s32 %v3522, %v3524
  %v3526 = vrot.slane %v3504, %v3525
  %v3528 = vunpack.c.l.s4 1966171168
  %v3529 = vunpack.c.0.s8 %v3528
  %v3530 = vlaneseq
  %v3531 = vshrl.u32 %v3530, 7
  %v3532 = vsub.s32 %v3529, %v3531
  %v3533 = vrot.slane %v3505, %v3532
  %v3534 = vcombine.low %v3512, %v3519
  %v3535 = vcombine.low %v3526, %v3533
  %v3537 = vunpack.c.l.s4 1966171168
  %v3538 = vunpack.c.0.s8 %v3537
  %v3539 = vlaneseq
  %v3540 = vshrl.u32 %v3539, 7
  %v3541 = vsub.s32 %v3538, %v3540
  %v3542 = vrot.slane %v3534, %v3541
  %v3544 = vunpack.c.l.s4 1966171168
  %v3545 = vunpack.c.0.s8 %v3544
  %v3546 = vlaneseq
  %v3547 = vshrl.u32 %v3546, 7
  %v3548 = vsub.s32 %v3545, %v3547
  %v3549 = vrot.slane %v3535, %v3548
  %v3550 = vcombine.low %v3542, %v3549
  %v3551 = vcombine.low %v2462, %v2466
  %v3552 = vcombine.low %v2470, %v2474
  %v3553 = vcombine.low %v2478, %v2482
  %v3554 = vcombine.low %v2486, %v2490
  %v3556 = vunpack.c.l.s4 1966171168
  %v3557 = vunpack.c.0.s8 %v3556
  %v3558 = vlaneseq
  %v3559 = vshrl.u32 %v3558, 7
  %v3560 = vsub.s32 %v3557, %v3559
  %v3561 = vrot.slane %v3551, %v3560
  %v3563 = vunpack.c.l.s4 1966171168
  %v3564 = vunpack.c.0.s8 %v3563
  %v3565 = vlaneseq
  %v3566 = vshrl.u32 %v3565, 7
  %v3567 = vsub.s32 %v3564, %v3566
  %v3568 = vrot.slane %v3552, %v3567
  %v3570 = vunpack.c.l.s4 1966171168
  %v3571 = vunpack.c.0.s8 %v3570
  %v3572 = vlaneseq
  %v3573 = vshrl.u32 %v3572, 7
  %v3574 = vsub.s32 %v3571, %v3573
  %v3575 = vrot.slane %v3553, %v3574
  %v3577 = vunpack.c.l.s4 1966171168
  %v3578 = vunpack.c.0.s8 %v3577
  %v3579 = vlaneseq
  %v3580 = vshrl.u32 %v3579, 7
  %v3581 = vsub.s32 %v3578, %v3580
  %v3582 = vrot.slane %v3554, %v3581
  %v3583 = vcombine.low %v3561, %v3568
  %v3584 = vcombine.low %v3575, %v3582
  %v3586 = vunpack.c.l.s4 1966171168
  %v3587 = vunpack.c.0.s8 %v3586
  %v3588 = vlaneseq
  %v3589 = vshrl.u32 %v3588, 7
  %v3590 = vsub.s32 %v3587, %v3589
  %v3591 = vrot.slane %v3583, %v3590
  %v3593 = vunpack.c.l.s4 1966171168
  %v3594 = vunpack.c.0.s8 %v3593
  %v3595 = vlaneseq
  %v3596 = vshrl.u32 %v3595, 7
  %v3597 = vsub.s32 %v3594, %v3596
  %v3598 = vrot.slane %v3584, %v3597
  %v3599 = vcombine.low %v3591, %v3598
  %v3600 = vcombine.low %v2494, %v2498
  %v3601 = vcombine.low %v2502, %v2506
  %v3602 = vcombine.low %v2510, %v2514
  %v3603 = vcombine.low %v2518, %v2522
  %v3605 = vunpack.c.l.s4 1966171168
  %v3606 = vunpack.c.0.s8 %v3605
  %v3607 = vlaneseq
  %v3608 = vshrl.u32 %v3607, 7
  %v3609 = vsub.s32 %v3606, %v3608
  %v3610 = vrot.slane %v3600, %v3609
  %v3612 = vunpack.c.l.s4 1966171168
  %v3613 = vunpack.c.0.s8 %v3612
  %v3614 = vlaneseq
  %v3615 = vshrl.u32 %v3614, 7
  %v3616 = vsub.s32 %v3613, %v3615
  %v3617 = vrot.slane %v3601, %v3616
  %v3619 = vunpack.c.l.s4 1966171168
  %v3620 = vunpack.c.0.s8 %v3619
  %v3621 = vlaneseq
  %v3622 = vshrl.u32 %v3621, 7
  %v3623 = vsub.s32 %v3620, %v3622
  %v3624 = vrot.slane %v3602, %v3623
  %v3626 = vunpack.c.l.s4 1966171168
  %v3627 = vunpack.c.0.s8 %v3626
  %v3628 = vlaneseq
  %v3629 = vshrl.u32 %v3628, 7
  %v3630 = vsub.s32 %v3627, %v3629
  %v3631 = vrot.slane %v3603, %v3630
  %v3632 = vcombine.low %v3610, %v3617
  %v3633 = vcombine.low %v3624, %v3631
  %v3635 = vunpack.c.l.s4 1966171168
  %v3636 = vunpack.c.0.s8 %v3635
  %v3637 = vlaneseq
  %v3638 = vshrl.u32 %v3637, 7
  %v3639 = vsub.s32 %v3636, %v3638
  %v3640 = vrot.slane %v3632, %v3639
  %v3642 = vunpack.c.l.s4 1966171168
  %v3643 = vunpack.c.0.s8 %v3642
  %v3644 = vlaneseq
  %v3645 = vshrl.u32 %v3644, 7
  %v3646 = vsub.s32 %v3643, %v3645
  %v3647 = vrot.slane %v3633, %v3646
  %v3648 = vcombine.low %v3640, %v3647
  %v3649 = vcombine.low %v2526, %v2530
  %v3650 = vcombine.low %v2534, %v2538
  %v3651 = vcombine.low %v2542, %v2546
  %v3652 = vcombine.low %v2550, %v2554
  %v3654 = vunpack.c.l.s4 1966171168
  %v3655 = vunpack.c.0.s8 %v3654
  %v3656 = vlaneseq
  %v3657 = vshrl.u32 %v3656, 7
  %v3658 = vsub.s32 %v3655, %v3657
  %v3659 = vrot.slane %v3649, %v3658
  %v3661 = vunpack.c.l.s4 1966171168
  %v3662 = vunpack.c.0.s8 %v3661
  %v3663 = vlaneseq
  %v3664 = vshrl.u32 %v3663, 7
  %v3665 = vsub.s32 %v3662, %v3664
  %v3666 = vrot.slane %v3650, %v3665
  %v3668 = vunpack.c.l.s4 1966171168
  %v3669 = vunpack.c.0.s8 %v3668
  %v3670 = vlaneseq
  %v3671 = vshrl.u32 %v3670, 7
  %v3672 = vsub.s32 %v3669, %v3671
  %v3673 = vrot.slane %v3651, %v3672
  %v3675 = vunpack.c.l.s4 1966171168
  %v3676 = vunpack.c.0.s8 %v3675
  %v3677 = vlaneseq
  %v3678 = vshrl.u32 %v3677, 7
  %v3679 = vsub.s32 %v3676, %v3678
  %v3680 = vrot.slane %v3652, %v3679
  %v3681 = vcombine.low %v3659, %v3666
  %v3682 = vcombine.low %v3673, %v3680
  %v3684 = vunpack.c.l.s4 1966171168
  %v3685 = vunpack.c.0.s8 %v3684
  %v3686 = vlaneseq
  %v3687 = vshrl.u32 %v3686, 7
  %v3688 = vsub.s32 %v3685, %v3687
  %v3689 = vrot.slane %v3681, %v3688
  %v3691 = vunpack.c.l.s4 1966171168
  %v3692 = vunpack.c.0.s8 %v3691
  %v3693 = vlaneseq
  %v3694 = vshrl.u32 %v3693, 7
  %v3695 = vsub.s32 %v3692, %v3694
  %v3696 = vrot.slane %v3682, %v3695
  %v3697 = vcombine.low %v3689, %v3696
  %v3698 = vcombine.low %v2558, %v2562
  %v3699 = vcombine.low %v2566, %v2570
  %v3700 = vcombine.low %v2574, %v2578
  %v3701 = vcombine.low %v2582, %v2586
  %v3703 = vunpack.c.l.s4 1966171168
  %v3704 = vunpack.c.0.s8 %v3703
  %v3705 = vlaneseq
  %v3706 = vshrl.u32 %v3705, 7
  %v3707 = vsub.s32 %v3704, %v3706
  %v3708 = vrot.slane %v3698, %v3707
  %v3710 = vunpack.c.l.s4 1966171168
  %v3711 = vunpack.c.0.s8 %v3710
  %v3712 = vlaneseq
  %v3713 = vshrl.u32 %v3712, 7
  %v3714 = vsub.s32 %v3711, %v3713
  %v3715 = vrot.slane %v3699, %v3714
  %v3717 = vunpack.c.l.s4 1966171168
  %v3718 = vunpack.c.0.s8 %v3717
  %v3719 = vlaneseq
  %v3720 = vshrl.u32 %v3719, 7
  %v3721 = vsub.s32 %v3718, %v3720
  %v3722 = vrot.slane %v3700, %v3721
  %v3724 = vunpack.c.l.s4 1966171168
  %v3725 = vunpack.c.0.s8 %v3724
  %v3726 = vlaneseq
  %v3727 = vshrl.u32 %v3726, 7
  %v3728 = vsub.s32 %v3725, %v3727
  %v3729 = vrot.slane %v3701, %v3728
  %v3730 = vcombine.low %v3708, %v3715
  %v3731 = vcombine.low %v3722, %v3729
  %v3733 = vunpack.c.l.s4 1966171168
  %v3734 = vunpack.c.0.s8 %v3733
  %v3735 = vlaneseq
  %v3736 = vshrl.u32 %v3735, 7
  %v3737 = vsub.s32 %v3734, %v3736
  %v3738 = vrot.slane %v3730, %v3737
  %v3740 = vunpack.c.l.s4 1966171168
  %v3741 = vunpack.c.0.s8 %v3740
  %v3742 = vlaneseq
  %v3743 = vshrl.u32 %v3742, 7
  %v3744 = vsub.s32 %v3741, %v3743
  %v3745 = vrot.slane %v3731, %v3744
  %v3746 = vcombine.low %v3738, %v3745
  %v3747 = vcombine.low %v2590, %v2594
  %v3748 = vcombine.low %v2598, %v2602
  %v3749 = vcombine.low %v2606, %v2610
  %v3750 = vcombine.low %v2614, %v2618
  %v3752 = vunpack.c.l.s4 1966171168
  %v3753 = vunpack.c.0.s8 %v3752
  %v3754 = vlaneseq
  %v3755 = vshrl.u32 %v3754, 7
  %v3756 = vsub.s32 %v3753, %v3755
  %v3757 = vrot.slane %v3747, %v3756
  %v3759 = vunpack.c.l.s4 1966171168
  %v3760 = vunpack.c.0.s8 %v3759
  %v3761 = vlaneseq
  %v3762 = vshrl.u32 %v3761, 7
  %v3763 = vsub.s32 %v3760, %v3762
  %v3764 = vrot.slane %v3748, %v3763
  %v3766 = vunpack.c.l.s4 1966171168
  %v3767 = vunpack.c.0.s8 %v3766
  %v3768 = vlaneseq
  %v3769 = vshrl.u32 %v3768, 7
  %v3770 = vsub.s32 %v3767, %v3769
  %v3771 = vrot.slane %v3749, %v3770
  %v3773 = vunpack.c.l.s4 1966171168
  %v3774 = vunpack.c.0.s8 %v3773
  %v3775 = vlaneseq
  %v3776 = vshrl.u32 %v3775, 7
  %v3777 = vsub.s32 %v3774, %v3776
  %v3778 = vrot.slane %v3750, %v3777
  %v3779 = vcombine.low %v3757, %v3764
  %v3780 = vcombine.low %v3771, %v3778
  %v3782 = vunpack.c.l.s4 1966171168
  %v3783 = vunpack.c.0.s8 %v3782
  %v3784 = vlaneseq
  %v3785 = vshrl.u32 %v3784, 7
  %v3786 = vsub.s32 %v3783, %v3785
  %v3787 = vrot.slane %v3779, %v3786
  %v3789 = vunpack.c.l.s4 1966171168
  %v3790 = vunpack.c.0.s8 %v3789
  %v3791 = vlaneseq
  %v3792 = vshrl.u32 %v3791, 7
  %v3793 = vsub.s32 %v3790, %v3792
  %v3794 = vrot.slane %v3780, %v3793
  %v3795 = vcombine.low %v3787, %v3794
  %v3796 = vcombine.low %v2622, %v2626
  %v3797 = vcombine.low %v2630, %v2634
  %v3798 = vcombine.low %v2638, %v2642
  %v3799 = vcombine.low %v2646, %v2650
  %v3801 = vunpack.c.l.s4 1966171168
  %v3802 = vunpack.c.0.s8 %v3801
  %v3803 = vlaneseq
  %v3804 = vshrl.u32 %v3803, 7
  %v3805 = vsub.s32 %v3802, %v3804
  %v3806 = vrot.slane %v3796, %v3805
  %v3808 = vunpack.c.l.s4 1966171168
  %v3809 = vunpack.c.0.s8 %v3808
  %v3810 = vlaneseq
  %v3811 = vshrl.u32 %v3810, 7
  %v3812 = vsub.s32 %v3809, %v3811
  %v3813 = vrot.slane %v3797, %v3812
  %v3815 = vunpack.c.l.s4 1966171168
  %v3816 = vunpack.c.0.s8 %v3815
  %v3817 = vlaneseq
  %v3818 = vshrl.u32 %v3817, 7
  %v3819 = vsub.s32 %v3816, %v3818
  %v3820 = vrot.slane %v3798, %v3819
  %v3822 = vunpack.c.l.s4 1966171168
  %v3823 = vunpack.c.0.s8 %v3822
  %v3824 = vlaneseq
  %v3825 = vshrl.u32 %v3824, 7
  %v3826 = vsub.s32 %v3823, %v3825
  %v3827 = vrot.slane %v3799, %v3826
  %v3828 = vcombine.low %v3806, %v3813
  %v3829 = vcombine.low %v3820, %v3827
  %v3831 = vunpack.c.l.s4 1966171168
  %v3832 = vunpack.c.0.s8 %v3831
  %v3833 = vlaneseq
  %v3834 = vshrl.u32 %v3833, 7
  %v3835 = vsub.s32 %v3832, %v3834
  %v3836 = vrot.slane %v3828, %v3835
  %v3838 = vunpack.c.l.s4 1966171168
  %v3839 = vunpack.c.0.s8 %v3838
  %v3840 = vlaneseq
  %v3841 = vshrl.u32 %v3840, 7
  %v3842 = vsub.s32 %v3839, %v3841
  %v3843 = vrot.slane %v3829, %v3842
  %v3844 = vcombine.low %v3836, %v3843
  %v3845 = vcombine.low %v2654, %v2658
  %v3846 = vcombine.low %v2662, %v2666
  %v3847 = vcombine.low %v2670, %v2674
  %v3848 = vcombine.low %v2678, %v2682
  %v3850 = vunpack.c.l.s4 1966171168
  %v3851 = vunpack.c.0.s8 %v3850
  %v3852 = vlaneseq
  %v3853 = vshrl.u32 %v3852, 7
  %v3854 = vsub.s32 %v3851, %v3853
  %v3855 = vrot.slane %v3845, %v3854
  %v3857 = vunpack.c.l.s4 1966171168
  %v3858 = vunpack.c.0.s8 %v3857
  %v3859 = vlaneseq
  %v3860 = vshrl.u32 %v3859, 7
  %v3861 = vsub.s32 %v3858, %v3860
  %v3862 = vrot.slane %v3846, %v3861
  %v3864 = vunpack.c.l.s4 1966171168
  %v3865 = vunpack.c.0.s8 %v3864
  %v3866 = vlaneseq
  %v3867 = vshrl.u32 %v3866, 7
  %v3868 = vsub.s32 %v3865, %v3867
  %v3869 = vrot.slane %v3847, %v3868
  %v3871 = vunpack.c.l.s4 1966171168
  %v3872 = vunpack.c.0.s8 %v3871
  %v3873 = vlaneseq
  %v3874 = vshrl.u32 %v3873, 7
  %v3875 = vsub.s32 %v3872, %v3874
  %v3876 = vrot.slane %v3848, %v3875
  %v3877 = vcombine.low %v3855, %v3862
  %v3878 = vcombine.low %v3869, %v3876
  %v3880 = vunpack.c.l.s4 1966171168
  %v3881 = vunpack.c.0.s8 %v3880
  %v3882 = vlaneseq
  %v3883 = vshrl.u32 %v3882, 7
  %v3884 = vsub.s32 %v3881, %v3883
  %v3885 = vrot.slane %v3877, %v3884
  %v3887 = vunpack.c.l.s4 1966171168
  %v3888 = vunpack.c.0.s8 %v3887
  %v3889 = vlaneseq
  %v3890 = vshrl.u32 %v3889, 7
  %v3891 = vsub.s32 %v3888, %v3890
  %v3892 = vrot.slane %v3878, %v3891
  %v3893 = vcombine.low %v3885, %v3892
  %v3894 = vcombine.low %v2686, %v2690
  %v3895 = vcombine.low %v2694, %v2698
  %v3896 = vcombine.low %v2702, %v2706
  %v3897 = vcombine.low %v2710, %v2714
  %v3899 = vunpack.c.l.s4 1966171168
  %v3900 = vunpack.c.0.s8 %v3899
  %v3901 = vlaneseq
  %v3902 = vshrl.u32 %v3901, 7
  %v3903 = vsub.s32 %v3900, %v3902
  %v3904 = vrot.slane %v3894, %v3903
  %v3906 = vunpack.c.l.s4 1966171168
  %v3907 = vunpack.c.0.s8 %v3906
  %v3908 = vlaneseq
  %v3909 = vshrl.u32 %v3908, 7
  %v3910 = vsub.s32 %v3907, %v3909
  %v3911 = vrot.slane %v3895, %v3910
  %v3913 = vunpack.c.l.s4 1966171168
  %v3914 = vunpack.c.0.s8 %v3913
  %v3915 = vlaneseq
  %v3916 = vshrl.u32 %v3915, 7
  %v3917 = vsub.s32 %v3914, %v3916
  %v3918 = vrot.slane %v3896, %v3917
  %v3920 = vunpack.c.l.s4 1966171168
  %v3921 = vunpack.c.0.s8 %v3920
  %v3922 = vlaneseq
  %v3923 = vshrl.u32 %v3922, 7
  %v3924 = vsub.s32 %v3921, %v3923
  %v3925 = vrot.slane %v3897, %v3924
  %v3926 = vcombine.low %v3904, %v3911
  %v3927 = vcombine.low %v3918, %v3925
  %v3929 = vunpack.c.l.s4 1966171168
  %v3930 = vunpack.c.0.s8 %v3929
  %v3931 = vlaneseq
  %v3932 = vshrl.u32 %v3931, 7
  %v3933 = vsub.s32 %v3930, %v3932
  %v3934 = vrot.slane %v3926, %v3933
  %v3936 = vunpack.c.l.s4 1966171168
  %v3937 = vunpack.c.0.s8 %v3936
  %v3938 = vlaneseq
  %v3939 = vshrl.u32 %v3938, 7
  %v3940 = vsub.s32 %v3937, %v3939
  %v3941 = vrot.slane %v3927, %v3940
  %v3942 = vcombine.low %v3934, %v3941
  %v3943 = vcombine.low %v2718, %v2722
  %v3944 = vcombine.low %v2726, %v2730
  %v3945 = vcombine.low %v2734, %v2738
  %v3946 = vcombine.low %v2742, %v2746
  %v3948 = vunpack.c.l.s4 1966171168
  %v3949 = vunpack.c.0.s8 %v3948
  %v3950 = vlaneseq
  %v3951 = vshrl.u32 %v3950, 7
  %v3952 = vsub.s32 %v3949, %v3951
  %v3953 = vrot.slane %v3943, %v3952
  %v3955 = vunpack.c.l.s4 1966171168
  %v3956 = vunpack.c.0.s8 %v3955
  %v3957 = vlaneseq
  %v3958 = vshrl.u32 %v3957, 7
  %v3959 = vsub.s32 %v3956, %v3958
  %v3960 = vrot.slane %v3944, %v3959
  %v3962 = vunpack.c.l.s4 1966171168
  %v3963 = vunpack.c.0.s8 %v3962
  %v3964 = vlaneseq
  %v3965 = vshrl.u32 %v3964, 7
  %v3966 = vsub.s32 %v3963, %v3965
  %v3967 = vrot.slane %v3945, %v3966
  %v3969 = vunpack.c.l.s4 1966171168
  %v3970 = vunpack.c.0.s8 %v3969
  %v3971 = vlaneseq
  %v3972 = vshrl.u32 %v3971, 7
  %v3973 = vsub.s32 %v3970, %v3972
  %v3974 = vrot.slane %v3946, %v3973
  %v3975 = vcombine.low %v3953, %v3960
  %v3976 = vcombine.low %v3967, %v3974
  %v3978 = vunpack.c.l.s4 1966171168
  %v3979 = vunpack.c.0.s8 %v3978
  %v3980 = vlaneseq
  %v3981 = vshrl.u32 %v3980, 7
  %v3982 = vsub.s32 %v3979, %v3981
  %v3983 = vrot.slane %v3975, %v3982
  %v3985 = vunpack.c.l.s4 1966171168
  %v3986 = vunpack.c.0.s8 %v3985
  %v3987 = vlaneseq
  %v3988 = vshrl.u32 %v3987, 7
  %v3989 = vsub.s32 %v3986, %v3988
  %v3990 = vrot.slane %v3976, %v3989
  %v3991 = vcombine.low %v3983, %v3990
  %v3992 = vcombine.low %v2750, %v2754
  %v3993 = vcombine.low %v2758, %v2762
  %v3994 = vcombine.low %v2766, %v2770
  %v3995 = vcombine.low %v2774, %v2778
  %v3997 = vunpack.c.l.s4 1966171168
  %v3998 = vunpack.c.0.s8 %v3997
  %v3999 = vlaneseq
  %v4000 = vshrl.u32 %v3999, 7
  %v4001 = vsub.s32 %v3998, %v4000
  %v4002 = vrot.slane %v3992, %v4001
  %v4004 = vunpack.c.l.s4 1966171168
  %v4005 = vunpack.c.0.s8 %v4004
  %v4006 = vlaneseq
  %v4007 = vshrl.u32 %v4006, 7
  %v4008 = vsub.s32 %v4005, %v4007
  %v4009 = vrot.slane %v3993, %v4008
  %v4011 = vunpack.c.l.s4 1966171168
  %v4012 = vunpack.c.0.s8 %v4011
  %v4013 = vlaneseq
  %v4014 = vshrl.u32 %v4013, 7
  %v4015 = vsub.s32 %v4012, %v4014
  %v4016 = vrot.slane %v3994, %v4015
  %v4018 = vunpack.c.l.s4 1966171168
  %v4019 = vunpack.c.0.s8 %v4018
  %v4020 = vlaneseq
  %v4021 = vshrl.u32 %v4020, 7
  %v4022 = vsub.s32 %v4019, %v4021
  %v4023 = vrot.slane %v3995, %v4022
  %v4024 = vcombine.low %v4002, %v4009
  %v4025 = vcombine.low %v4016, %v4023
  %v4027 = vunpack.c.l.s4 1966171168
  %v4028 = vunpack.c.0.s8 %v4027
  %v4029 = vlaneseq
  %v4030 = vshrl.u32 %v4029, 7
  %v4031 = vsub.s32 %v4028, %v4030
  %v4032 = vrot.slane %v4024, %v4031
  %v4034 = vunpack.c.l.s4 1966171168
  %v4035 = vunpack.c.0.s8 %v4034
  %v4036 = vlaneseq
  %v4037 = vshrl.u32 %v4036, 7
  %v4038 = vsub.s32 %v4035, %v4037
  %v4039 = vrot.slane %v4025, %v4038
  %v4040 = vcombine.low %v4032, %v4039
  %v4041 = vcombine.low %v2782, %v2786
  %v4042 = vcombine.low %v2790, %v2794
  %v4043 = vcombine.low %v2798, %v2802
  %v4044 = vcombine.low %v2806, %v2810
  %v4046 = vunpack.c.l.s4 1966171168
  %v4047 = vunpack.c.0.s8 %v4046
  %v4048 = vlaneseq
  %v4049 = vshrl.u32 %v4048, 7
  %v4050 = vsub.s32 %v4047, %v4049
  %v4051 = vrot.slane %v4041, %v4050
  %v4053 = vunpack.c.l.s4 1966171168
  %v4054 = vunpack.c.0.s8 %v4053
  %v4055 = vlaneseq
  %v4056 = vshrl.u32 %v4055, 7
  %v4057 = vsub.s32 %v4054, %v4056
  %v4058 = vrot.slane %v4042, %v4057
  %v4060 = vunpack.c.l.s4 1966171168
  %v4061 = vunpack.c.0.s8 %v4060
  %v4062 = vlaneseq
  %v4063 = vshrl.u32 %v4062, 7
  %v4064 = vsub.s32 %v4061, %v4063
  %v4065 = vrot.slane %v4043, %v4064
  %v4067 = vunpack.c.l.s4 1966171168
  %v4068 = vunpack.c.0.s8 %v4067
  %v4069 = vlaneseq
  %v4070 = vshrl.u32 %v4069, 7
  %v4071 = vsub.s32 %v4068, %v4070
  %v4072 = vrot.slane %v4044, %v4071
  %v4073 = vcombine.low %v4051, %v4058
  %v4074 = vcombine.low %v4065, %v4072
  %v4076 = vunpack.c.l.s4 1966171168
  %v4077 = vunpack.c.0.s8 %v4076
  %v4078 = vlaneseq
  %v4079 = vshrl.u32 %v4078, 7
  %v4080 = vsub.s32 %v4077, %v4079
  %v4081 = vrot.slane %v4073, %v4080
  %v4083 = vunpack.c.l.s4 1966171168
  %v4084 = vunpack.c.0.s8 %v4083
  %v4085 = vlaneseq
  %v4086 = vshrl.u32 %v4085, 7
  %v4087 = vsub.s32 %v4084, %v4086
  %v4088 = vrot.slane %v4074, %v4087
  %v4089 = vcombine.low %v4081, %v4088
  %v4090 = vcombine.low %v2814, %v2818
  %v4091 = vcombine.low %v2822, %v2826
  %v4092 = vcombine.low %v2830, %v2834
  %v4093 = vcombine.low %v2838, %v2842
  %v4095 = vunpack.c.l.s4 1966171168
  %v4096 = vunpack.c.0.s8 %v4095
  %v4097 = vlaneseq
  %v4098 = vshrl.u32 %v4097, 7
  %v4099 = vsub.s32 %v4096, %v4098
  %v4100 = vrot.slane %v4090, %v4099
  %v4102 = vunpack.c.l.s4 1966171168
  %v4103 = vunpack.c.0.s8 %v4102
  %v4104 = vlaneseq
  %v4105 = vshrl.u32 %v4104, 7
  %v4106 = vsub.s32 %v4103, %v4105
  %v4107 = vrot.slane %v4091, %v4106
  %v4109 = vunpack.c.l.s4 1966171168
  %v4110 = vunpack.c.0.s8 %v4109
  %v4111 = vlaneseq
  %v4112 = vshrl.u32 %v4111, 7
  %v4113 = vsub.s32 %v4110, %v4112
  %v4114 = vrot.slane %v4092, %v4113
  %v4116 = vunpack.c.l.s4 1966171168
  %v4117 = vunpack.c.0.s8 %v4116
  %v4118 = vlaneseq
  %v4119 = vshrl.u32 %v4118, 7
  %v4120 = vsub.s32 %v4117, %v4119
  %v4121 = vrot.slane %v4093, %v4120
  %v4122 = vcombine.low %v4100, %v4107
  %v4123 = vcombine.low %v4114, %v4121
  %v4125 = vunpack.c.l.s4 1966171168
  %v4126 = vunpack.c.0.s8 %v4125
  %v4127 = vlaneseq
  %v4128 = vshrl.u32 %v4127, 7
  %v4129 = vsub.s32 %v4126, %v4128
  %v4130 = vrot.slane %v4122, %v4129
  %v4132 = vunpack.c.l.s4 1966171168
  %v4133 = vunpack.c.0.s8 %v4132
  %v4134 = vlaneseq
  %v4135 = vshrl.u32 %v4134, 7
  %v4136 = vsub.s32 %v4133, %v4135
  %v4137 = vrot.slane %v4123, %v4136
  %v4138 = vcombine.low %v4130, %v4137
  %v4139 = vcombine.low %v2846, %v2850
  %v4140 = vcombine.low %v2854, %v2858
  %v4141 = vcombine.low %v2862, %v2866
  %v4142 = vcombine.low %v2870, %v2874
  %v4144 = vunpack.c.l.s4 1966171168
  %v4145 = vunpack.c.0.s8 %v4144
  %v4146 = vlaneseq
  %v4147 = vshrl.u32 %v4146, 7
  %v4148 = vsub.s32 %v4145, %v4147
  %v4149 = vrot.slane %v4139, %v4148
  %v4151 = vunpack.c.l.s4 1966171168
  %v4152 = vunpack.c.0.s8 %v4151
  %v4153 = vlaneseq
  %v4154 = vshrl.u32 %v4153, 7
  %v4155 = vsub.s32 %v4152, %v4154
  %v4156 = vrot.slane %v4140, %v4155
  %v4158 = vunpack.c.l.s4 1966171168
  %v4159 = vunpack.c.0.s8 %v4158
  %v4160 = vlaneseq
  %v4161 = vshrl.u32 %v4160, 7
  %v4162 = vsub.s32 %v4159, %v4161
  %v4163 = vrot.slane %v4141, %v4162
  %v4165 = vunpack.c.l.s4 1966171168
  %v4166 = vunpack.c.0.s8 %v4165
  %v4167 = vlaneseq
  %v4168 = vshrl.u32 %v4167, 7
  %v4169 = vsub.s32 %v4166, %v4168
  %v4170 = vrot.slane %v4142, %v4169
  %v4171 = vcombine.low %v4149, %v4156
  %v4172 = vcombine.low %v4163, %v4170
  %v4174 = vunpack.c.l.s4 1966171168
  %v4175 = vunpack.c.0.s8 %v4174
  %v4176 = vlaneseq
  %v4177 = vshrl.u32 %v4176, 7
  %v4178 = vsub.s32 %v4175, %v4177
  %v4179 = vrot.slane %v4171, %v4178
  %v4181 = vunpack.c.l.s4 1966171168
  %v4182 = vunpack.c.0.s8 %v4181
  %v4183 = vlaneseq
  %v4184 = vshrl.u32 %v4183, 7
  %v4185 = vsub.s32 %v4182, %v4184
  %v4186 = vrot.slane %v4172, %v4185
  %v4187 = vcombine.low %v4179, %v4186
  %v4188 = vcombine.low %v2878, %v2882
  %v4189 = vcombine.low %v2886, %v2890
  %v4190 = vcombine.low %v2894, %v2898
  %v4191 = vcombine.low %v2902, %v2906
  %v4193 = vunpack.c.l.s4 1966171168
  %v4194 = vunpack.c.0.s8 %v4193
  %v4195 = vlaneseq
  %v4196 = vshrl.u32 %v4195, 7
  %v4197 = vsub.s32 %v4194, %v4196
  %v4198 = vrot.slane %v4188, %v4197
  %v4200 = vunpack.c.l.s4 1966171168
  %v4201 = vunpack.c.0.s8 %v4200
  %v4202 = vlaneseq
  %v4203 = vshrl.u32 %v4202, 7
  %v4204 = vsub.s32 %v4201, %v4203
  %v4205 = vrot.slane %v4189, %v4204
  %v4207 = vunpack.c.l.s4 1966171168
  %v4208 = vunpack.c.0.s8 %v4207
  %v4209 = vlaneseq
  %v4210 = vshrl.u32 %v4209, 7
  %v4211 = vsub.s32 %v4208, %v4210
  %v4212 = vrot.slane %v4190, %v4211
  %v4214 = vunpack.c.l.s4 1966171168
  %v4215 = vunpack.c.0.s8 %v4214
  %v4216 = vlaneseq
  %v4217 = vshrl.u32 %v4216, 7
  %v4218 = vsub.s32 %v4215, %v4217
  %v4219 = vrot.slane %v4191, %v4218
  %v4220 = vcombine.low %v4198, %v4205
  %v4221 = vcombine.low %v4212, %v4219
  %v4223 = vunpack.c.l.s4 1966171168
  %v4224 = vunpack.c.0.s8 %v4223
  %v4225 = vlaneseq
  %v4226 = vshrl.u32 %v4225, 7
  %v4227 = vsub.s32 %v4224, %v4226
  %v4228 = vrot.slane %v4220, %v4227
  %v4230 = vunpack.c.l.s4 1966171168
  %v4231 = vunpack.c.0.s8 %v4230
  %v4232 = vlaneseq
  %v4233 = vshrl.u32 %v4232, 7
  %v4234 = vsub.s32 %v4231, %v4233
  %v4235 = vrot.slane %v4221, %v4234
  %v4236 = vcombine.low %v4228, %v4235
  %v4237 = vcombine.low %v2910, %v2914
  %v4238 = vcombine.low %v2918, %v2922
  %v4239 = vcombine.low %v2926, %v2930
  %v4240 = vcombine.low %v2934, %v2938
  %v4242 = vunpack.c.l.s4 1966171168
  %v4243 = vunpack.c.0.s8 %v4242
  %v4244 = vlaneseq
  %v4245 = vshrl.u32 %v4244, 7
  %v4246 = vsub.s32 %v4243, %v4245
  %v4247 = vrot.slane %v4237, %v4246
  %v4249 = vunpack.c.l.s4 1966171168
  %v4250 = vunpack.c.0.s8 %v4249
  %v4251 = vlaneseq
  %v4252 = vshrl.u32 %v4251, 7
  %v4253 = vsub.s32 %v4250, %v4252
  %v4254 = vrot.slane %v4238, %v4253
  %v4256 = vunpack.c.l.s4 1966171168
  %v4257 = vunpack.c.0.s8 %v4256
  %v4258 = vlaneseq
  %v4259 = vshrl.u32 %v4258, 7
  %v4260 = vsub.s32 %v4257, %v4259
  %v4261 = vrot.slane %v4239, %v4260
  %v4263 = vunpack.c.l.s4 1966171168
  %v4264 = vunpack.c.0.s8 %v4263
  %v4265 = vlaneseq
  %v4266 = vshrl.u32 %v4265, 7
  %v4267 = vsub.s32 %v4264, %v4266
  %v4268 = vrot.slane %v4240, %v4267
  %v4269 = vcombine.low %v4247, %v4254
  %v4270 = vcombine.low %v4261, %v4268
  %v4272 = vunpack.c.l.s4 1966171168
  %v4273 = vunpack.c.0.s8 %v4272
  %v4274 = vlaneseq
  %v4275 = vshrl.u32 %v4274, 7
  %v4276 = vsub.s32 %v4273, %v4275
  %v4277 = vrot.slane %v4269, %v4276
  %v4279 = vunpack.c.l.s4 1966171168
  %v4280 = vunpack.c.0.s8 %v4279
  %v4281 = vlaneseq
  %v4282 = vshrl.u32 %v4281, 7
  %v4283 = vsub.s32 %v4280, %v4282
  %v4284 = vrot.slane %v4270, %v4283
  %v4285 = vcombine.low %v4277, %v4284
  %v4286 = vcombine.low %v2942, %v2946
  %v4287 = vcombine.low %v2950, %v2954
  %v4288 = vcombine.low %v2958, %v2962
  %v4289 = vcombine.low %v2966, %v2970
  %v4291 = vunpack.c.l.s4 1966171168
  %v4292 = vunpack.c.0.s8 %v4291
  %v4293 = vlaneseq
  %v4294 = vshrl.u32 %v4293, 7
  %v4295 = vsub.s32 %v4292, %v4294
  %v4296 = vrot.slane %v4286, %v4295
  %v4298 = vunpack.c.l.s4 1966171168
  %v4299 = vunpack.c.0.s8 %v4298
  %v4300 = vlaneseq
  %v4301 = vshrl.u32 %v4300, 7
  %v4302 = vsub.s32 %v4299, %v4301
  %v4303 = vrot.slane %v4287, %v4302
  %v4305 = vunpack.c.l.s4 1966171168
  %v4306 = vunpack.c.0.s8 %v4305
  %v4307 = vlaneseq
  %v4308 = vshrl.u32 %v4307, 7
  %v4309 = vsub.s32 %v4306, %v4308
  %v4310 = vrot.slane %v4288, %v4309
  %v4312 = vunpack.c.l.s4 1966171168
  %v4313 = vunpack.c.0.s8 %v4312
  %v4314 = vlaneseq
  %v4315 = vshrl.u32 %v4314, 7
  %v4316 = vsub.s32 %v4313, %v4315
  %v4317 = vrot.slane %v4289, %v4316
  %v4318 = vcombine.low %v4296, %v4303
  %v4319 = vcombine.low %v4310, %v4317
  %v4321 = vunpack.c.l.s4 1966171168
  %v4322 = vunpack.c.0.s8 %v4321
  %v4323 = vlaneseq
  %v4324 = vshrl.u32 %v4323, 7
  %v4325 = vsub.s32 %v4322, %v4324
  %v4326 = vrot.slane %v4318, %v4325
  %v4328 = vunpack.c.l.s4 1966171168
  %v4329 = vunpack.c.0.s8 %v4328
  %v4330 = vlaneseq
  %v4331 = vshrl.u32 %v4330, 7
  %v4332 = vsub.s32 %v4329, %v4331
  %v4333 = vrot.slane %v4319, %v4332
  %v4334 = vcombine.low %v4326, %v4333
  %v4335 = vcombine.low %v2974, %v2978
  %v4336 = vcombine.low %v2982, %v2986
  %v4337 = vcombine.low %v2990, %v2994
  %v4338 = vcombine.low %v2998, %v3002
  %v4340 = vunpack.c.l.s4 1966171168
  %v4341 = vunpack.c.0.s8 %v4340
  %v4342 = vlaneseq
  %v4343 = vshrl.u32 %v4342, 7
  %v4344 = vsub.s32 %v4341, %v4343
  %v4345 = vrot.slane %v4335, %v4344
  %v4347 = vunpack.c.l.s4 1966171168
  %v4348 = vunpack.c.0.s8 %v4347
  %v4349 = vlaneseq
  %v4350 = vshrl.u32 %v4349, 7
  %v4351 = vsub.s32 %v4348, %v4350
  %v4352 = vrot.slane %v4336, %v4351
  %v4354 = vunpack.c.l.s4 1966171168
  %v4355 = vunpack.c.0.s8 %v4354
  %v4356 = vlaneseq
  %v4357 = vshrl.u32 %v4356, 7
  %v4358 = vsub.s32 %v4355, %v4357
  %v4359 = vrot.slane %v4337, %v4358
  %v4361 = vunpack.c.l.s4 1966171168
  %v4362 = vunpack.c.0.s8 %v4361
  %v4363 = vlaneseq
  %v4364 = vshrl.u32 %v4363, 7
  %v4365 = vsub.s32 %v4362, %v4364
  %v4366 = vrot.slane %v4338, %v4365
  %v4367 = vcombine.low %v4345, %v4352
  %v4368 = vcombine.low %v4359, %v4366
  %v4370 = vunpack.c.l.s4 1966171168
  %v4371 = vunpack.c.0.s8 %v4370
  %v4372 = vlaneseq
  %v4373 = vshrl.u32 %v4372, 7
  %v4374 = vsub.s32 %v4371, %v4373
  %v4375 = vrot.slane %v4367, %v4374
  %v4377 = vunpack.c.l.s4 1966171168
  %v4378 = vunpack.c.0.s8 %v4377
  %v4379 = vlaneseq
  %v4380 = vshrl.u32 %v4379, 7
  %v4381 = vsub.s32 %v4378, %v4380
  %v4382 = vrot.slane %v4368, %v4381
  %v4383 = vcombine.low %v4375, %v4382
  %v4384 = vcombine.low %v3006, %v3010
  %v4385 = vcombine.low %v3014, %v3018
  %v4386 = vcombine.low %v3022, %v3026
  %v4387 = vcombine.low %v3030, %v3034
  %v4389 = vunpack.c.l.s4 1966171168
  %v4390 = vunpack.c.0.s8 %v4389
  %v4391 = vlaneseq
  %v4392 = vshrl.u32 %v4391, 7
  %v4393 = vsub.s32 %v4390, %v4392
  %v4394 = vrot.slane %v4384, %v4393
  %v4396 = vunpack.c.l.s4 1966171168
  %v4397 = vunpack.c.0.s8 %v4396
  %v4398 = vlaneseq
  %v4399 = vshrl.u32 %v4398, 7
  %v4400 = vsub.s32 %v4397, %v4399
  %v4401 = vrot.slane %v4385, %v4400
  %v4403 = vunpack.c.l.s4 1966171168
  %v4404 = vunpack.c.0.s8 %v4403
  %v4405 = vlaneseq
  %v4406 = vshrl.u32 %v4405, 7
  %v4407 = vsub.s32 %v4404, %v4406
  %v4408 = vrot.slane %v4386, %v4407
  %v4410 = vunpack.c.l.s4 1966171168
  %v4411 = vunpack.c.0.s8 %v4410
  %v4412 = vlaneseq
  %v4413 = vshrl.u32 %v4412, 7
  %v4414 = vsub.s32 %v4411, %v4413
  %v4415 = vrot.slane %v4387, %v4414
  %v4416 = vcombine.low %v4394, %v4401
  %v4417 = vcombine.low %v4408, %v4415
  %v4419 = vunpack.c.l.s4 1966171168
  %v4420 = vunpack.c.0.s8 %v4419
  %v4421 = vlaneseq
  %v4422 = vshrl.u32 %v4421, 7
  %v4423 = vsub.s32 %v4420, %v4422
  %v4424 = vrot.slane %v4416, %v4423
  %v4426 = vunpack.c.l.s4 1966171168
  %v4427 = vunpack.c.0.s8 %v4426
  %v4428 = vlaneseq
  %v4429 = vshrl.u32 %v4428, 7
  %v4430 = vsub.s32 %v4427, %v4429
  %v4431 = vrot.slane %v4417, %v4430
  %v4432 = vcombine.low %v4424, %v4431
  %v4433 = vcombine.low %v3038, %v3042
  %v4434 = vcombine.low %v3046, %v3050
  %v4435 = vcombine.low %v3054, %v3058
  %v4436 = vcombine.low %v3062, %v3066
  %v4438 = vunpack.c.l.s4 1966171168
  %v4439 = vunpack.c.0.s8 %v4438
  %v4440 = vlaneseq
  %v4441 = vshrl.u32 %v4440, 7
  %v4442 = vsub.s32 %v4439, %v4441
  %v4443 = vrot.slane %v4433, %v4442
  %v4445 = vunpack.c.l.s4 1966171168
  %v4446 = vunpack.c.0.s8 %v4445
  %v4447 = vlaneseq
  %v4448 = vshrl.u32 %v4447, 7
  %v4449 = vsub.s32 %v4446, %v4448
  %v4450 = vrot.slane %v4434, %v4449
  %v4452 = vunpack.c.l.s4 1966171168
  %v4453 = vunpack.c.0.s8 %v4452
  %v4454 = vlaneseq
  %v4455 = vshrl.u32 %v4454, 7
  %v4456 = vsub.s32 %v4453, %v4455
  %v4457 = vrot.slane %v4435, %v4456
  %v4459 = vunpack.c.l.s4 1966171168
  %v4460 = vunpack.c.0.s8 %v4459
  %v4461 = vlaneseq
  %v4462 = vshrl.u32 %v4461, 7
  %v4463 = vsub.s32 %v4460, %v4462
  %v4464 = vrot.slane %v4436, %v4463
  %v4465 = vcombine.low %v4443, %v4450
  %v4466 = vcombine.low %v4457, %v4464
  %v4468 = vunpack.c.l.s4 1966171168
  %v4469 = vunpack.c.0.s8 %v4468
  %v4470 = vlaneseq
  %v4471 = vshrl.u32 %v4470, 7
  %v4472 = vsub.s32 %v4469, %v4471
  %v4473 = vrot.slane %v4465, %v4472
  %v4475 = vunpack.c.l.s4 1966171168
  %v4476 = vunpack.c.0.s8 %v4475
  %v4477 = vlaneseq
  %v4478 = vshrl.u32 %v4477, 7
  %v4479 = vsub.s32 %v4476, %v4478
  %v4480 = vrot.slane %v4466, %v4479
  %v4481 = vcombine.low %v4473, %v4480
  %v4482 = vcombine.low %v3070, %v3074
  %v4483 = vcombine.low %v3078, %v3082
  %v4484 = vcombine.low %v3086, %v3090
  %v4485 = vcombine.low %v3094, %v3098
  %v4487 = vunpack.c.l.s4 1966171168
  %v4488 = vunpack.c.0.s8 %v4487
  %v4489 = vlaneseq
  %v4490 = vshrl.u32 %v4489, 7
  %v4491 = vsub.s32 %v4488, %v4490
  %v4492 = vrot.slane %v4482, %v4491
  %v4494 = vunpack.c.l.s4 1966171168
  %v4495 = vunpack.c.0.s8 %v4494
  %v4496 = vlaneseq
  %v4497 = vshrl.u32 %v4496, 7
  %v4498 = vsub.s32 %v4495, %v4497
  %v4499 = vrot.slane %v4483, %v4498
  %v4501 = vunpack.c.l.s4 1966171168
  %v4502 = vunpack.c.0.s8 %v4501
  %v4503 = vlaneseq
  %v4504 = vshrl.u32 %v4503, 7
  %v4505 = vsub.s32 %v4502, %v4504
  %v4506 = vrot.slane %v4484, %v4505
  %v4508 = vunpack.c.l.s4 1966171168
  %v4509 = vunpack.c.0.s8 %v4508
  %v4510 = vlaneseq
  %v4511 = vshrl.u32 %v4510, 7
  %v4512 = vsub.s32 %v4509, %v4511
  %v4513 = vrot.slane %v4485, %v4512
  %v4514 = vcombine.low %v4492, %v4499
  %v4515 = vcombine.low %v4506, %v4513
  %v4517 = vunpack.c.l.s4 1966171168
  %v4518 = vunpack.c.0.s8 %v4517
  %v4519 = vlaneseq
  %v4520 = vshrl.u32 %v4519, 7
  %v4521 = vsub.s32 %v4518, %v4520
  %v4522 = vrot.slane %v4514, %v4521
  %v4524 = vunpack.c.l.s4 1966171168
  %v4525 = vunpack.c.0.s8 %v4524
  %v4526 = vlaneseq
  %v4527 = vshrl.u32 %v4526, 7
  %v4528 = vsub.s32 %v4525, %v4527
  %v4529 = vrot.slane %v4515, %v4528
  %v4530 = vcombine.low %v4522, %v4529
  %v4531 = vcombine.low %v3102, %v3106
  %v4532 = vcombine.low %v3110, %v3114
  %v4533 = vcombine.low %v3118, %v3122
  %v4534 = vcombine.low %v3126, %v3130
  %v4536 = vunpack.c.l.s4 1966171168
  %v4537 = vunpack.c.0.s8 %v4536
  %v4538 = vlaneseq
  %v4539 = vshrl.u32 %v4538, 7
  %v4540 = vsub.s32 %v4537, %v4539
  %v4541 = vrot.slane %v4531, %v4540
  %v4543 = vunpack.c.l.s4 1966171168
  %v4544 = vunpack.c.0.s8 %v4543
  %v4545 = vlaneseq
  %v4546 = vshrl.u32 %v4545, 7
  %v4547 = vsub.s32 %v4544, %v4546
  %v4548 = vrot.slane %v4532, %v4547
  %v4550 = vunpack.c.l.s4 1966171168
  %v4551 = vunpack.c.0.s8 %v4550
  %v4552 = vlaneseq
  %v4553 = vshrl.u32 %v4552, 7
  %v4554 = vsub.s32 %v4551, %v4553
  %v4555 = vrot.slane %v4533, %v4554
  %v4557 = vunpack.c.l.s4 1966171168
  %v4558 = vunpack.c.0.s8 %v4557
  %v4559 = vlaneseq
  %v4560 = vshrl.u32 %v4559, 7
  %v4561 = vsub.s32 %v4558, %v4560
  %v4562 = vrot.slane %v4534, %v4561
  %v4563 = vcombine.low %v4541, %v4548
  %v4564 = vcombine.low %v4555, %v4562
  %v4566 = vunpack.c.l.s4 1966171168
  %v4567 = vunpack.c.0.s8 %v4566
  %v4568 = vlaneseq
  %v4569 = vshrl.u32 %v4568, 7
  %v4570 = vsub.s32 %v4567, %v4569
  %v4571 = vrot.slane %v4563, %v4570
  %v4573 = vunpack.c.l.s4 1966171168
  %v4574 = vunpack.c.0.s8 %v4573
  %v4575 = vlaneseq
  %v4576 = vshrl.u32 %v4575, 7
  %v4577 = vsub.s32 %v4574, %v4576
  %v4578 = vrot.slane %v4564, %v4577
  %v4579 = vcombine.low %v4571, %v4578
  %v4580 = vcombine.low %v3134, %v3138
  %v4581 = vcombine.low %v3142, %v3146
  %v4582 = vcombine.low %v3150, %v3154
  %v4583 = vcombine.low %v3158, %v3162
  %v4585 = vunpack.c.l.s4 1966171168
  %v4586 = vunpack.c.0.s8 %v4585
  %v4587 = vlaneseq
  %v4588 = vshrl.u32 %v4587, 7
  %v4589 = vsub.s32 %v4586, %v4588
  %v4590 = vrot.slane %v4580, %v4589
  %v4592 = vunpack.c.l.s4 1966171168
  %v4593 = vunpack.c.0.s8 %v4592
  %v4594 = vlaneseq
  %v4595 = vshrl.u32 %v4594, 7
  %v4596 = vsub.s32 %v4593, %v4595
  %v4597 = vrot.slane %v4581, %v4596
  %v4599 = vunpack.c.l.s4 1966171168
  %v4600 = vunpack.c.0.s8 %v4599
  %v4601 = vlaneseq
  %v4602 = vshrl.u32 %v4601, 7
  %v4603 = vsub.s32 %v4600, %v4602
  %v4604 = vrot.slane %v4582, %v4603
  %v4606 = vunpack.c.l.s4 1966171168
  %v4607 = vunpack.c.0.s8 %v4606
  %v4608 = vlaneseq
  %v4609 = vshrl.u32 %v4608, 7
  %v4610 = vsub.s32 %v4607, %v4609
  %v4611 = vrot.slane %v4583, %v4610
  %v4612 = vcombine.low %v4590, %v4597
  %v4613 = vcombine.low %v4604, %v4611
  %v4615 = vunpack.c.l.s4 1966171168
  %v4616 = vunpack.c.0.s8 %v4615
  %v4617 = vlaneseq
  %v4618 = vshrl.u32 %v4617, 7
  %v4619 = vsub.s32 %v4616, %v4618
  %v4620 = vrot.slane %v4612, %v4619
  %v4622 = vunpack.c.l.s4 1966171168
  %v4623 = vunpack.c.0.s8 %v4622
  %v4624 = vlaneseq
  %v4625 = vshrl.u32 %v4624, 7
  %v4626 = vsub.s32 %v4623, %v4625
  %v4627 = vrot.slane %v4613, %v4626
  %v4628 = vcombine.low %v4620, %v4627
  %v4629 = vcombine.low %v3166, %v3170
  %v4630 = vcombine.low %v3174, %v3178
  %v4631 = vcombine.low %v3182, %v3186
  %v4632 = vcombine.low %v3190, %v3194
  %v4634 = vunpack.c.l.s4 1966171168
  %v4635 = vunpack.c.0.s8 %v4634
  %v4636 = vlaneseq
  %v4637 = vshrl.u32 %v4636, 7
  %v4638 = vsub.s32 %v4635, %v4637
  %v4639 = vrot.slane %v4629, %v4638
  %v4641 = vunpack.c.l.s4 1966171168
  %v4642 = vunpack.c.0.s8 %v4641
  %v4643 = vlaneseq
  %v4644 = vshrl.u32 %v4643, 7
  %v4645 = vsub.s32 %v4642, %v4644
  %v4646 = vrot.slane %v4630, %v4645
  %v4648 = vunpack.c.l.s4 1966171168
  %v4649 = vunpack.c.0.s8 %v4648
  %v4650 = vlaneseq
  %v4651 = vshrl.u32 %v4650, 7
  %v4652 = vsub.s32 %v4649, %v4651
  %v4653 = vrot.slane %v4631, %v4652
  %v4655 = vunpack.c.l.s4 1966171168
  %v4656 = vunpack.c.0.s8 %v4655
  %v4657 = vlaneseq
  %v4658 = vshrl.u32 %v4657, 7
  %v4659 = vsub.s32 %v4656, %v4658
  %v4660 = vrot.slane %v4632, %v4659
  %v4661 = vcombine.low %v4639, %v4646
  %v4662 = vcombine.low %v4653, %v4660
  %v4664 = vunpack.c.l.s4 1966171168
  %v4665 = vunpack.c.0.s8 %v4664
  %v4666 = vlaneseq
  %v4667 = vshrl.u32 %v4666, 7
  %v4668 = vsub.s32 %v4665, %v4667
  %v4669 = vrot.slane %v4661, %v4668
  %v4671 = vunpack.c.l.s4 1966171168
  %v4672 = vunpack.c.0.s8 %v4671
  %v4673 = vlaneseq
  %v4674 = vshrl.u32 %v4673, 7
  %v4675 = vsub.s32 %v4672, %v4674
  %v4676 = vrot.slane %v4662, %v4675
  %v4677 = vcombine.low %v4669, %v4676
  %v4678 = vcombine.low %v3198, %v3202
  %v4679 = vcombine.low %v3206, %v3210
  %v4680 = vcombine.low %v3214, %v3218
  %v4681 = vcombine.low %v3222, %v3226
  %v4683 = vunpack.c.l.s4 1966171168
  %v4684 = vunpack.c.0.s8 %v4683
  %v4685 = vlaneseq
  %v4686 = vshrl.u32 %v4685, 7
  %v4687 = vsub.s32 %v4684, %v4686
  %v4688 = vrot.slane %v4678, %v4687
  %v4690 = vunpack.c.l.s4 1966171168
  %v4691 = vunpack.c.0.s8 %v4690
  %v4692 = vlaneseq
  %v4693 = vshrl.u32 %v4692, 7
  %v4694 = vsub.s32 %v4691, %v4693
  %v4695 = vrot.slane %v4679, %v4694
  %v4697 = vunpack.c.l.s4 1966171168
  %v4698 = vunpack.c.0.s8 %v4697
  %v4699 = vlaneseq
  %v4700 = vshrl.u32 %v4699, 7
  %v4701 = vsub.s32 %v4698, %v4700
  %v4702 = vrot.slane %v4680, %v4701
  %v4704 = vunpack.c.l.s4 1966171168
  %v4705 = vunpack.c.0.s8 %v4704
  %v4706 = vlaneseq
  %v4707 = vshrl.u32 %v4706, 7
  %v4708 = vsub.s32 %v4705, %v4707
  %v4709 = vrot.slane %v4681, %v4708
  %v4710 = vcombine.low %v4688, %v4695
  %v4711 = vcombine.low %v4702, %v4709
  %v4713 = vunpack.c.l.s4 1966171168
  %v4714 = vunpack.c.0.s8 %v4713
  %v4715 = vlaneseq
  %v4716 = vshrl.u32 %v4715, 7
  %v4717 = vsub.s32 %v4714, %v4716
  %v4718 = vrot.slane %v4710, %v4717
  %v4720 = vunpack.c.l.s4 1966171168
  %v4721 = vunpack.c.0.s8 %v4720
  %v4722 = vlaneseq
  %v4723 = vshrl.u32 %v4722, 7
  %v4724 = vsub.s32 %v4721, %v4723
  %v4725 = vrot.slane %v4711, %v4724
  %v4726 = vcombine.low %v4718, %v4725
  %v4727 = vcombine.low %v3230, %v3234
  %v4728 = vcombine.low %v3238, %v3242
  %v4729 = vcombine.low %v3246, %v3250
  %v4730 = vcombine.low %v3254, %v3258
  %v4732 = vunpack.c.l.s4 1966171168
  %v4733 = vunpack.c.0.s8 %v4732
  %v4734 = vlaneseq
  %v4735 = vshrl.u32 %v4734, 7
  %v4736 = vsub.s32 %v4733, %v4735
  %v4737 = vrot.slane %v4727, %v4736
  %v4739 = vunpack.c.l.s4 1966171168
  %v4740 = vunpack.c.0.s8 %v4739
  %v4741 = vlaneseq
  %v4742 = vshrl.u32 %v4741, 7
  %v4743 = vsub.s32 %v4740, %v4742
  %v4744 = vrot.slane %v4728, %v4743
  %v4746 = vunpack.c.l.s4 1966171168
  %v4747 = vunpack.c.0.s8 %v4746
  %v4748 = vlaneseq
  %v4749 = vshrl.u32 %v4748, 7
  %v4750 = vsub.s32 %v4747, %v4749
  %v4751 = vrot.slane %v4729, %v4750
  %v4753 = vunpack.c.l.s4 1966171168
  %v4754 = vunpack.c.0.s8 %v4753
  %v4755 = vlaneseq
  %v4756 = vshrl.u32 %v4755, 7
  %v4757 = vsub.s32 %v4754, %v4756
  %v4758 = vrot.slane %v4730, %v4757
  %v4759 = vcombine.low %v4737, %v4744
  %v4760 = vcombine.low %v4751, %v4758
  %v4762 = vunpack.c.l.s4 1966171168
  %v4763 = vunpack.c.0.s8 %v4762
  %v4764 = vlaneseq
  %v4765 = vshrl.u32 %v4764, 7
  %v4766 = vsub.s32 %v4763, %v4765
  %v4767 = vrot.slane %v4759, %v4766
  %v4769 = vunpack.c.l.s4 1966171168
  %v4770 = vunpack.c.0.s8 %v4769
  %v4771 = vlaneseq
  %v4772 = vshrl.u32 %v4771, 7
  %v4773 = vsub.s32 %v4770, %v4772
  %v4774 = vrot.slane %v4760, %v4773
  %v4775 = vcombine.low %v4767, %v4774
  %v4776 = vcombine.low %v3262, %v3266
  %v4777 = vcombine.low %v3270, %v3274
  %v4778 = vcombine.low %v3278, %v3282
  %v4779 = vcombine.low %v3286, %v3290
  %v4781 = vunpack.c.l.s4 1966171168
  %v4782 = vunpack.c.0.s8 %v4781
  %v4783 = vlaneseq
  %v4784 = vshrl.u32 %v4783, 7
  %v4785 = vsub.s32 %v4782, %v4784
  %v4786 = vrot.slane %v4776, %v4785
  %v4788 = vunpack.c.l.s4 1966171168
  %v4789 = vunpack.c.0.s8 %v4788
  %v4790 = vlaneseq
  %v4791 = vshrl.u32 %v4790, 7
  %v4792 = vsub.s32 %v4789, %v4791
  %v4793 = vrot.slane %v4777, %v4792
  %v4795 = vunpack.c.l.s4 1966171168
  %v4796 = vunpack.c.0.s8 %v4795
  %v4797 = vlaneseq
  %v4798 = vshrl.u32 %v4797, 7
  %v4799 = vsub.s32 %v4796, %v4798
  %v4800 = vrot.slane %v4778, %v4799
  %v4802 = vunpack.c.l.s4 1966171168
  %v4803 = vunpack.c.0.s8 %v4802
  %v4804 = vlaneseq
  %v4805 = vshrl.u32 %v4804, 7
  %v4806 = vsub.s32 %v4803, %v4805
  %v4807 = vrot.slane %v4779, %v4806
  %v4808 = vcombine.low %v4786, %v4793
  %v4809 = vcombine.low %v4800, %v4807
  %v4811 = vunpack.c.l.s4 1966171168
  %v4812 = vunpack.c.0.s8 %v4811
  %v4813 = vlaneseq
  %v4814 = vshrl.u32 %v4813, 7
  %v4815 = vsub.s32 %v4812, %v4814
  %v4816 = vrot.slane %v4808, %v4815
  %v4818 = vunpack.c.l.s4 1966171168
  %v4819 = vunpack.c.0.s8 %v4818
  %v4820 = vlaneseq
  %v4821 = vshrl.u32 %v4820, 7
  %v4822 = vsub.s32 %v4819, %v4821
  %v4823 = vrot.slane %v4809, %v4822
  %v4824 = vcombine.low %v4816, %v4823
  %v4825 = vcombine.low %v3294, %v3298
  %v4826 = vcombine.low %v3302, %v3306
  %v4827 = vcombine.low %v3310, %v3314
  %v4828 = vcombine.low %v3318, %v3322
  %v4830 = vunpack.c.l.s4 1966171168
  %v4831 = vunpack.c.0.s8 %v4830
  %v4832 = vlaneseq
  %v4833 = vshrl.u32 %v4832, 7
  %v4834 = vsub.s32 %v4831, %v4833
  %v4835 = vrot.slane %v4825, %v4834
  %v4837 = vunpack.c.l.s4 1966171168
  %v4838 = vunpack.c.0.s8 %v4837
  %v4839 = vlaneseq
  %v4840 = vshrl.u32 %v4839, 7
  %v4841 = vsub.s32 %v4838, %v4840
  %v4842 = vrot.slane %v4826, %v4841
  %v4844 = vunpack.c.l.s4 1966171168
  %v4845 = vunpack.c.0.s8 %v4844
  %v4846 = vlaneseq
  %v4847 = vshrl.u32 %v4846, 7
  %v4848 = vsub.s32 %v4845, %v4847
  %v4849 = vrot.slane %v4827, %v4848
  %v4851 = vunpack.c.l.s4 1966171168
  %v4852 = vunpack.c.0.s8 %v4851
  %v4853 = vlaneseq
  %v4854 = vshrl.u32 %v4853, 7
  %v4855 = vsub.s32 %v4852, %v4854
  %v4856 = vrot.slane %v4828, %v4855
  %v4857 = vcombine.low %v4835, %v4842
  %v4858 = vcombine.low %v4849, %v4856
  %v4860 = vunpack.c.l.s4 1966171168
  %v4861 = vunpack.c.0.s8 %v4860
  %v4862 = vlaneseq
  %v4863 = vshrl.u32 %v4862, 7
  %v4864 = vsub.s32 %v4861, %v4863
  %v4865 = vrot.slane %v4857, %v4864
  %v4867 = vunpack.c.l.s4 1966171168
  %v4868 = vunpack.c.0.s8 %v4867
  %v4869 = vlaneseq
  %v4870 = vshrl.u32 %v4869, 7
  %v4871 = vsub.s32 %v4868, %v4870
  %v4872 = vrot.slane %v4858, %v4871
  %v4873 = vcombine.low %v4865, %v4872
  %v4874 = vcombine.low %v3326, %v3330
  %v4875 = vcombine.low %v3334, %v3338
  %v4876 = vcombine.low %v3342, %v3346
  %v4877 = vcombine.low %v3350, %v3354
  %v4879 = vunpack.c.l.s4 1966171168
  %v4880 = vunpack.c.0.s8 %v4879
  %v4881 = vlaneseq
  %v4882 = vshrl.u32 %v4881, 7
  %v4883 = vsub.s32 %v4880, %v4882
  %v4884 = vrot.slane %v4874, %v4883
  %v4886 = vunpack.c.l.s4 1966171168
  %v4887 = vunpack.c.0.s8 %v4886
  %v4888 = vlaneseq
  %v4889 = vshrl.u32 %v4888, 7
  %v4890 = vsub.s32 %v4887, %v4889
  %v4891 = vrot.slane %v4875, %v4890
  %v4893 = vunpack.c.l.s4 1966171168
  %v4894 = vunpack.c.0.s8 %v4893
  %v4895 = vlaneseq
  %v4896 = vshrl.u32 %v4895, 7
  %v4897 = vsub.s32 %v4894, %v4896
  %v4898 = vrot.slane %v4876, %v4897
  %v4900 = vunpack.c.l.s4 1966171168
  %v4901 = vunpack.c.0.s8 %v4900
  %v4902 = vlaneseq
  %v4903 = vshrl.u32 %v4902, 7
  %v4904 = vsub.s32 %v4901, %v4903
  %v4905 = vrot.slane %v4877, %v4904
  %v4906 = vcombine.low %v4884, %v4891
  %v4907 = vcombine.low %v4898, %v4905
  %v4909 = vunpack.c.l.s4 1966171168
  %v4910 = vunpack.c.0.s8 %v4909
  %v4911 = vlaneseq
  %v4912 = vshrl.u32 %v4911, 7
  %v4913 = vsub.s32 %v4910, %v4912
  %v4914 = vrot.slane %v4906, %v4913
  %v4916 = vunpack.c.l.s4 1966171168
  %v4917 = vunpack.c.0.s8 %v4916
  %v4918 = vlaneseq
  %v4919 = vshrl.u32 %v4918, 7
  %v4920 = vsub.s32 %v4917, %v4919
  %v4921 = vrot.slane %v4907, %v4920
  %v4922 = vcombine.low %v4914, %v4921
  %4923 = vset.pattern.permute.xlu0 0
  %4924 = vperm.xlu0 %4923, %v3403
  %v4925 = vpop.permute.xlu0 %4924
  %4926 = vset.pattern.permute.xlu0 0
  %4927 = vperm.xlu0 %4926, %v3452
  %v4928 = vpop.permute.xlu0 %4927
  %4929 = vset.pattern.permute.xlu0 0
  %4930 = vperm.xlu0 %4929, %v3501
  %v4931 = vpop.permute.xlu0 %4930
  %4932 = vset.pattern.permute.xlu0 0
  %4933 = vperm.xlu0 %4932, %v3550
  %v4934 = vpop.permute.xlu0 %4933
  %4935 = vset.pattern.permute.xlu0 0
  %4936 = vperm.xlu0 %4935, %v3599
  %v4937 = vpop.permute.xlu0 %4936
  %4938 = vset.pattern.permute.xlu0 0
  %4939 = vperm.xlu0 %4938, %v3648
  %v4940 = vpop.permute.xlu0 %4939
  %4941 = vset.pattern.permute.xlu0 0
  %4942 = vperm.xlu0 %4941, %v3697
  %v4943 = vpop.permute.xlu0 %4942
  %4944 = vset.pattern.permute.xlu0 0
  %4945 = vperm.xlu0 %4944, %v3746
  %v4946 = vpop.permute.xlu0 %4945
  %4947 = vset.pattern.permute.xlu0 0
  %4948 = vperm.xlu0 %4947, %v3795
  %v4949 = vpop.permute.xlu0 %4948
  %4950 = vset.pattern.permute.xlu0 0
  %4951 = vperm.xlu0 %4950, %v3844
  %v4952 = vpop.permute.xlu0 %4951
  %4953 = vset.pattern.permute.xlu0 0
  %4954 = vperm.xlu0 %4953, %v3893
  %v4955 = vpop.permute.xlu0 %4954
  %4956 = vset.pattern.permute.xlu0 0
  %4957 = vperm.xlu0 %4956, %v3942
  %v4958 = vpop.permute.xlu0 %4957
  %4959 = vset.pattern.permute.xlu0 0
  %4960 = vperm.xlu0 %4959, %v3991
  %v4961 = vpop.permute.xlu0 %4960
  %4962 = vset.pattern.permute.xlu0 0
  %4963 = vperm.xlu0 %4962, %v4040
  %v4964 = vpop.permute.xlu0 %4963
  %4965 = vset.pattern.permute.xlu0 0
  %4966 = vperm.xlu0 %4965, %v4089
  %v4967 = vpop.permute.xlu0 %4966
  %4968 = vset.pattern.permute.xlu0 0
  %4969 = vperm.xlu0 %4968, %v4138
  %v4970 = vpop.permute.xlu0 %4969
  %4971 = vset.pattern.permute.xlu0 0
  %4972 = vperm.xlu0 %4971, %v4187
  %v4973 = vpop.permute.xlu0 %4972
  %4974 = vset.pattern.permute.xlu0 0
  %4975 = vperm.xlu0 %4974, %v4236
  %v4976 = vpop.permute.xlu0 %4975
  %4977 = vset.pattern.permute.xlu0 0
  %4978 = vperm.xlu0 %4977, %v4285
  %v4979 = vpop.permute.xlu0 %4978
  %4980 = vset.pattern.permute.xlu0 0
  %4981 = vperm.xlu0 %4980, %v4334
  %v4982 = vpop.permute.xlu0 %4981
  %4983 = vset.pattern.permute.xlu0 0
  %4984 = vperm.xlu0 %4983, %v4383
  %v4985 = vpop.permute.xlu0 %4984
  %4986 = vset.pattern.permute.xlu0 0
  %4987 = vperm.xlu0 %4986, %v4432
  %v4988 = vpop.permute.xlu0 %4987
  %4989 = vset.pattern.permute.xlu0 0
  %4990 = vperm.xlu0 %4989, %v4481
  %v4991 = vpop.permute.xlu0 %4990
  %4992 = vset.pattern.permute.xlu0 0
  %4993 = vperm.xlu0 %4992, %v4530
  %v4994 = vpop.permute.xlu0 %4993
  %4995 = vset.pattern.permute.xlu0 0
  %4996 = vperm.xlu0 %4995, %v4579
  %v4997 = vpop.permute.xlu0 %4996
  %4998 = vset.pattern.permute.xlu0 0
  %4999 = vperm.xlu0 %4998, %v4628
  %v5000 = vpop.permute.xlu0 %4999
  %5001 = vset.pattern.permute.xlu0 0
  %5002 = vperm.xlu0 %5001, %v4677
  %v5003 = vpop.permute.xlu0 %5002
  %5004 = vset.pattern.permute.xlu0 0
  %5005 = vperm.xlu0 %5004, %v4726
  %v5006 = vpop.permute.xlu0 %5005
  %5007 = vset.pattern.permute.xlu0 0
  %5008 = vperm.xlu0 %5007, %v4775
  %v5009 = vpop.permute.xlu0 %5008
  %5010 = vset.pattern.permute.xlu0 0
  %5011 = vperm.xlu0 %5010, %v4824
  %v5012 = vpop.permute.xlu0 %5011
  %5013 = vset.pattern.permute.xlu0 0
  %5014 = vperm.xlu0 %5013, %v4873
  %v5015 = vpop.permute.xlu0 %5014
  %5016 = vset.pattern.permute.xlu0 0
  %5017 = vperm.xlu0 %5016, %v4922
  %v5018 = vpop.permute.xlu0 %5017
  %v5019 = vlaneseq
  %v5020 = vand.u32 %v5019, 127
  %v5021 = vlaneseq
  %v5022 = vshrl.u32 %v5021, 7
  %v5023 = vsub.s32 %v5020, %v5022
  %v5024 = vrot.slane %v4925, %v5023
  %v5025 = vadd.s32 %v5020, 4294967288
  %v5026 = vlaneseq
  %v5027 = vshrl.u32 %v5026, 7
  %v5028 = vsub.s32 %v5025, %v5027
  %v5029 = vrot.slane %v4928, %v5028
  %vm5030 = vcmask 130112
  %v5031 = vsel %vm5030, %v5029, %v5024
  %v5032 = vadd.s32 %v5020, 4294967280
  %v5033 = vlaneseq
  %v5034 = vshrl.u32 %v5033, 7
  %v5035 = vsub.s32 %v5032, %v5034
  %v5036 = vrot.slane %v4931, %v5035
  %vm5037 = vcmask 195712
  %v5038 = vsel %vm5037, %v5036, %v5031
  %v5039 = vadd.s32 %v5020, 4294967272
  %v5040 = vlaneseq
  %v5041 = vshrl.u32 %v5040, 7
  %v5042 = vsub.s32 %v5039, %v5041
  %v5043 = vrot.slane %v4934, %v5042
  %vm5044 = vcmask 261312
  %v5045 = vsel %vm5044, %v5043, %v5038
  %v5046 = vadd.s32 %v5020, 4294967264
  %v5047 = vlaneseq
  %v5048 = vshrl.u32 %v5047, 7
  %v5049 = vsub.s32 %v5046, %v5048
  %v5050 = vrot.slane %v4937, %v5049
  %vm5051 = vcmask 326912
  %v5052 = vsel %vm5051, %v5050, %v5045
  %v5053 = vadd.s32 %v5020, 4294967256
  %v5054 = vlaneseq
  %v5055 = vshrl.u32 %v5054, 7
  %v5056 = vsub.s32 %v5053, %v5055
  %v5057 = vrot.slane %v4940, %v5056
  %vm5058 = vcmask 392512
  %v5059 = vsel %vm5058, %v5057, %v5052
  %v5060 = vadd.s32 %v5020, 4294967248
  %v5061 = vlaneseq
  %v5062 = vshrl.u32 %v5061, 7
  %v5063 = vsub.s32 %v5060, %v5062
  %v5064 = vrot.slane %v4943, %v5063
  %vm5065 = vcmask 458112
  %v5066 = vsel %vm5065, %v5064, %v5059
  %v5067 = vadd.s32 %v5020, 4294967240
  %v5068 = vlaneseq
  %v5069 = vshrl.u32 %v5068, 7
  %v5070 = vsub.s32 %v5067, %v5069
  %v5071 = vrot.slane %v4946, %v5070
  %vm5072 = vcmask 523712
  %v5073 = vsel %vm5072, %v5071, %v5066
  %v5074 = vadd.s32 %v5020, 4294967232
  %v5075 = vlaneseq
  %v5076 = vshrl.u32 %v5075, 7
  %v5077 = vsub.s32 %v5074, %v5076
  %v5078 = vrot.slane %v4949, %v5077
  %vm5079 = vcmask 589312
  %v5080 = vsel %vm5079, %v5078, %v5073
  %v5081 = vadd.s32 %v5020, 4294967224
  %v5082 = vlaneseq
  %v5083 = vshrl.u32 %v5082, 7
  %v5084 = vsub.s32 %v5081, %v5083
  %v5085 = vrot.slane %v4952, %v5084
  %vm5086 = vcmask 654912
  %v5087 = vsel %vm5086, %v5085, %v5080
  %v5088 = vadd.s32 %v5020, 4294967216
  %v5089 = vlaneseq
  %v5090 = vshrl.u32 %v5089, 7
  %v5091 = vsub.s32 %v5088, %v5090
  %v5092 = vrot.slane %v4955, %v5091
  %vm5093 = vcmask 720512
  %v5094 = vsel %vm5093, %v5092, %v5087
  %v5095 = vadd.s32 %v5020, 4294967208
  %v5096 = vlaneseq
  %v5097 = vshrl.u32 %v5096, 7
  %v5098 = vsub.s32 %v5095, %v5097
  %v5099 = vrot.slane %v4958, %v5098
  %vm5100 = vcmask 786112
  %v5101 = vsel %vm5100, %v5099, %v5094
  %v5102 = vadd.s32 %v5020, 4294967200
  %v5103 = vlaneseq
  %v5104 = vshrl.u32 %v5103, 7
  %v5105 = vsub.s32 %v5102, %v5104
  %v5106 = vrot.slane %v4961, %v5105
  %vm5107 = vcmask 851712
  %v5108 = vsel %vm5107, %v5106, %v5101
  %v5109 = vadd.s32 %v5020, 4294967192
  %v5110 = vlaneseq
  %v5111 = vshrl.u32 %v5110, 7
  %v5112 = vsub.s32 %v5109, %v5111
  %v5113 = vrot.slane %v4964, %v5112
  %vm5114 = vcmask 917312
  %v5115 = vsel %vm5114, %v5113, %v5108
  %v5116 = vadd.s32 %v5020, 4294967184
  %v5117 = vlaneseq
  %v5118 = vshrl.u32 %v5117, 7
  %v5119 = vsub.s32 %v5116, %v5118
  %v5120 = vrot.slane %v4967, %v5119
  %vm5121 = vcmask 982912
  %v5122 = vsel %vm5121, %v5120, %v5115
  %v5123 = vadd.s32 %v5020, 4294967176
  %v5124 = vlaneseq
  %v5125 = vshrl.u32 %v5124, 7
  %v5126 = vsub.s32 %v5123, %v5125
  %v5127 = vrot.slane %v4970, %v5126
  %vm5128 = vcmask 1048512
  %v5129 = vsel %vm5128, %v5127, %v5122
  %v5130 = vlaneseq
  %v5131 = vshrl.u32 %v5130, 7
  %v5132 = vsub.s32 %v5020, %v5131
  %v5133 = vrot.slane %v4973, %v5132
  %v5134 = vlaneseq
  %v5135 = vshrl.u32 %v5134, 7
  %v5136 = vsub.s32 %v5025, %v5135
  %v5137 = vrot.slane %v4976, %v5136
  %v5138 = vsel %vm5030, %v5137, %v5133
  %v5139 = vlaneseq
  %v5140 = vshrl.u32 %v5139, 7
  %v5141 = vsub.s32 %v5032, %v5140
  %v5142 = vrot.slane %v4979, %v5141
  %v5143 = vsel %vm5037, %v5142, %v5138
  %v5144 = vlaneseq
  %v5145 = vshrl.u32 %v5144, 7
  %v5146 = vsub.s32 %v5039, %v5145
  %v5147 = vrot.slane %v4982, %v5146
  %v5148 = vsel %vm5044, %v5147, %v5143
  %v5149 = vlaneseq
  %v5150 = vshrl.u32 %v5149, 7
  %v5151 = vsub.s32 %v5046, %v5150
  %v5152 = vrot.slane %v4985, %v5151
  %v5153 = vsel %vm5051, %v5152, %v5148
  %v5154 = vlaneseq
  %v5155 = vshrl.u32 %v5154, 7
  %v5156 = vsub.s32 %v5053, %v5155
  %v5157 = vrot.slane %v4988, %v5156
  %v5158 = vsel %vm5058, %v5157, %v5153
  %v5159 = vlaneseq
  %v5160 = vshrl.u32 %v5159, 7
  %v5161 = vsub.s32 %v5060, %v5160
  %v5162 = vrot.slane %v4991, %v5161
  %v5163 = vsel %vm5065, %v5162, %v5158
  %v5164 = vlaneseq
  %v5165 = vshrl.u32 %v5164, 7
  %v5166 = vsub.s32 %v5067, %v5165
  %v5167 = vrot.slane %v4994, %v5166
  %v5168 = vsel %vm5072, %v5167, %v5163
  %v5169 = vlaneseq
  %v5170 = vshrl.u32 %v5169, 7
  %v5171 = vsub.s32 %v5074, %v5170
  %v5172 = vrot.slane %v4997, %v5171
  %v5173 = vsel %vm5079, %v5172, %v5168
  %v5174 = vlaneseq
  %v5175 = vshrl.u32 %v5174, 7
  %v5176 = vsub.s32 %v5081, %v5175
  %v5177 = vrot.slane %v5000, %v5176
  %v5178 = vsel %vm5086, %v5177, %v5173
  %v5179 = vlaneseq
  %v5180 = vshrl.u32 %v5179, 7
  %v5181 = vsub.s32 %v5088, %v5180
  %v5182 = vrot.slane %v5003, %v5181
  %v5183 = vsel %vm5093, %v5182, %v5178
  %v5184 = vlaneseq
  %v5185 = vshrl.u32 %v5184, 7
  %v5186 = vsub.s32 %v5095, %v5185
  %v5187 = vrot.slane %v5006, %v5186
  %v5188 = vsel %vm5100, %v5187, %v5183
  %v5189 = vlaneseq
  %v5190 = vshrl.u32 %v5189, 7
  %v5191 = vsub.s32 %v5102, %v5190
  %v5192 = vrot.slane %v5009, %v5191
  %v5193 = vsel %vm5107, %v5192, %v5188
  %v5194 = vlaneseq
  %v5195 = vshrl.u32 %v5194, 7
  %v5196 = vsub.s32 %v5109, %v5195
  %v5197 = vrot.slane %v5012, %v5196
  %v5198 = vsel %vm5114, %v5197, %v5193
  %v5199 = vlaneseq
  %v5200 = vshrl.u32 %v5199, 7
  %v5201 = vsub.s32 %v5116, %v5200
  %v5202 = vrot.slane %v5015, %v5201
  %v5203 = vsel %vm5121, %v5202, %v5198
  %v5204 = vlaneseq
  %v5205 = vshrl.u32 %v5204, 7
  %v5206 = vsub.s32 %v5123, %v5205
  %v5207 = vrot.slane %v5018, %v5206
  %v5208 = vsel %vm5128, %v5207, %v5203
  %v5209 = vcombine.low %v5129, %v5208
  %v5211 = vunpack.c.l.s4 1966171168
  %v5212 = vunpack.c.0.s8 %v5211
  %v5213 = vlaneseq
  %v5214 = vshrl.u32 %v5213, 7
  %v5215 = vsub.s32 %v5212, %v5214
  %v5216 = vrot.slane %v5209, %v5215
  %v5218 = vunpack.c.l.s4 1966171168
  %v5219 = vunpack.c.0.s8 %v5218
  %v5220 = vlaneseq
  %v5221 = vshrl.u32 %v5220, 7
  %v5222 = vsub.s32 %v5219, %v5221
  %v5223 = vrot.slane %v5216, %v5222
  %v5225 = vlaneseq
  %vm5226 = vcmp.ge.s32.totalorder %v5225, 0
  %vm5227 = vcmp.lt.s32.totalorder %v5225, 256
  %vm5228 = vmand %vm5226, %vm5227
  %5229 = vst.msk [vmem:[%s12] sm:$0x3] %vm5228, %v5223
  // Predicated region
  $region50: #{methane_forward.1} parent=0 // pred_check
    _
  $region51: #{methane_forward.1} parent=0 // pred_check_branch
    %5231 = sbr.rel (0) target = $region53
  $region52: #{methane_forward.1} parent=0 // pred_region
    _
  $region53: #{methane_forward.1} parent=0 // pred_fallthru
    _
  // Predicated region
  $region54: #{methane_forward.1} parent=0 // pred_check
    _
  $region55: #{methane_forward.1} parent=0 // pred_check_branch
    %5233 = sbr.rel (0) target = $region57
  $region56: #{methane_forward.1} parent=0 // pred_region
    _
  $region57: #{methane_forward.1} parent=0 // pred_fallthru
    _

</llo_original>
